<compile_context>
chip_gen: v7x
topology: tpu7x:2x2x1
jax: 0.10.0
libtpu: 0.0.40
codegen_flags: <defaults>
</compile_context>

<pallas_src>
import functools

import numpy as np
import jax
import jax.numpy as jnp
from jax import lax
from jax.experimental import pallas as pl
from jax.experimental.pallas import tpu as pltpu

LANES = 128          # lane-padded classifier width (logits store is a plain vst)
NUM_LABELS = 2
NBUF = 8             # in-flight row DMAs in the CLS-row gather ring (tile_rows % NBUF == 0)
MAX_TILE_ROWS = 512  # rows per grid tile (multiple of 8)


def _round_up(x, m):
    return (x + m - 1) // m * m


def _num_tensorcores_per_chip():
    """2 TensorCores on v7x (feed both via the parallel grid axis); 1 on v5e/v6e."""
    try:
        kind = jax.devices()[0].device_kind.lower()
    except Exception:
        return 1
    return 2 if ("v7" in kind or "tpu7" in kind) else 1


_NCORES = _num_tensorcores_per_chip()


def _segment_kernel(tile_rows, num_labels,
                    row_src_ref,                 # SMEM  [rows_pad] i32 (scalar prefetch; -1 = skip)
                    hs_ref,                      # HBM   [B*S, H]   (memory_space=pl.ANY)
                    w_ref, b_ref,                # VMEM  [H, 128], [1, 128] f32
                    lab1_ref, lab2_ref,          # VMEM  [tile_rows, 1] i32
                    valid_ref,                   # VMEM  [tile_rows, 1] f32
                    logits_ref,                  # VMEM  [tile_rows, 128] f32 (out)
                    parts_ref,                   # VMEM  [8, 128] f32 (out, per-tile sums)
                    sent_ref,                    # VMEM scratch [tile_rows, H] f32
                    dma_sem):                    # DMA semaphore ring [NBUF]
    tile = pl.program_id(0)
    row0 = tile * tile_rows
    n_groups = tile_rows // NBUF                 # tile_rows is a multiple of NBUF

    # ---------------- gather CLS rows straight from HBM (NBUF-deep DMA ring) --------------
    def _start(i, slot, src):
        # Invalid/padded rows (src == -1) are never fetched: their stale scratch rows are
        # overridden with the bias after the matmul and their labels stay -1.
        @pl.when(src >= 0)
        def _():
            pltpu.make_async_copy(hs_ref.at[pl.ds(src, 1), :],
                                  sent_ref.at[pl.ds(i, 1), :],
                                  dma_sem.at[slot]).start()

    def _wait(i, slot, src):
        @pl.when(src >= 0)
        def _():
            # source slice only defines the transfer shape; row 0 is fine for the wait.
            pltpu.make_async_copy(hs_ref.at[pl.ds(0, 1), :],
                                  sent_ref.at[pl.ds(i, 1), :],
                                  dma_sem.at[slot]).wait()

    # prime: start rows 0..NBUF-1 (statically unrolled; all SMEM reads issued up front)
    prime_srcs = [row_src_ref[row0 + j] for j in range(NBUF)]
    for j in range(NBUF):
        _start(j, j, prime_srcs[j])

    # steady: groups 1..n_groups-1; the NBUF rows of a group are statically unrolled so
    # the scheduler can overlap address math, waits and DMA-descriptor pushes.  All SMEM
    # index reads of the group happen BEFORE any .wait() (wait breaks sst->sld forwarding).
    def _steady(g, c):
        i0 = g * NBUF
        srcs_prev = [row_src_ref[row0 + i0 - NBUF + j] for j in range(NBUF)]
        srcs_next = [row_src_ref[row0 + i0 + j] for j in range(NBUF)]
        for j in range(NBUF):
            _wait(i0 - NBUF + j, j, srcs_prev[j])      # row finished -> slot j free
            _start(i0 + j, j, srcs_next[j])            # refill slot j (keeps NBUF in flight)
        return c

    lax.fori_loop(1, n_groups, _steady, 0)

    # drain: last NBUF rows (statically unrolled, SMEM reads first)
    last0 = tile_rows - NBUF
    drain_srcs = [row_src_ref[row0 + last0 + j] for j in range(NBUF)]
    for j in range(NBUF):
        _wait(last0 + j, j, drain_srcs[j])

    # ---------------- classifier: lane-dense MXU matmul --------------------------------
    logits = jnp.dot(sent_ref[...], w_ref[...],
                     preferred_element_type=jnp.float32) + b_ref[...]
    # Rows past turn_nums[b] (and pad rows) were never fetched: force them to the bias,
    # exactly what a zero sent_repr row would have produced.  This is H/128x less VALU
    # work than masking the [rows, H] activations before the matmul.
    logits = jnp.where(valid_ref[...] > 0.0, logits, b_ref[...])
    logits_ref[...] = logits                     # [tile_rows, 128], unmasked store

    # ---------------- masked cross-entropy for both persons ----------------------------
    lane = lax.broadcasted_iota(jnp.int32, logits.shape, 1)
    cls_mask = lane < num_labels                 # only the first `num_labels` lanes are real
    neg_big = jnp.float32(-1e30)
    ml = jnp.where(cls_mask, logits, neg_big)
    m = jnp.max(ml, axis=-1, keepdims=True)
    e = jnp.where(cls_mask, jnp.exp(ml - m), 0.0)
    lse = m + jnp.log(jnp.sum(e, axis=-1, keepdims=True))        # [tile_rows, 1]

    def _nll(lab_ref):
        lab = lab_ref[...]                                        # [tile_rows, 1] i32
        valid = lab >= 0                                          # ignore_index == -1
        picked = jnp.sum(jnp.where(lane == lab, logits, 0.0),
                         axis=-1, keepdims=True)                  # logit of the target class
        nll = jnp.where(valid, lse - picked, 0.0)
        return jnp.sum(nll), jnp.sum(valid.astype(jnp.float32))

    s1, c1 = _nll(lab1_ref)
    s2, c2 = _nll(lab2_ref)

    # lanes 0..3 of every sublane carry [sum_1, sum_2, count_1, count_2] (full-block store).
    lane_p = lax.broadcasted_iota(jnp.int32, parts_ref.shape, 1)
    parts_ref[...] = (jnp.where(lane_p == 0, s1, 0.0) + jnp.where(lane_p == 1, s2, 0.0)
                      + jnp.where(lane_p == 2, c1, 0.0) + jnp.where(lane_p == 3, c2, 0.0))


@jax.jit
def segment_predictor_forward(hidden_states, positions, turn_nums,
                              seg_label_1, seg_label_2, cls_w, cls_b):
    """hidden_states: [B, S, H] f32 encoder output; positions: [B, T] i32 CLS token
    positions (pad = 0); turn_nums: [B] i32 (runtime); seg_label_*: [B, T] i32;
    cls_w: [H, 2]; cls_b: [2].  Returns (loss, logits[B, T, 2])."""
    B, S, H = hidden_states.shape
    T = positions.shape[1]
    BT = B * T

    # Tile sizing: big tiles amortize per-step pipeline overhead + ring prime/drain;
    # on v7x round the tile count up to a multiple of 2 so both TensorCores get work.
    num_tiles = max(1, -(-BT // MAX_TILE_ROWS))
    num_tiles = _round_up(num_tiles, _NCORES)
    tile_rows = _round_up(-(-BT // num_tiles), 8)       # multiple of 8 (== NBUF)
    rows_pad = tile_rows * num_tiles

    # runtime validity mask (t < turn_nums[b]) — turn_nums is NOT baked into the kernel.
    valid = (jnp.arange(T, dtype=jnp.int32)[None, :]
             < turn_nums.astype(jnp.int32)[:, None])                       # [B, T] bool

    def _pad_rows(x, fill):
        return jnp.pad(x, ((0, rows_pad - BT), (0, 0)), constant_values=fill)

    row_src = (jnp.arange(B, dtype=jnp.int32)[:, None] * S
               + positions.astype(jnp.int32))                              # flat HBM row ids
    row_src = jnp.where(valid, row_src, -1).reshape(BT)                    # -1 => skip DMA
    row_src = jnp.pad(row_src, (0, rows_pad - BT), constant_values=-1)     # [rows_pad] i32

    lab1 = _pad_rows(jnp.where(valid, seg_label_1.astype(jnp.int32), -1).reshape(BT, 1), -1)
    lab2 = _pad_rows(jnp.where(valid, seg_label_2.astype(jnp.int32), -1).reshape(BT, 1), -1)
    valid_f = _pad_rows(valid.astype(jnp.float32).reshape(BT, 1), 0.0)

    hs2d = hidden_states.astype(jnp.float32).reshape(B * S, H)
    w_pad = jnp.zeros((H, LANES), jnp.float32).at[:, :NUM_LABELS].set(cls_w.astype(jnp.float32))
    b_pad = jnp.zeros((1, LANES), jnp.float32).at[0, :NUM_LABELS].set(cls_b.astype(jnp.float32))

    kern = functools.partial(_segment_kernel, tile_rows, NUM_LABELS)

    grid_spec = pltpu.PrefetchScalarGridSpec(
        num_scalar_prefetch=1,                    # row_src -> SMEM
        grid=(num_tiles,),
        in_specs=[
            pl.BlockSpec(memory_space=pl.ANY),                              # hidden states (HBM)
            pl.BlockSpec((H, LANES), lambda i, rs: (0, 0)),                 # classifier W (padded)
            pl.BlockSpec((1, LANES), lambda i, rs: (0, 0)),                 # classifier b (padded)
            pl.BlockSpec((tile_rows, 1), lambda i, rs: (i, 0)),             # labels person 1
            pl.BlockSpec((tile_rows, 1), lambda i, rs: (i, 0)),             # labels person 2
            pl.BlockSpec((tile_rows, 1), lambda i, rs: (i, 0)),             # row validity mask
        ],
        out_specs=(
            pl.BlockSpec((tile_rows, LANES), lambda i, rs: (i, 0)),         # logits (lane-dense)
            pl.BlockSpec((8, LANES), lambda i, rs: (i, 0)),                 # per-tile loss parts
        ),
        scratch_shapes=[
            pltpu.VMEM((tile_rows, H), jnp.float32),                        # gathered CLS rows
            pltpu.SemaphoreType.DMA((NBUF,)),                               # DMA ring sems
        ],
    )

    logits_pad, parts = pl.pallas_call(
        kern,
        grid_spec=grid_spec,
        out_shape=(jax.ShapeDtypeStruct((rows_pad, LANES), jnp.float32),
                   jax.ShapeDtypeStruct((num_tiles * 8, LANES), jnp.float32)),
        compiler_params=pltpu.CompilerParams(dimension_semantics=("parallel",)),
    )(row_src, hs2d, w_pad, b_pad, lab1, lab2, valid_f)

    parts = parts.reshape(num_tiles, 8, LANES)[:, 0, :]                     # one row per tile
    s1 = jnp.sum(parts[:, 0])
    s2 = jnp.sum(parts[:, 1])
    c1 = jnp.sum(parts[:, 2])
    c2 = jnp.sum(parts[:, 3])
    # 0/0 -> NaN if every label of a person is -1, matching torch cross_entropy semantics.
    loss = s1 / c1 + s2 / c2
    logits = logits_pad[:BT, :NUM_LABELS].reshape(B, T, NUM_LABELS)
    return loss, logits


def _numpy_reference(hs, doc, positions, turn_nums, lab1, lab2, W, b):
    B, S, H = hs.shape
    T = positions.shape[1]
    sent = np.zeros((B, T, H), np.float32)
    for i in range(B):
        rows = hs[i][doc[i] == 101]                       # [turn_nums[i], H]
        sent[i, :turn_nums[i]] = rows
    logits = sent.reshape(-1, H) @ W + b                  # [B*T, 2]
    m = logits.max(-1, keepdims=True)
    lse = np.log(np.exp(logits - m).sum(-1, keepdims=True)) + m
    logp = logits - lse

    def ce(lab):
        lab = lab.reshape(-1)
        valid = lab >= 0
        picked = logp[np.arange(lab.size), np.where(valid, lab, 0)]
        return (-picked[valid]).mean()

    return ce(lab1) + ce(lab2), logits.reshape(B, T, 2)


if __name__ == "__main__":
    B, S, H = 2, 48, 32
    vocab = 256
    key = jax.random.PRNGKey(0)
    k_doc, k_emb, k_noise, k_w, k_b, k_l1, k_l2 = jax.random.split(key, 7)

    # ---- deterministic synthetic "document" with CLS (=101) markers (writable copies) ----
    doc = np.array(jax.random.randint(k_doc, (B, S), 103, vocab), dtype=np.int32)
    doc[0, ::4] = 101      # example 0: 12 turns (positions 0, 4, ..., 44)
    doc[1, ::5] = 101      # example 1: 10 turns (positions 0, 5, ..., 45)

    turn_nums = (doc == 101).sum(axis=1).astype(np.int32)        # [12, 10]
    T = int(turn_nums.max())

    positions = np.zeros((B, T), np.int32)
    for i in range(B):
        idx = np.where(doc[i] == 101)[0]
        positions[i, :idx.size] = idx

    # ---- stand-in encoder output (see TODO(synk) above); position-dependent noise so the
    #      gather correctness (right HBM row per CLS index) is actually exercised ----
    emb_table = jax.random.normal(k_emb, (vocab, H), jnp.float32) * 0.5
    hidden_states = (emb_table[jnp.asarray(doc)]
                     + 0.1 * jax.random.normal(k_noise, (B, S, H), jnp.float32))

    # ---- classifier parameters (nn.Linear(H, 2)) ----
    cls_w = jax.random.normal(k_w, (H, 2), jnp.float32) * 0.02
    cls_b = jax.random.normal(k_b, (2,), jnp.float32) * 0.02

    # ---- segment labels for both persons (wrapper masks t >= turn_nums[b] to -1) ----
    lab1 = np.array(jax.random.randint(k_l1, (B, T), 0, 2), dtype=np.int32)
    lab2 = np.array(jax.random.randint(k_l2, (B, T), 0, 2), dtype=np.int32)

    loss, pred_logits = segment_predictor_forward(
        hidden_states, jnp.asarray(positions), jnp.asarray(turn_nums),
        jnp.asarray(lab1), jnp.asarray(lab2), cls_w, cls_b)
    loss = jax.block_until_ready(loss)
    pred_logits = jax.block_until_ready(pred_logits)

    # ---- verify against pure-numpy reference of the PyTorch semantics ----
    lab1_m = lab1.copy()
    lab2_m = lab2.copy()
    for i in range(B):
        lab1_m[i, turn_nums[i]:] = -1
        lab2_m[i, turn_nums[i]:] = -1
    ref_loss, ref_logits = _numpy_reference(
        np.asarray(hidden_states), doc, positions, turn_nums,
        lab1_m, lab2_m, np.asarray(cls_w), np.asarray(cls_b))

    np.testing.assert_allclose(np.asarray(loss), ref_loss, rtol=1e-4, atol=1e-4)
    np.testing.assert_allclose(np.asarray(pred_logits), ref_logits, rtol=1e-4, atol=1e-4)

    print("KERNEL_OK")
</pallas_src>

<mosaic_0001>
module attributes {stable_mosaic.version = 11 : i64} {
  func.func @_segment_kernel(%arg0: i32, %arg1: memref<24xi32, #tpu.memory_space<smem>>, %arg2: memref<96x32xf32, #tpu.memory_space<any>>, %arg3: memref<32x128xf32, #tpu.memory_space<vmem>>, %arg4: memref<1x128xf32, #tpu.memory_space<vmem>>, %arg5: memref<24x1xi32, #tpu.memory_space<vmem>>, %arg6: memref<24x1xi32, #tpu.memory_space<vmem>>, %arg7: memref<24x1xf32, #tpu.memory_space<vmem>>, %arg8: memref<24x128xf32, #tpu.memory_space<vmem>>, %arg9: memref<8x128xf32, #tpu.memory_space<vmem>>, %arg10: memref<24x32xf32, #tpu.memory_space<vmem>>, %arg11: memref<8x!tpu.dma_semaphore, #tpu.memory_space<semaphore_mem>>) attributes {dimension_semantics = [#tpu.dimension_semantics<parallel>], iteration_bounds = array<i64: 1>, scalar_prefetch = 1 : i64, scratch_operands = 2 : i64, tpu.core_type = #tpu.core_type<tc>, window_params = [{}, {pipeline_mode = #tpu.pipeline_mode<synchronous>, transform_indices = @transform_1, window_bounds = array<i64: 32, 128>}, {pipeline_mode = #tpu.pipeline_mode<synchronous>, transform_indices = @transform_2, window_bounds = array<i64: 1, 128>}, {transform_indices = @transform_3, window_bounds = array<i64: 24, 1>}, {transform_indices = @transform_4, window_bounds = array<i64: 24, 1>}, {transform_indices = @transform_5, window_bounds = array<i64: 24, 1>}, {transform_indices = @transform_6, window_bounds = array<i64: 24, 128>}, {transform_indices = @transform_7, window_bounds = array<i64: 8, 128>}]} {
    %c24_i32 = arith.constant 24 : i32
    %0 = arith.muli %arg0, %c24_i32 : i32
    %c0_i32 = arith.constant 0 : i32
    %1 = arith.addi %0, %c0_i32 : i32
    %2 = arith.index_cast %1 : i32 to index
    %3 = memref.load %arg1[%2] : memref<24xi32, #tpu.memory_space<smem>>
    %c1_i32 = arith.constant 1 : i32
    %4 = arith.addi %0, %c1_i32 : i32
    %5 = arith.index_cast %4 : i32 to index
    %6 = memref.load %arg1[%5] : memref<24xi32, #tpu.memory_space<smem>>
    %c2_i32 = arith.constant 2 : i32
    %7 = arith.addi %0, %c2_i32 : i32
    %8 = arith.index_cast %7 : i32 to index
    %9 = memref.load %arg1[%8] : memref<24xi32, #tpu.memory_space<smem>>
    %c3_i32 = arith.constant 3 : i32
    %10 = arith.addi %0, %c3_i32 : i32
    %11 = arith.index_cast %10 : i32 to index
    %12 = memref.load %arg1[%11] : memref<24xi32, #tpu.memory_space<smem>>
    %c4_i32 = arith.constant 4 : i32
    %13 = arith.addi %0, %c4_i32 : i32
    %14 = arith.index_cast %13 : i32 to index
    %15 = memref.load %arg1[%14] : memref<24xi32, #tpu.memory_space<smem>>
    %c5_i32 = arith.constant 5 : i32
    %16 = arith.addi %0, %c5_i32 : i32
    %17 = arith.index_cast %16 : i32 to index
    %18 = memref.load %arg1[%17] : memref<24xi32, #tpu.memory_space<smem>>
    %c6_i32 = arith.constant 6 : i32
    %19 = arith.addi %0, %c6_i32 : i32
    %20 = arith.index_cast %19 : i32 to index
    %21 = memref.load %arg1[%20] : memref<24xi32, #tpu.memory_space<smem>>
    %c7_i32 = arith.constant 7 : i32
    %22 = arith.addi %0, %c7_i32 : i32
    %23 = arith.index_cast %22 : i32 to index
    %24 = memref.load %arg1[%23] : memref<24xi32, #tpu.memory_space<smem>>
    %c0_i32_0 = arith.constant 0 : i32
    %25 = arith.cmpi sge, %3, %c0_i32_0 : i32
    %26 = arith.extui %25 : i1 to i32
    %c0_i32_1 = arith.constant 0 : i32
    %27 = arith.cmpi ne, %26, %c0_i32_1 : i32
    scf.if %27 {
      %c0_i32_94 = arith.constant 0 : i32
      %c0_i32_95 = arith.constant 0 : i32
      %207 = tpu.memref_slice %arg2[%3, %c0_i32_95] : memref<96x32xf32, #tpu.memory_space<any>> -> memref<1x32xf32, #tpu.memory_space<any>>
      %c0_i32_96 = arith.constant 0 : i32
      %c0_i32_97 = arith.constant 0 : i32
      %208 = tpu.memref_slice %arg10[%c0_i32_96, %c0_i32_97] : memref<24x32xf32, #tpu.memory_space<vmem>> -> memref<1x32xf32, #tpu.memory_space<vmem>>
      %209 = tpu.memref_slice %arg11[%c0_i32_94] : memref<8x!tpu.dma_semaphore, #tpu.memory_space<semaphore_mem>> -> memref<1x!tpu.dma_semaphore, #tpu.memory_space<semaphore_mem>>
      %210 = tpu.memref_squeeze %209 : memref<1x!tpu.dma_semaphore, #tpu.memory_space<semaphore_mem>> -> memref<!tpu.dma_semaphore, #tpu.memory_space<semaphore_mem>>
      tpu.enqueue_dma source(%207 : memref<1x32xf32, #tpu.memory_space<any>>) target(%208 : memref<1x32xf32, #tpu.memory_space<vmem>>) target_semaphore(%210 : memref<!tpu.dma_semaphore, #tpu.memory_space<semaphore_mem>>)
    } else {
    }
    %c0_i32_2 = arith.constant 0 : i32
    %28 = arith.cmpi sge, %6, %c0_i32_2 : i32
    %29 = arith.extui %28 : i1 to i32
    %c0_i32_3 = arith.constant 0 : i32
    %30 = arith.cmpi ne, %29, %c0_i32_3 : i32
    scf.if %30 {
      %c1_i32_94 = arith.constant 1 : i32
      %c0_i32_95 = arith.constant 0 : i32
      %207 = tpu.memref_slice %arg2[%6, %c0_i32_95] : memref<96x32xf32, #tpu.memory_space<any>> -> memref<1x32xf32, #tpu.memory_space<any>>
      %c1_i32_96 = arith.constant 1 : i32
      %c0_i32_97 = arith.constant 0 : i32
      %208 = tpu.memref_slice %arg10[%c1_i32_96, %c0_i32_97] : memref<24x32xf32, #tpu.memory_space<vmem>> -> memref<1x32xf32, #tpu.memory_space<vmem>>
      %209 = tpu.memref_slice %arg11[%c1_i32_94] : memref<8x!tpu.dma_semaphore, #tpu.memory_space<semaphore_mem>> -> memref<1x!tpu.dma_semaphore, #tpu.memory_space<semaphore_mem>>
      %210 = tpu.memref_squeeze %209 : memref<1x!tpu.dma_semaphore, #tpu.memory_space<semaphore_mem>> -> memref<!tpu.dma_semaphore, #tpu.memory_space<semaphore_mem>>
      tpu.enqueue_dma source(%207 : memref<1x32xf32, #tpu.memory_space<any>>) target(%208 : memref<1x32xf32, #tpu.memory_space<vmem>>) target_semaphore(%210 : memref<!tpu.dma_semaphore, #tpu.memory_space<semaphore_mem>>)
    } else {
    }
    %c0_i32_4 = arith.constant 0 : i32
    %31 = arith.cmpi sge, %9, %c0_i32_4 : i32
    %32 = arith.extui %31 : i1 to i32
    %c0_i32_5 = arith.constant 0 : i32
    %33 = arith.cmpi ne, %32, %c0_i32_5 : i32
    scf.if %33 {
      %c2_i32_94 = arith.constant 2 : i32
      %c0_i32_95 = arith.constant 0 : i32
      %207 = tpu.memref_slice %arg2[%9, %c0_i32_95] : memref<96x32xf32, #tpu.memory_space<any>> -> memref<1x32xf32, #tpu.memory_space<any>>
      %c2_i32_96 = arith.constant 2 : i32
      %c0_i32_97 = arith.constant 0 : i32
      %208 = tpu.memref_slice %arg10[%c2_i32_96, %c0_i32_97] : memref<24x32xf32, #tpu.memory_space<vmem>> -> memref<1x32xf32, #tpu.memory_space<vmem>>
      %209 = tpu.memref_slice %arg11[%c2_i32_94] : memref<8x!tpu.dma_semaphore, #tpu.memory_space<semaphore_mem>> -> memref<1x!tpu.dma_semaphore, #tpu.memory_space<semaphore_mem>>
      %210 = tpu.memref_squeeze %209 : memref<1x!tpu.dma_semaphore, #tpu.memory_space<semaphore_mem>> -> memref<!tpu.dma_semaphore, #tpu.memory_space<semaphore_mem>>
      tpu.enqueue_dma source(%207 : memref<1x32xf32, #tpu.memory_space<any>>) target(%208 : memref<1x32xf32, #tpu.memory_space<vmem>>) target_semaphore(%210 : memref<!tpu.dma_semaphore, #tpu.memory_space<semaphore_mem>>)
    } else {
    }
    %c0_i32_6 = arith.constant 0 : i32
    %34 = arith.cmpi sge, %12, %c0_i32_6 : i32
    %35 = arith.extui %34 : i1 to i32
    %c0_i32_7 = arith.constant 0 : i32
    %36 = arith.cmpi ne, %35, %c0_i32_7 : i32
    scf.if %36 {
      %c3_i32_94 = arith.constant 3 : i32
      %c0_i32_95 = arith.constant 0 : i32
      %207 = tpu.memref_slice %arg2[%12, %c0_i32_95] : memref<96x32xf32, #tpu.memory_space<any>> -> memref<1x32xf32, #tpu.memory_space<any>>
      %c3_i32_96 = arith.constant 3 : i32
      %c0_i32_97 = arith.constant 0 : i32
      %208 = tpu.memref_slice %arg10[%c3_i32_96, %c0_i32_97] : memref<24x32xf32, #tpu.memory_space<vmem>> -> memref<1x32xf32, #tpu.memory_space<vmem>>
      %209 = tpu.memref_slice %arg11[%c3_i32_94] : memref<8x!tpu.dma_semaphore, #tpu.memory_space<semaphore_mem>> -> memref<1x!tpu.dma_semaphore, #tpu.memory_space<semaphore_mem>>
      %210 = tpu.memref_squeeze %209 : memref<1x!tpu.dma_semaphore, #tpu.memory_space<semaphore_mem>> -> memref<!tpu.dma_semaphore, #tpu.memory_space<semaphore_mem>>
      tpu.enqueue_dma source(%207 : memref<1x32xf32, #tpu.memory_space<any>>) target(%208 : memref<1x32xf32, #tpu.memory_space<vmem>>) target_semaphore(%210 : memref<!tpu.dma_semaphore, #tpu.memory_space<semaphore_mem>>)
    } else {
    }
    %c0_i32_8 = arith.constant 0 : i32
    %37 = arith.cmpi sge, %15, %c0_i32_8 : i32
    %38 = arith.extui %37 : i1 to i32
    %c0_i32_9 = arith.constant 0 : i32
    %39 = arith.cmpi ne, %38, %c0_i32_9 : i32
    scf.if %39 {
      %c4_i32_94 = arith.constant 4 : i32
      %c0_i32_95 = arith.constant 0 : i32
      %207 = tpu.memref_slice %arg2[%15, %c0_i32_95] : memref<96x32xf32, #tpu.memory_space<any>> -> memref<1x32xf32, #tpu.memory_space<any>>
      %c4_i32_96 = arith.constant 4 : i32
      %c0_i32_97 = arith.constant 0 : i32
      %208 = tpu.memref_slice %arg10[%c4_i32_96, %c0_i32_97] : memref<24x32xf32, #tpu.memory_space<vmem>> -> memref<1x32xf32, #tpu.memory_space<vmem>>
      %209 = tpu.memref_slice %arg11[%c4_i32_94] : memref<8x!tpu.dma_semaphore, #tpu.memory_space<semaphore_mem>> -> memref<1x!tpu.dma_semaphore, #tpu.memory_space<semaphore_mem>>
      %210 = tpu.memref_squeeze %209 : memref<1x!tpu.dma_semaphore, #tpu.memory_space<semaphore_mem>> -> memref<!tpu.dma_semaphore, #tpu.memory_space<semaphore_mem>>
      tpu.enqueue_dma source(%207 : memref<1x32xf32, #tpu.memory_space<any>>) target(%208 : memref<1x32xf32, #tpu.memory_space<vmem>>) target_semaphore(%210 : memref<!tpu.dma_semaphore, #tpu.memory_space<semaphore_mem>>)
    } else {
    }
    %c0_i32_10 = arith.constant 0 : i32
    %40 = arith.cmpi sge, %18, %c0_i32_10 : i32
    %41 = arith.extui %40 : i1 to i32
    %c0_i32_11 = arith.constant 0 : i32
    %42 = arith.cmpi ne, %41, %c0_i32_11 : i32
    scf.if %42 {
      %c5_i32_94 = arith.constant 5 : i32
      %c0_i32_95 = arith.constant 0 : i32
      %207 = tpu.memref_slice %arg2[%18, %c0_i32_95] : memref<96x32xf32, #tpu.memory_space<any>> -> memref<1x32xf32, #tpu.memory_space<any>>
      %c5_i32_96 = arith.constant 5 : i32
      %c0_i32_97 = arith.constant 0 : i32
      %208 = tpu.memref_slice %arg10[%c5_i32_96, %c0_i32_97] : memref<24x32xf32, #tpu.memory_space<vmem>> -> memref<1x32xf32, #tpu.memory_space<vmem>>
      %209 = tpu.memref_slice %arg11[%c5_i32_94] : memref<8x!tpu.dma_semaphore, #tpu.memory_space<semaphore_mem>> -> memref<1x!tpu.dma_semaphore, #tpu.memory_space<semaphore_mem>>
      %210 = tpu.memref_squeeze %209 : memref<1x!tpu.dma_semaphore, #tpu.memory_space<semaphore_mem>> -> memref<!tpu.dma_semaphore, #tpu.memory_space<semaphore_mem>>
      tpu.enqueue_dma source(%207 : memref<1x32xf32, #tpu.memory_space<any>>) target(%208 : memref<1x32xf32, #tpu.memory_space<vmem>>) target_semaphore(%210 : memref<!tpu.dma_semaphore, #tpu.memory_space<semaphore_mem>>)
    } else {
    }
    %c0_i32_12 = arith.constant 0 : i32
    %43 = arith.cmpi sge, %21, %c0_i32_12 : i32
    %44 = arith.extui %43 : i1 to i32
    %c0_i32_13 = arith.constant 0 : i32
    %45 = arith.cmpi ne, %44, %c0_i32_13 : i32
    scf.if %45 {
      %c6_i32_94 = arith.constant 6 : i32
      %c0_i32_95 = arith.constant 0 : i32
      %207 = tpu.memref_slice %arg2[%21, %c0_i32_95] : memref<96x32xf32, #tpu.memory_space<any>> -> memref<1x32xf32, #tpu.memory_space<any>>
      %c6_i32_96 = arith.constant 6 : i32
      %c0_i32_97 = arith.constant 0 : i32
      %208 = tpu.memref_slice %arg10[%c6_i32_96, %c0_i32_97] : memref<24x32xf32, #tpu.memory_space<vmem>> -> memref<1x32xf32, #tpu.memory_space<vmem>>
      %209 = tpu.memref_slice %arg11[%c6_i32_94] : memref<8x!tpu.dma_semaphore, #tpu.memory_space<semaphore_mem>> -> memref<1x!tpu.dma_semaphore, #tpu.memory_space<semaphore_mem>>
      %210 = tpu.memref_squeeze %209 : memref<1x!tpu.dma_semaphore, #tpu.memory_space<semaphore_mem>> -> memref<!tpu.dma_semaphore, #tpu.memory_space<semaphore_mem>>
      tpu.enqueue_dma source(%207 : memref<1x32xf32, #tpu.memory_space<any>>) target(%208 : memref<1x32xf32, #tpu.memory_space<vmem>>) target_semaphore(%210 : memref<!tpu.dma_semaphore, #tpu.memory_space<semaphore_mem>>)
    } else {
    }
    %c0_i32_14 = arith.constant 0 : i32
    %46 = arith.cmpi sge, %24, %c0_i32_14 : i32
    %47 = arith.extui %46 : i1 to i32
    %c0_i32_15 = arith.constant 0 : i32
    %48 = arith.cmpi ne, %47, %c0_i32_15 : i32
    scf.if %48 {
      %c7_i32_94 = arith.constant 7 : i32
      %c0_i32_95 = arith.constant 0 : i32
      %207 = tpu.memref_slice %arg2[%24, %c0_i32_95] : memref<96x32xf32, #tpu.memory_space<any>> -> memref<1x32xf32, #tpu.memory_space<any>>
      %c7_i32_96 = arith.constant 7 : i32
      %c0_i32_97 = arith.constant 0 : i32
      %208 = tpu.memref_slice %arg10[%c7_i32_96, %c0_i32_97] : memref<24x32xf32, #tpu.memory_space<vmem>> -> memref<1x32xf32, #tpu.memory_space<vmem>>
      %209 = tpu.memref_slice %arg11[%c7_i32_94] : memref<8x!tpu.dma_semaphore, #tpu.memory_space<semaphore_mem>> -> memref<1x!tpu.dma_semaphore, #tpu.memory_space<semaphore_mem>>
      %210 = tpu.memref_squeeze %209 : memref<1x!tpu.dma_semaphore, #tpu.memory_space<semaphore_mem>> -> memref<!tpu.dma_semaphore, #tpu.memory_space<semaphore_mem>>
      tpu.enqueue_dma source(%207 : memref<1x32xf32, #tpu.memory_space<any>>) target(%208 : memref<1x32xf32, #tpu.memory_space<vmem>>) target_semaphore(%210 : memref<!tpu.dma_semaphore, #tpu.memory_space<semaphore_mem>>)
    } else {
    }
    %c1_i32_16 = arith.constant 1 : i32
    %c2_i32_17 = arith.constant 2 : i32
    %49 = arith.addi %c1_i32_16, %c2_i32_17 : i32
    %c1_i32_18 = arith.constant 1 : i32
    scf.for %arg12 = %c1_i32_16 to %49 step %c1_i32_18  : i32 {
      %c8_i32 = arith.constant 8 : i32
      %207 = arith.muli %arg12, %c8_i32 : i32
      %208 = arith.addi %0, %207 : i32
      %c8_i32_94 = arith.constant 8 : i32
      %209 = arith.subi %208, %c8_i32_94 : i32
      %c0_i32_95 = arith.constant 0 : i32
      %210 = arith.addi %209, %c0_i32_95 : i32
      %211 = arith.index_cast %210 : i32 to index
      %212 = memref.load %arg1[%211] : memref<24xi32, #tpu.memory_space<smem>>
      %213 = arith.addi %0, %207 : i32
      %c8_i32_96 = arith.constant 8 : i32
      %214 = arith.subi %213, %c8_i32_96 : i32
      %c1_i32_97 = arith.constant 1 : i32
      %215 = arith.addi %214, %c1_i32_97 : i32
      %216 = arith.index_cast %215 : i32 to index
      %217 = memref.load %arg1[%216] : memref<24xi32, #tpu.memory_space<smem>>
      %218 = arith.addi %0, %207 : i32
      %c8_i32_98 = arith.constant 8 : i32
      %219 = arith.subi %218, %c8_i32_98 : i32
      %c2_i32_99 = arith.constant 2 : i32
      %220 = arith.addi %219, %c2_i32_99 : i32
      %221 = arith.index_cast %220 : i32 to index
      %222 = memref.load %arg1[%221] : memref<24xi32, #tpu.memory_space<smem>>
      %223 = arith.addi %0, %207 : i32
      %c8_i32_100 = arith.constant 8 : i32
      %224 = arith.subi %223, %c8_i32_100 : i32
      %c3_i32_101 = arith.constant 3 : i32
      %225 = arith.addi %224, %c3_i32_101 : i32
      %226 = arith.index_cast %225 : i32 to index
      %227 = memref.load %arg1[%226] : memref<24xi32, #tpu.memory_space<smem>>
      %228 = arith.addi %0, %207 : i32
      %c8_i32_102 = arith.constant 8 : i32
      %229 = arith.subi %228, %c8_i32_102 : i32
      %c4_i32_103 = arith.constant 4 : i32
      %230 = arith.addi %229, %c4_i32_103 : i32
      %231 = arith.index_cast %230 : i32 to index
      %232 = memref.load %arg1[%231] : memref<24xi32, #tpu.memory_space<smem>>
      %233 = arith.addi %0, %207 : i32
      %c8_i32_104 = arith.constant 8 : i32
      %234 = arith.subi %233, %c8_i32_104 : i32
      %c5_i32_105 = arith.constant 5 : i32
      %235 = arith.addi %234, %c5_i32_105 : i32
      %236 = arith.index_cast %235 : i32 to index
      %237 = memref.load %arg1[%236] : memref<24xi32, #tpu.memory_space<smem>>
      %238 = arith.addi %0, %207 : i32
      %c8_i32_106 = arith.constant 8 : i32
      %239 = arith.subi %238, %c8_i32_106 : i32
      %c6_i32_107 = arith.constant 6 : i32
      %240 = arith.addi %239, %c6_i32_107 : i32
      %241 = arith.index_cast %240 : i32 to index
      %242 = memref.load %arg1[%241] : memref<24xi32, #tpu.memory_space<smem>>
      %243 = arith.addi %0, %207 : i32
      %c8_i32_108 = arith.constant 8 : i32
      %244 = arith.subi %243, %c8_i32_108 : i32
      %c7_i32_109 = arith.constant 7 : i32
      %245 = arith.addi %244, %c7_i32_109 : i32
      %246 = arith.index_cast %245 : i32 to index
      %247 = memref.load %arg1[%246] : memref<24xi32, #tpu.memory_space<smem>>
      %248 = arith.addi %0, %207 : i32
      %c0_i32_110 = arith.constant 0 : i32
      %249 = arith.addi %248, %c0_i32_110 : i32
      %250 = arith.index_cast %249 : i32 to index
      %251 = memref.load %arg1[%250] : memref<24xi32, #tpu.memory_space<smem>>
      %252 = arith.addi %0, %207 : i32
      %c1_i32_111 = arith.constant 1 : i32
      %253 = arith.addi %252, %c1_i32_111 : i32
      %254 = arith.index_cast %253 : i32 to index
      %255 = memref.load %arg1[%254] : memref<24xi32, #tpu.memory_space<smem>>
      %256 = arith.addi %0, %207 : i32
      %c2_i32_112 = arith.constant 2 : i32
      %257 = arith.addi %256, %c2_i32_112 : i32
      %258 = arith.index_cast %257 : i32 to index
      %259 = memref.load %arg1[%258] : memref<24xi32, #tpu.memory_space<smem>>
      %260 = arith.addi %0, %207 : i32
      %c3_i32_113 = arith.constant 3 : i32
      %261 = arith.addi %260, %c3_i32_113 : i32
      %262 = arith.index_cast %261 : i32 to index
      %263 = memref.load %arg1[%262] : memref<24xi32, #tpu.memory_space<smem>>
      %264 = arith.addi %0, %207 : i32
      %c4_i32_114 = arith.constant 4 : i32
      %265 = arith.addi %264, %c4_i32_114 : i32
      %266 = arith.index_cast %265 : i32 to index
      %267 = memref.load %arg1[%266] : memref<24xi32, #tpu.memory_space<smem>>
      %268 = arith.addi %0, %207 : i32
      %c5_i32_115 = arith.constant 5 : i32
      %269 = arith.addi %268, %c5_i32_115 : i32
      %270 = arith.index_cast %269 : i32 to index
      %271 = memref.load %arg1[%270] : memref<24xi32, #tpu.memory_space<smem>>
      %272 = arith.addi %0, %207 : i32
      %c6_i32_116 = arith.constant 6 : i32
      %273 = arith.addi %272, %c6_i32_116 : i32
      %274 = arith.index_cast %273 : i32 to index
      %275 = memref.load %arg1[%274] : memref<24xi32, #tpu.memory_space<smem>>
      %276 = arith.addi %0, %207 : i32
      %c7_i32_117 = arith.constant 7 : i32
      %277 = arith.addi %276, %c7_i32_117 : i32
      %278 = arith.index_cast %277 : i32 to index
      %279 = memref.load %arg1[%278] : memref<24xi32, #tpu.memory_space<smem>>
      %c8_i32_118 = arith.constant 8 : i32
      %280 = arith.subi %207, %c8_i32_118 : i32
      %c0_i32_119 = arith.constant 0 : i32
      %281 = arith.addi %280, %c0_i32_119 : i32
      %c0_i32_120 = arith.constant 0 : i32
      %282 = arith.cmpi sge, %212, %c0_i32_120 : i32
      %283 = arith.extui %282 : i1 to i32
      %c0_i32_121 = arith.constant 0 : i32
      %284 = arith.cmpi ne, %283, %c0_i32_121 : i32
      scf.if %284 {
        %c0_i32_174 = arith.constant 0 : i32
        %c0_i32_175 = arith.constant 0 : i32
        %c0_i32_176 = arith.constant 0 : i32
        %352 = tpu.memref_slice %arg2[%c0_i32_175, %c0_i32_176] : memref<96x32xf32, #tpu.memory_space<any>> -> memref<1x32xf32, #tpu.memory_space<any>>
        %c0_i32_177 = arith.constant 0 : i32
        %353 = tpu.memref_slice %arg10[%281, %c0_i32_177] : memref<24x32xf32, #tpu.memory_space<vmem>> -> memref<1x32xf32, #tpu.memory_space<vmem>>
        %354 = tpu.memref_slice %arg11[%c0_i32_174] : memref<8x!tpu.dma_semaphore, #tpu.memory_space<semaphore_mem>> -> memref<1x!tpu.dma_semaphore, #tpu.memory_space<semaphore_mem>>
        %355 = tpu.memref_squeeze %354 : memref<1x!tpu.dma_semaphore, #tpu.memory_space<semaphore_mem>> -> memref<!tpu.dma_semaphore, #tpu.memory_space<semaphore_mem>>
        tpu.wait_dma2 semaphore(%355 : memref<!tpu.dma_semaphore, #tpu.memory_space<semaphore_mem>>) src(%352 : memref<1x32xf32, #tpu.memory_space<any>>) dst(%353 : memref<1x32xf32, #tpu.memory_space<vmem>>)
      } else {
      }
      %c0_i32_122 = arith.constant 0 : i32
      %285 = arith.addi %207, %c0_i32_122 : i32
      %c0_i32_123 = arith.constant 0 : i32
      %286 = arith.cmpi sge, %251, %c0_i32_123 : i32
      %287 = arith.extui %286 : i1 to i32
      %c0_i32_124 = arith.constant 0 : i32
      %288 = arith.cmpi ne, %287, %c0_i32_124 : i32
      scf.if %288 {
        %c0_i32_174 = arith.constant 0 : i32
        %c0_i32_175 = arith.constant 0 : i32
        %352 = tpu.memref_slice %arg2[%251, %c0_i32_175] : memref<96x32xf32, #tpu.memory_space<any>> -> memref<1x32xf32, #tpu.memory_space<any>>
        %c0_i32_176 = arith.constant 0 : i32
        %353 = tpu.memref_slice %arg10[%285, %c0_i32_176] : memref<24x32xf32, #tpu.memory_space<vmem>> -> memref<1x32xf32, #tpu.memory_space<vmem>>
        %354 = tpu.memref_slice %arg11[%c0_i32_174] : memref<8x!tpu.dma_semaphore, #tpu.memory_space<semaphore_mem>> -> memref<1x!tpu.dma_semaphore, #tpu.memory_space<semaphore_mem>>
        %355 = tpu.memref_squeeze %354 : memref<1x!tpu.dma_semaphore, #tpu.memory_space<semaphore_mem>> -> memref<!tpu.dma_semaphore, #tpu.memory_space<semaphore_mem>>
        tpu.enqueue_dma source(%352 : memref<1x32xf32, #tpu.memory_space<any>>) target(%353 : memref<1x32xf32, #tpu.memory_space<vmem>>) target_semaphore(%355 : memref<!tpu.dma_semaphore, #tpu.memory_space<semaphore_mem>>)
      } else {
      }
      %c8_i32_125 = arith.constant 8 : i32
      %289 = arith.subi %207, %c8_i32_125 : i32
      %c1_i32_126 = arith.constant 1 : i32
      %290 = arith.addi %289, %c1_i32_126 : i32
      %c0_i32_127 = arith.constant 0 : i32
      %291 = arith.cmpi sge, %217, %c0_i32_127 : i32
      %292 = arith.extui %291 : i1 to i32
      %c0_i32_128 = arith.constant 0 : i32
      %293 = arith.cmpi ne, %292, %c0_i32_128 : i32
      scf.if %293 {
        %c1_i32_174 = arith.constant 1 : i32
        %c0_i32_175 = arith.constant 0 : i32
        %c0_i32_176 = arith.constant 0 : i32
        %352 = tpu.memref_slice %arg2[%c0_i32_175, %c0_i32_176] : memref<96x32xf32, #tpu.memory_space<any>> -> memref<1x32xf32, #tpu.memory_space<any>>
        %c0_i32_177 = arith.constant 0 : i32
        %353 = tpu.memref_slice %arg10[%290, %c0_i32_177] : memref<24x32xf32, #tpu.memory_space<vmem>> -> memref<1x32xf32, #tpu.memory_space<vmem>>
        %354 = tpu.memref_slice %arg11[%c1_i32_174] : memref<8x!tpu.dma_semaphore, #tpu.memory_space<semaphore_mem>> -> memref<1x!tpu.dma_semaphore, #tpu.memory_space<semaphore_mem>>
        %355 = tpu.memref_squeeze %354 : memref<1x!tpu.dma_semaphore, #tpu.memory_space<semaphore_mem>> -> memref<!tpu.dma_semaphore, #tpu.memory_space<semaphore_mem>>
        tpu.wait_dma2 semaphore(%355 : memref<!tpu.dma_semaphore, #tpu.memory_space<semaphore_mem>>) src(%352 : memref<1x32xf32, #tpu.memory_space<any>>) dst(%353 : memref<1x32xf32, #tpu.memory_space<vmem>>)
      } else {
      }
      %c1_i32_129 = arith.constant 1 : i32
      %294 = arith.addi %207, %c1_i32_129 : i32
      %c0_i32_130 = arith.constant 0 : i32
      %295 = arith.cmpi sge, %255, %c0_i32_130 : i32
      %296 = arith.extui %295 : i1 to i32
      %c0_i32_131 = arith.constant 0 : i32
      %297 = arith.cmpi ne, %296, %c0_i32_131 : i32
      scf.if %297 {
        %c1_i32_174 = arith.constant 1 : i32
        %c0_i32_175 = arith.constant 0 : i32
        %352 = tpu.memref_slice %arg2[%255, %c0_i32_175] : memref<96x32xf32, #tpu.memory_space<any>> -> memref<1x32xf32, #tpu.memory_space<any>>
        %c0_i32_176 = arith.constant 0 : i32
        %353 = tpu.memref_slice %arg10[%294, %c0_i32_176] : memref<24x32xf32, #tpu.memory_space<vmem>> -> memref<1x32xf32, #tpu.memory_space<vmem>>
        %354 = tpu.memref_slice %arg11[%c1_i32_174] : memref<8x!tpu.dma_semaphore, #tpu.memory_space<semaphore_mem>> -> memref<1x!tpu.dma_semaphore, #tpu.memory_space<semaphore_mem>>
        %355 = tpu.memref_squeeze %354 : memref<1x!tpu.dma_semaphore, #tpu.memory_space<semaphore_mem>> -> memref<!tpu.dma_semaphore, #tpu.memory_space<semaphore_mem>>
        tpu.enqueue_dma source(%352 : memref<1x32xf32, #tpu.memory_space<any>>) target(%353 : memref<1x32xf32, #tpu.memory_space<vmem>>) target_semaphore(%355 : memref<!tpu.dma_semaphore, #tpu.memory_space<semaphore_mem>>)
      } else {
      }
      %c8_i32_132 = arith.constant 8 : i32
      %298 = arith.subi %207, %c8_i32_132 : i32
      %c2_i32_133 = arith.constant 2 : i32
      %299 = arith.addi %298, %c2_i32_133 : i32
      %c0_i32_134 = arith.constant 0 : i32
      %300 = arith.cmpi sge, %222, %c0_i32_134 : i32
      %301 = arith.extui %300 : i1 to i32
      %c0_i32_135 = arith.constant 0 : i32
      %302 = arith.cmpi ne, %301, %c0_i32_135 : i32
      scf.if %302 {
        %c2_i32_174 = arith.constant 2 : i32
        %c0_i32_175 = arith.constant 0 : i32
        %c0_i32_176 = arith.constant 0 : i32
        %352 = tpu.memref_slice %arg2[%c0_i32_175, %c0_i32_176] : memref<96x32xf32, #tpu.memory_space<any>> -> memref<1x32xf32, #tpu.memory_space<any>>
        %c0_i32_177 = arith.constant 0 : i32
        %353 = tpu.memref_slice %arg10[%299, %c0_i32_177] : memref<24x32xf32, #tpu.memory_space<vmem>> -> memref<1x32xf32, #tpu.memory_space<vmem>>
        %354 = tpu.memref_slice %arg11[%c2_i32_174] : memref<8x!tpu.dma_semaphore, #tpu.memory_space<semaphore_mem>> -> memref<1x!tpu.dma_semaphore, #tpu.memory_space<semaphore_mem>>
        %355 = tpu.memref_squeeze %354 : memref<1x!tpu.dma_semaphore, #tpu.memory_space<semaphore_mem>> -> memref<!tpu.dma_semaphore, #tpu.memory_space<semaphore_mem>>
        tpu.wait_dma2 semaphore(%355 : memref<!tpu.dma_semaphore, #tpu.memory_space<semaphore_mem>>) src(%352 : memref<1x32xf32, #tpu.memory_space<any>>) dst(%353 : memref<1x32xf32, #tpu.memory_space<vmem>>)
      } else {
      }
      %c2_i32_136 = arith.constant 2 : i32
      %303 = arith.addi %207, %c2_i32_136 : i32
      %c0_i32_137 = arith.constant 0 : i32
      %304 = arith.cmpi sge, %259, %c0_i32_137 : i32
      %305 = arith.extui %304 : i1 to i32
      %c0_i32_138 = arith.constant 0 : i32
      %306 = arith.cmpi ne, %305, %c0_i32_138 : i32
      scf.if %306 {
        %c2_i32_174 = arith.constant 2 : i32
        %c0_i32_175 = arith.constant 0 : i32
        %352 = tpu.memref_slice %arg2[%259, %c0_i32_175] : memref<96x32xf32, #tpu.memory_space<any>> -> memref<1x32xf32, #tpu.memory_space<any>>
        %c0_i32_176 = arith.constant 0 : i32
        %353 = tpu.memref_slice %arg10[%303, %c0_i32_176] : memref<24x32xf32, #tpu.memory_space<vmem>> -> memref<1x32xf32, #tpu.memory_space<vmem>>
        %354 = tpu.memref_slice %arg11[%c2_i32_174] : memref<8x!tpu.dma_semaphore, #tpu.memory_space<semaphore_mem>> -> memref<1x!tpu.dma_semaphore, #tpu.memory_space<semaphore_mem>>
        %355 = tpu.memref_squeeze %354 : memref<1x!tpu.dma_semaphore, #tpu.memory_space<semaphore_mem>> -> memref<!tpu.dma_semaphore, #tpu.memory_space<semaphore_mem>>
        tpu.enqueue_dma source(%352 : memref<1x32xf32, #tpu.memory_space<any>>) target(%353 : memref<1x32xf32, #tpu.memory_space<vmem>>) target_semaphore(%355 : memref<!tpu.dma_semaphore, #tpu.memory_space<semaphore_mem>>)
      } else {
      }
      %c8_i32_139 = arith.constant 8 : i32
      %307 = arith.subi %207, %c8_i32_139 : i32
      %c3_i32_140 = arith.constant 3 : i32
      %308 = arith.addi %307, %c3_i32_140 : i32
      %c0_i32_141 = arith.constant 0 : i32
      %309 = arith.cmpi sge, %227, %c0_i32_141 : i32
      %310 = arith.extui %309 : i1 to i32
      %c0_i32_142 = arith.constant 0 : i32
      %311 = arith.cmpi ne, %310, %c0_i32_142 : i32
      scf.if %311 {
        %c3_i32_174 = arith.constant 3 : i32
        %c0_i32_175 = arith.constant 0 : i32
        %c0_i32_176 = arith.constant 0 : i32
        %352 = tpu.memref_slice %arg2[%c0_i32_175, %c0_i32_176] : memref<96x32xf32, #tpu.memory_space<any>> -> memref<1x32xf32, #tpu.memory_space<any>>
        %c0_i32_177 = arith.constant 0 : i32
        %353 = tpu.memref_slice %arg10[%308, %c0_i32_177] : memref<24x32xf32, #tpu.memory_space<vmem>> -> memref<1x32xf32, #tpu.memory_space<vmem>>
        %354 = tpu.memref_slice %arg11[%c3_i32_174] : memref<8x!tpu.dma_semaphore, #tpu.memory_space<semaphore_mem>> -> memref<1x!tpu.dma_semaphore, #tpu.memory_space<semaphore_mem>>
        %355 = tpu.memref_squeeze %354 : memref<1x!tpu.dma_semaphore, #tpu.memory_space<semaphore_mem>> -> memref<!tpu.dma_semaphore, #tpu.memory_space<semaphore_mem>>
        tpu.wait_dma2 semaphore(%355 : memref<!tpu.dma_semaphore, #tpu.memory_space<semaphore_mem>>) src(%352 : memref<1x32xf32, #tpu.memory_space<any>>) dst(%353 : memref<1x32xf32, #tpu.memory_space<vmem>>)
      } else {
      }
      %c3_i32_143 = arith.constant 3 : i32
      %312 = arith.addi %207, %c3_i32_143 : i32
      %c0_i32_144 = arith.constant 0 : i32
      %313 = arith.cmpi sge, %263, %c0_i32_144 : i32
      %314 = arith.extui %313 : i1 to i32
      %c0_i32_145 = arith.constant 0 : i32
      %315 = arith.cmpi ne, %314, %c0_i32_145 : i32
      scf.if %315 {
        %c3_i32_174 = arith.constant 3 : i32
        %c0_i32_175 = arith.constant 0 : i32
        %352 = tpu.memref_slice %arg2[%263, %c0_i32_175] : memref<96x32xf32, #tpu.memory_space<any>> -> memref<1x32xf32, #tpu.memory_space<any>>
        %c0_i32_176 = arith.constant 0 : i32
        %353 = tpu.memref_slice %arg10[%312, %c0_i32_176] : memref<24x32xf32, #tpu.memory_space<vmem>> -> memref<1x32xf32, #tpu.memory_space<vmem>>
        %354 = tpu.memref_slice %arg11[%c3_i32_174] : memref<8x!tpu.dma_semaphore, #tpu.memory_space<semaphore_mem>> -> memref<1x!tpu.dma_semaphore, #tpu.memory_space<semaphore_mem>>
        %355 = tpu.memref_squeeze %354 : memref<1x!tpu.dma_semaphore, #tpu.memory_space<semaphore_mem>> -> memref<!tpu.dma_semaphore, #tpu.memory_space<semaphore_mem>>
        tpu.enqueue_dma source(%352 : memref<1x32xf32, #tpu.memory_space<any>>) target(%353 : memref<1x32xf32, #tpu.memory_space<vmem>>) target_semaphore(%355 : memref<!tpu.dma_semaphore, #tpu.memory_space<semaphore_mem>>)
      } else {
      }
      %c8_i32_146 = arith.constant 8 : i32
      %316 = arith.subi %207, %c8_i32_146 : i32
      %c4_i32_147 = arith.constant 4 : i32
      %317 = arith.addi %316, %c4_i32_147 : i32
      %c0_i32_148 = arith.constant 0 : i32
      %318 = arith.cmpi sge, %232, %c0_i32_148 : i32
      %319 = arith.extui %318 : i1 to i32
      %c0_i32_149 = arith.constant 0 : i32
      %320 = arith.cmpi ne, %319, %c0_i32_149 : i32
      scf.if %320 {
        %c4_i32_174 = arith.constant 4 : i32
        %c0_i32_175 = arith.constant 0 : i32
        %c0_i32_176 = arith.constant 0 : i32
        %352 = tpu.memref_slice %arg2[%c0_i32_175, %c0_i32_176] : memref<96x32xf32, #tpu.memory_space<any>> -> memref<1x32xf32, #tpu.memory_space<any>>
        %c0_i32_177 = arith.constant 0 : i32
        %353 = tpu.memref_slice %arg10[%317, %c0_i32_177] : memref<24x32xf32, #tpu.memory_space<vmem>> -> memref<1x32xf32, #tpu.memory_space<vmem>>
        %354 = tpu.memref_slice %arg11[%c4_i32_174] : memref<8x!tpu.dma_semaphore, #tpu.memory_space<semaphore_mem>> -> memref<1x!tpu.dma_semaphore, #tpu.memory_space<semaphore_mem>>
        %355 = tpu.memref_squeeze %354 : memref<1x!tpu.dma_semaphore, #tpu.memory_space<semaphore_mem>> -> memref<!tpu.dma_semaphore, #tpu.memory_space<semaphore_mem>>
        tpu.wait_dma2 semaphore(%355 : memref<!tpu.dma_semaphore, #tpu.memory_space<semaphore_mem>>) src(%352 : memref<1x32xf32, #tpu.memory_space<any>>) dst(%353 : memref<1x32xf32, #tpu.memory_space<vmem>>)
      } else {
      }
      %c4_i32_150 = arith.constant 4 : i32
      %321 = arith.addi %207, %c4_i32_150 : i32
      %c0_i32_151 = arith.constant 0 : i32
      %322 = arith.cmpi sge, %267, %c0_i32_151 : i32
      %323 = arith.extui %322 : i1 to i32
      %c0_i32_152 = arith.constant 0 : i32
      %324 = arith.cmpi ne, %323, %c0_i32_152 : i32
      scf.if %324 {
        %c4_i32_174 = arith.constant 4 : i32
        %c0_i32_175 = arith.constant 0 : i32
        %352 = tpu.memref_slice %arg2[%267, %c0_i32_175] : memref<96x32xf32, #tpu.memory_space<any>> -> memref<1x32xf32, #tpu.memory_space<any>>
        %c0_i32_176 = arith.constant 0 : i32
        %353 = tpu.memref_slice %arg10[%321, %c0_i32_176] : memref<24x32xf32, #tpu.memory_space<vmem>> -> memref<1x32xf32, #tpu.memory_space<vmem>>
        %354 = tpu.memref_slice %arg11[%c4_i32_174] : memref<8x!tpu.dma_semaphore, #tpu.memory_space<semaphore_mem>> -> memref<1x!tpu.dma_semaphore, #tpu.memory_space<semaphore_mem>>
        %355 = tpu.memref_squeeze %354 : memref<1x!tpu.dma_semaphore, #tpu.memory_space<semaphore_mem>> -> memref<!tpu.dma_semaphore, #tpu.memory_space<semaphore_mem>>
        tpu.enqueue_dma source(%352 : memref<1x32xf32, #tpu.memory_space<any>>) target(%353 : memref<1x32xf32, #tpu.memory_space<vmem>>) target_semaphore(%355 : memref<!tpu.dma_semaphore, #tpu.memory_space<semaphore_mem>>)
      } else {
      }
      %c8_i32_153 = arith.constant 8 : i32
      %325 = arith.subi %207, %c8_i32_153 : i32
      %c5_i32_154 = arith.constant 5 : i32
      %326 = arith.addi %325, %c5_i32_154 : i32
      %c0_i32_155 = arith.constant 0 : i32
      %327 = arith.cmpi sge, %237, %c0_i32_155 : i32
      %328 = arith.extui %327 : i1 to i32
      %c0_i32_156 = arith.constant 0 : i32
      %329 = arith.cmpi ne, %328, %c0_i32_156 : i32
      scf.if %329 {
        %c5_i32_174 = arith.constant 5 : i32
        %c0_i32_175 = arith.constant 0 : i32
        %c0_i32_176 = arith.constant 0 : i32
        %352 = tpu.memref_slice %arg2[%c0_i32_175, %c0_i32_176] : memref<96x32xf32, #tpu.memory_space<any>> -> memref<1x32xf32, #tpu.memory_space<any>>
        %c0_i32_177 = arith.constant 0 : i32
        %353 = tpu.memref_slice %arg10[%326, %c0_i32_177] : memref<24x32xf32, #tpu.memory_space<vmem>> -> memref<1x32xf32, #tpu.memory_space<vmem>>
        %354 = tpu.memref_slice %arg11[%c5_i32_174] : memref<8x!tpu.dma_semaphore, #tpu.memory_space<semaphore_mem>> -> memref<1x!tpu.dma_semaphore, #tpu.memory_space<semaphore_mem>>
        %355 = tpu.memref_squeeze %354 : memref<1x!tpu.dma_semaphore, #tpu.memory_space<semaphore_mem>> -> memref<!tpu.dma_semaphore, #tpu.memory_space<semaphore_mem>>
        tpu.wait_dma2 semaphore(%355 : memref<!tpu.dma_semaphore, #tpu.memory_space<semaphore_mem>>) src(%352 : memref<1x32xf32, #tpu.memory_space<any>>) dst(%353 : memref<1x32xf32, #tpu.memory_space<vmem>>)
      } else {
      }
      %c5_i32_157 = arith.constant 5 : i32
      %330 = arith.addi %207, %c5_i32_157 : i32
      %c0_i32_158 = arith.constant 0 : i32
      %331 = arith.cmpi sge, %271, %c0_i32_158 : i32
      %332 = arith.extui %331 : i1 to i32
      %c0_i32_159 = arith.constant 0 : i32
      %333 = arith.cmpi ne, %332, %c0_i32_159 : i32
      scf.if %333 {
        %c5_i32_174 = arith.constant 5 : i32
        %c0_i32_175 = arith.constant 0 : i32
        %352 = tpu.memref_slice %arg2[%271, %c0_i32_175] : memref<96x32xf32, #tpu.memory_space<any>> -> memref<1x32xf32, #tpu.memory_space<any>>
        %c0_i32_176 = arith.constant 0 : i32
        %353 = tpu.memref_slice %arg10[%330, %c0_i32_176] : memref<24x32xf32, #tpu.memory_space<vmem>> -> memref<1x32xf32, #tpu.memory_space<vmem>>
        %354 = tpu.memref_slice %arg11[%c5_i32_174] : memref<8x!tpu.dma_semaphore, #tpu.memory_space<semaphore_mem>> -> memref<1x!tpu.dma_semaphore, #tpu.memory_space<semaphore_mem>>
        %355 = tpu.memref_squeeze %354 : memref<1x!tpu.dma_semaphore, #tpu.memory_space<semaphore_mem>> -> memref<!tpu.dma_semaphore, #tpu.memory_space<semaphore_mem>>
        tpu.enqueue_dma source(%352 : memref<1x32xf32, #tpu.memory_space<any>>) target(%353 : memref<1x32xf32, #tpu.memory_space<vmem>>) target_semaphore(%355 : memref<!tpu.dma_semaphore, #tpu.memory_space<semaphore_mem>>)
      } else {
      }
      %c8_i32_160 = arith.constant 8 : i32
      %334 = arith.subi %207, %c8_i32_160 : i32
      %c6_i32_161 = arith.constant 6 : i32
      %335 = arith.addi %334, %c6_i32_161 : i32
      %c0_i32_162 = arith.constant 0 : i32
      %336 = arith.cmpi sge, %242, %c0_i32_162 : i32
      %337 = arith.extui %336 : i1 to i32
      %c0_i32_163 = arith.constant 0 : i32
      %338 = arith.cmpi ne, %337, %c0_i32_163 : i32
      scf.if %338 {
        %c6_i32_174 = arith.constant 6 : i32
        %c0_i32_175 = arith.constant 0 : i32
        %c0_i32_176 = arith.constant 0 : i32
        %352 = tpu.memref_slice %arg2[%c0_i32_175, %c0_i32_176] : memref<96x32xf32, #tpu.memory_space<any>> -> memref<1x32xf32, #tpu.memory_space<any>>
        %c0_i32_177 = arith.constant 0 : i32
        %353 = tpu.memref_slice %arg10[%335, %c0_i32_177] : memref<24x32xf32, #tpu.memory_space<vmem>> -> memref<1x32xf32, #tpu.memory_space<vmem>>
        %354 = tpu.memref_slice %arg11[%c6_i32_174] : memref<8x!tpu.dma_semaphore, #tpu.memory_space<semaphore_mem>> -> memref<1x!tpu.dma_semaphore, #tpu.memory_space<semaphore_mem>>
        %355 = tpu.memref_squeeze %354 : memref<1x!tpu.dma_semaphore, #tpu.memory_space<semaphore_mem>> -> memref<!tpu.dma_semaphore, #tpu.memory_space<semaphore_mem>>
        tpu.wait_dma2 semaphore(%355 : memref<!tpu.dma_semaphore, #tpu.memory_space<semaphore_mem>>) src(%352 : memref<1x32xf32, #tpu.memory_space<any>>) dst(%353 : memref<1x32xf32, #tpu.memory_space<vmem>>)
      } else {
      }
      %c6_i32_164 = arith.constant 6 : i32
      %339 = arith.addi %207, %c6_i32_164 : i32
      %c0_i32_165 = arith.constant 0 : i32
      %340 = arith.cmpi sge, %275, %c0_i32_165 : i32
      %341 = arith.extui %340 : i1 to i32
      %c0_i32_166 = arith.constant 0 : i32
      %342 = arith.cmpi ne, %341, %c0_i32_166 : i32
      scf.if %342 {
        %c6_i32_174 = arith.constant 6 : i32
        %c0_i32_175 = arith.constant 0 : i32
        %352 = tpu.memref_slice %arg2[%275, %c0_i32_175] : memref<96x32xf32, #tpu.memory_space<any>> -> memref<1x32xf32, #tpu.memory_space<any>>
        %c0_i32_176 = arith.constant 0 : i32
        %353 = tpu.memref_slice %arg10[%339, %c0_i32_176] : memref<24x32xf32, #tpu.memory_space<vmem>> -> memref<1x32xf32, #tpu.memory_space<vmem>>
        %354 = tpu.memref_slice %arg11[%c6_i32_174] : memref<8x!tpu.dma_semaphore, #tpu.memory_space<semaphore_mem>> -> memref<1x!tpu.dma_semaphore, #tpu.memory_space<semaphore_mem>>
        %355 = tpu.memref_squeeze %354 : memref<1x!tpu.dma_semaphore, #tpu.memory_space<semaphore_mem>> -> memref<!tpu.dma_semaphore, #tpu.memory_space<semaphore_mem>>
        tpu.enqueue_dma source(%352 : memref<1x32xf32, #tpu.memory_space<any>>) target(%353 : memref<1x32xf32, #tpu.memory_space<vmem>>) target_semaphore(%355 : memref<!tpu.dma_semaphore, #tpu.memory_space<semaphore_mem>>)
      } else {
      }
      %c8_i32_167 = arith.constant 8 : i32
      %343 = arith.subi %207, %c8_i32_167 : i32
      %c7_i32_168 = arith.constant 7 : i32
      %344 = arith.addi %343, %c7_i32_168 : i32
      %c0_i32_169 = arith.constant 0 : i32
      %345 = arith.cmpi sge, %247, %c0_i32_169 : i32
      %346 = arith.extui %345 : i1 to i32
      %c0_i32_170 = arith.constant 0 : i32
      %347 = arith.cmpi ne, %346, %c0_i32_170 : i32
      scf.if %347 {
        %c7_i32_174 = arith.constant 7 : i32
        %c0_i32_175 = arith.constant 0 : i32
        %c0_i32_176 = arith.constant 0 : i32
        %352 = tpu.memref_slice %arg2[%c0_i32_175, %c0_i32_176] : memref<96x32xf32, #tpu.memory_space<any>> -> memref<1x32xf32, #tpu.memory_space<any>>
        %c0_i32_177 = arith.constant 0 : i32
        %353 = tpu.memref_slice %arg10[%344, %c0_i32_177] : memref<24x32xf32, #tpu.memory_space<vmem>> -> memref<1x32xf32, #tpu.memory_space<vmem>>
        %354 = tpu.memref_slice %arg11[%c7_i32_174] : memref<8x!tpu.dma_semaphore, #tpu.memory_space<semaphore_mem>> -> memref<1x!tpu.dma_semaphore, #tpu.memory_space<semaphore_mem>>
        %355 = tpu.memref_squeeze %354 : memref<1x!tpu.dma_semaphore, #tpu.memory_space<semaphore_mem>> -> memref<!tpu.dma_semaphore, #tpu.memory_space<semaphore_mem>>
        tpu.wait_dma2 semaphore(%355 : memref<!tpu.dma_semaphore, #tpu.memory_space<semaphore_mem>>) src(%352 : memref<1x32xf32, #tpu.memory_space<any>>) dst(%353 : memref<1x32xf32, #tpu.memory_space<vmem>>)
      } else {
      }
      %c7_i32_171 = arith.constant 7 : i32
      %348 = arith.addi %207, %c7_i32_171 : i32
      %c0_i32_172 = arith.constant 0 : i32
      %349 = arith.cmpi sge, %279, %c0_i32_172 : i32
      %350 = arith.extui %349 : i1 to i32
      %c0_i32_173 = arith.constant 0 : i32
      %351 = arith.cmpi ne, %350, %c0_i32_173 : i32
      scf.if %351 {
        %c7_i32_174 = arith.constant 7 : i32
        %c0_i32_175 = arith.constant 0 : i32
        %352 = tpu.memref_slice %arg2[%279, %c0_i32_175] : memref<96x32xf32, #tpu.memory_space<any>> -> memref<1x32xf32, #tpu.memory_space<any>>
        %c0_i32_176 = arith.constant 0 : i32
        %353 = tpu.memref_slice %arg10[%348, %c0_i32_176] : memref<24x32xf32, #tpu.memory_space<vmem>> -> memref<1x32xf32, #tpu.memory_space<vmem>>
        %354 = tpu.memref_slice %arg11[%c7_i32_174] : memref<8x!tpu.dma_semaphore, #tpu.memory_space<semaphore_mem>> -> memref<1x!tpu.dma_semaphore, #tpu.memory_space<semaphore_mem>>
        %355 = tpu.memref_squeeze %354 : memref<1x!tpu.dma_semaphore, #tpu.memory_space<semaphore_mem>> -> memref<!tpu.dma_semaphore, #tpu.memory_space<semaphore_mem>>
        tpu.enqueue_dma source(%352 : memref<1x32xf32, #tpu.memory_space<any>>) target(%353 : memref<1x32xf32, #tpu.memory_space<vmem>>) target_semaphore(%355 : memref<!tpu.dma_semaphore, #tpu.memory_space<semaphore_mem>>)
      } else {
      }
    }
    %c2_i32_19 = arith.constant 2 : i32
    %c16_i32 = arith.constant 16 : i32
    %50 = arith.addi %0, %c16_i32 : i32
    %c0_i32_20 = arith.constant 0 : i32
    %51 = arith.addi %50, %c0_i32_20 : i32
    %52 = arith.index_cast %51 : i32 to index
    %53 = memref.load %arg1[%52] : memref<24xi32, #tpu.memory_space<smem>>
    %c16_i32_21 = arith.constant 16 : i32
    %54 = arith.addi %0, %c16_i32_21 : i32
    %c1_i32_22 = arith.constant 1 : i32
    %55 = arith.addi %54, %c1_i32_22 : i32
    %56 = arith.index_cast %55 : i32 to index
    %57 = memref.load %arg1[%56] : memref<24xi32, #tpu.memory_space<smem>>
    %c16_i32_23 = arith.constant 16 : i32
    %58 = arith.addi %0, %c16_i32_23 : i32
    %c2_i32_24 = arith.constant 2 : i32
    %59 = arith.addi %58, %c2_i32_24 : i32
    %60 = arith.index_cast %59 : i32 to index
    %61 = memref.load %arg1[%60] : memref<24xi32, #tpu.memory_space<smem>>
    %c16_i32_25 = arith.constant 16 : i32
    %62 = arith.addi %0, %c16_i32_25 : i32
    %c3_i32_26 = arith.constant 3 : i32
    %63 = arith.addi %62, %c3_i32_26 : i32
    %64 = arith.index_cast %63 : i32 to index
    %65 = memref.load %arg1[%64] : memref<24xi32, #tpu.memory_space<smem>>
    %c16_i32_27 = arith.constant 16 : i32
    %66 = arith.addi %0, %c16_i32_27 : i32
    %c4_i32_28 = arith.constant 4 : i32
    %67 = arith.addi %66, %c4_i32_28 : i32
    %68 = arith.index_cast %67 : i32 to index
    %69 = memref.load %arg1[%68] : memref<24xi32, #tpu.memory_space<smem>>
    %c16_i32_29 = arith.constant 16 : i32
    %70 = arith.addi %0, %c16_i32_29 : i32
    %c5_i32_30 = arith.constant 5 : i32
    %71 = arith.addi %70, %c5_i32_30 : i32
    %72 = arith.index_cast %71 : i32 to index
    %73 = memref.load %arg1[%72] : memref<24xi32, #tpu.memory_space<smem>>
    %c16_i32_31 = arith.constant 16 : i32
    %74 = arith.addi %0, %c16_i32_31 : i32
    %c6_i32_32 = arith.constant 6 : i32
    %75 = arith.addi %74, %c6_i32_32 : i32
    %76 = arith.index_cast %75 : i32 to index
    %77 = memref.load %arg1[%76] : memref<24xi32, #tpu.memory_space<smem>>
    %c16_i32_33 = arith.constant 16 : i32
    %78 = arith.addi %0, %c16_i32_33 : i32
    %c7_i32_34 = arith.constant 7 : i32
    %79 = arith.addi %78, %c7_i32_34 : i32
    %80 = arith.index_cast %79 : i32 to index
    %81 = memref.load %arg1[%80] : memref<24xi32, #tpu.memory_space<smem>>
    %c0_i32_35 = arith.constant 0 : i32
    %82 = arith.cmpi sge, %53, %c0_i32_35 : i32
    %83 = arith.extui %82 : i1 to i32
    %c0_i32_36 = arith.constant 0 : i32
    %84 = arith.cmpi ne, %83, %c0_i32_36 : i32
    scf.if %84 {
      %c0_i32_94 = arith.constant 0 : i32
      %c0_i32_95 = arith.constant 0 : i32
      %c0_i32_96 = arith.constant 0 : i32
      %207 = tpu.memref_slice %arg2[%c0_i32_95, %c0_i32_96] : memref<96x32xf32, #tpu.memory_space<any>> -> memref<1x32xf32, #tpu.memory_space<any>>
      %c16_i32_97 = arith.constant 16 : i32
      %c0_i32_98 = arith.constant 0 : i32
      %208 = tpu.memref_slice %arg10[%c16_i32_97, %c0_i32_98] : memref<24x32xf32, #tpu.memory_space<vmem>> -> memref<1x32xf32, #tpu.memory_space<vmem>>
      %209 = tpu.memref_slice %arg11[%c0_i32_94] : memref<8x!tpu.dma_semaphore, #tpu.memory_space<semaphore_mem>> -> memref<1x!tpu.dma_semaphore, #tpu.memory_space<semaphore_mem>>
      %210 = tpu.memref_squeeze %209 : memref<1x!tpu.dma_semaphore, #tpu.memory_space<semaphore_mem>> -> memref<!tpu.dma_semaphore, #tpu.memory_space<semaphore_mem>>
      tpu.wait_dma2 semaphore(%210 : memref<!tpu.dma_semaphore, #tpu.memory_space<semaphore_mem>>) src(%207 : memref<1x32xf32, #tpu.memory_space<any>>) dst(%208 : memref<1x32xf32, #tpu.memory_space<vmem>>)
    } else {
    }
    %c0_i32_37 = arith.constant 0 : i32
    %85 = arith.cmpi sge, %57, %c0_i32_37 : i32
    %86 = arith.extui %85 : i1 to i32
    %c0_i32_38 = arith.constant 0 : i32
    %87 = arith.cmpi ne, %86, %c0_i32_38 : i32
    scf.if %87 {
      %c1_i32_94 = arith.constant 1 : i32
      %c0_i32_95 = arith.constant 0 : i32
      %c0_i32_96 = arith.constant 0 : i32
      %207 = tpu.memref_slice %arg2[%c0_i32_95, %c0_i32_96] : memref<96x32xf32, #tpu.memory_space<any>> -> memref<1x32xf32, #tpu.memory_space<any>>
      %c17_i32 = arith.constant 17 : i32
      %c0_i32_97 = arith.constant 0 : i32
      %208 = tpu.memref_slice %arg10[%c17_i32, %c0_i32_97] : memref<24x32xf32, #tpu.memory_space<vmem>> -> memref<1x32xf32, #tpu.memory_space<vmem>>
      %209 = tpu.memref_slice %arg11[%c1_i32_94] : memref<8x!tpu.dma_semaphore, #tpu.memory_space<semaphore_mem>> -> memref<1x!tpu.dma_semaphore, #tpu.memory_space<semaphore_mem>>
      %210 = tpu.memref_squeeze %209 : memref<1x!tpu.dma_semaphore, #tpu.memory_space<semaphore_mem>> -> memref<!tpu.dma_semaphore, #tpu.memory_space<semaphore_mem>>
      tpu.wait_dma2 semaphore(%210 : memref<!tpu.dma_semaphore, #tpu.memory_space<semaphore_mem>>) src(%207 : memref<1x32xf32, #tpu.memory_space<any>>) dst(%208 : memref<1x32xf32, #tpu.memory_space<vmem>>)
    } else {
    }
    %c0_i32_39 = arith.constant 0 : i32
    %88 = arith.cmpi sge, %61, %c0_i32_39 : i32
    %89 = arith.extui %88 : i1 to i32
    %c0_i32_40 = arith.constant 0 : i32
    %90 = arith.cmpi ne, %89, %c0_i32_40 : i32
    scf.if %90 {
      %c2_i32_94 = arith.constant 2 : i32
      %c0_i32_95 = arith.constant 0 : i32
      %c0_i32_96 = arith.constant 0 : i32
      %207 = tpu.memref_slice %arg2[%c0_i32_95, %c0_i32_96] : memref<96x32xf32, #tpu.memory_space<any>> -> memref<1x32xf32, #tpu.memory_space<any>>
      %c18_i32 = arith.constant 18 : i32
      %c0_i32_97 = arith.constant 0 : i32
      %208 = tpu.memref_slice %arg10[%c18_i32, %c0_i32_97] : memref<24x32xf32, #tpu.memory_space<vmem>> -> memref<1x32xf32, #tpu.memory_space<vmem>>
      %209 = tpu.memref_slice %arg11[%c2_i32_94] : memref<8x!tpu.dma_semaphore, #tpu.memory_space<semaphore_mem>> -> memref<1x!tpu.dma_semaphore, #tpu.memory_space<semaphore_mem>>
      %210 = tpu.memref_squeeze %209 : memref<1x!tpu.dma_semaphore, #tpu.memory_space<semaphore_mem>> -> memref<!tpu.dma_semaphore, #tpu.memory_space<semaphore_mem>>
      tpu.wait_dma2 semaphore(%210 : memref<!tpu.dma_semaphore, #tpu.memory_space<semaphore_mem>>) src(%207 : memref<1x32xf32, #tpu.memory_space<any>>) dst(%208 : memref<1x32xf32, #tpu.memory_space<vmem>>)
    } else {
    }
    %c0_i32_41 = arith.constant 0 : i32
    %91 = arith.cmpi sge, %65, %c0_i32_41 : i32
    %92 = arith.extui %91 : i1 to i32
    %c0_i32_42 = arith.constant 0 : i32
    %93 = arith.cmpi ne, %92, %c0_i32_42 : i32
    scf.if %93 {
      %c3_i32_94 = arith.constant 3 : i32
      %c0_i32_95 = arith.constant 0 : i32
      %c0_i32_96 = arith.constant 0 : i32
      %207 = tpu.memref_slice %arg2[%c0_i32_95, %c0_i32_96] : memref<96x32xf32, #tpu.memory_space<any>> -> memref<1x32xf32, #tpu.memory_space<any>>
      %c19_i32 = arith.constant 19 : i32
      %c0_i32_97 = arith.constant 0 : i32
      %208 = tpu.memref_slice %arg10[%c19_i32, %c0_i32_97] : memref<24x32xf32, #tpu.memory_space<vmem>> -> memref<1x32xf32, #tpu.memory_space<vmem>>
      %209 = tpu.memref_slice %arg11[%c3_i32_94] : memref<8x!tpu.dma_semaphore, #tpu.memory_space<semaphore_mem>> -> memref<1x!tpu.dma_semaphore, #tpu.memory_space<semaphore_mem>>
      %210 = tpu.memref_squeeze %209 : memref<1x!tpu.dma_semaphore, #tpu.memory_space<semaphore_mem>> -> memref<!tpu.dma_semaphore, #tpu.memory_space<semaphore_mem>>
      tpu.wait_dma2 semaphore(%210 : memref<!tpu.dma_semaphore, #tpu.memory_space<semaphore_mem>>) src(%207 : memref<1x32xf32, #tpu.memory_space<any>>) dst(%208 : memref<1x32xf32, #tpu.memory_space<vmem>>)
    } else {
    }
    %c0_i32_43 = arith.constant 0 : i32
    %94 = arith.cmpi sge, %69, %c0_i32_43 : i32
    %95 = arith.extui %94 : i1 to i32
    %c0_i32_44 = arith.constant 0 : i32
    %96 = arith.cmpi ne, %95, %c0_i32_44 : i32
    scf.if %96 {
      %c4_i32_94 = arith.constant 4 : i32
      %c0_i32_95 = arith.constant 0 : i32
      %c0_i32_96 = arith.constant 0 : i32
      %207 = tpu.memref_slice %arg2[%c0_i32_95, %c0_i32_96] : memref<96x32xf32, #tpu.memory_space<any>> -> memref<1x32xf32, #tpu.memory_space<any>>
      %c20_i32 = arith.constant 20 : i32
      %c0_i32_97 = arith.constant 0 : i32
      %208 = tpu.memref_slice %arg10[%c20_i32, %c0_i32_97] : memref<24x32xf32, #tpu.memory_space<vmem>> -> memref<1x32xf32, #tpu.memory_space<vmem>>
      %209 = tpu.memref_slice %arg11[%c4_i32_94] : memref<8x!tpu.dma_semaphore, #tpu.memory_space<semaphore_mem>> -> memref<1x!tpu.dma_semaphore, #tpu.memory_space<semaphore_mem>>
      %210 = tpu.memref_squeeze %209 : memref<1x!tpu.dma_semaphore, #tpu.memory_space<semaphore_mem>> -> memref<!tpu.dma_semaphore, #tpu.memory_space<semaphore_mem>>
      tpu.wait_dma2 semaphore(%210 : memref<!tpu.dma_semaphore, #tpu.memory_space<semaphore_mem>>) src(%207 : memref<1x32xf32, #tpu.memory_space<any>>) dst(%208 : memref<1x32xf32, #tpu.memory_space<vmem>>)
    } else {
    }
    %c0_i32_45 = arith.constant 0 : i32
    %97 = arith.cmpi sge, %73, %c0_i32_45 : i32
    %98 = arith.extui %97 : i1 to i32
    %c0_i32_46 = arith.constant 0 : i32
    %99 = arith.cmpi ne, %98, %c0_i32_46 : i32
    scf.if %99 {
      %c5_i32_94 = arith.constant 5 : i32
      %c0_i32_95 = arith.constant 0 : i32
      %c0_i32_96 = arith.constant 0 : i32
      %207 = tpu.memref_slice %arg2[%c0_i32_95, %c0_i32_96] : memref<96x32xf32, #tpu.memory_space<any>> -> memref<1x32xf32, #tpu.memory_space<any>>
      %c21_i32 = arith.constant 21 : i32
      %c0_i32_97 = arith.constant 0 : i32
      %208 = tpu.memref_slice %arg10[%c21_i32, %c0_i32_97] : memref<24x32xf32, #tpu.memory_space<vmem>> -> memref<1x32xf32, #tpu.memory_space<vmem>>
      %209 = tpu.memref_slice %arg11[%c5_i32_94] : memref<8x!tpu.dma_semaphore, #tpu.memory_space<semaphore_mem>> -> memref<1x!tpu.dma_semaphore, #tpu.memory_space<semaphore_mem>>
      %210 = tpu.memref_squeeze %209 : memref<1x!tpu.dma_semaphore, #tpu.memory_space<semaphore_mem>> -> memref<!tpu.dma_semaphore, #tpu.memory_space<semaphore_mem>>
      tpu.wait_dma2 semaphore(%210 : memref<!tpu.dma_semaphore, #tpu.memory_space<semaphore_mem>>) src(%207 : memref<1x32xf32, #tpu.memory_space<any>>) dst(%208 : memref<1x32xf32, #tpu.memory_space<vmem>>)
    } else {
    }
    %c0_i32_47 = arith.constant 0 : i32
    %100 = arith.cmpi sge, %77, %c0_i32_47 : i32
    %101 = arith.extui %100 : i1 to i32
    %c0_i32_48 = arith.constant 0 : i32
    %102 = arith.cmpi ne, %101, %c0_i32_48 : i32
    scf.if %102 {
      %c6_i32_94 = arith.constant 6 : i32
      %c0_i32_95 = arith.constant 0 : i32
      %c0_i32_96 = arith.constant 0 : i32
      %207 = tpu.memref_slice %arg2[%c0_i32_95, %c0_i32_96] : memref<96x32xf32, #tpu.memory_space<any>> -> memref<1x32xf32, #tpu.memory_space<any>>
      %c22_i32 = arith.constant 22 : i32
      %c0_i32_97 = arith.constant 0 : i32
      %208 = tpu.memref_slice %arg10[%c22_i32, %c0_i32_97] : memref<24x32xf32, #tpu.memory_space<vmem>> -> memref<1x32xf32, #tpu.memory_space<vmem>>
      %209 = tpu.memref_slice %arg11[%c6_i32_94] : memref<8x!tpu.dma_semaphore, #tpu.memory_space<semaphore_mem>> -> memref<1x!tpu.dma_semaphore, #tpu.memory_space<semaphore_mem>>
      %210 = tpu.memref_squeeze %209 : memref<1x!tpu.dma_semaphore, #tpu.memory_space<semaphore_mem>> -> memref<!tpu.dma_semaphore, #tpu.memory_space<semaphore_mem>>
      tpu.wait_dma2 semaphore(%210 : memref<!tpu.dma_semaphore, #tpu.memory_space<semaphore_mem>>) src(%207 : memref<1x32xf32, #tpu.memory_space<any>>) dst(%208 : memref<1x32xf32, #tpu.memory_space<vmem>>)
    } else {
    }
    %c0_i32_49 = arith.constant 0 : i32
    %103 = arith.cmpi sge, %81, %c0_i32_49 : i32
    %104 = arith.extui %103 : i1 to i32
    %c0_i32_50 = arith.constant 0 : i32
    %105 = arith.cmpi ne, %104, %c0_i32_50 : i32
    scf.if %105 {
      %c7_i32_94 = arith.constant 7 : i32
      %c0_i32_95 = arith.constant 0 : i32
      %c0_i32_96 = arith.constant 0 : i32
      %207 = tpu.memref_slice %arg2[%c0_i32_95, %c0_i32_96] : memref<96x32xf32, #tpu.memory_space<any>> -> memref<1x32xf32, #tpu.memory_space<any>>
      %c23_i32 = arith.constant 23 : i32
      %c0_i32_97 = arith.constant 0 : i32
      %208 = tpu.memref_slice %arg10[%c23_i32, %c0_i32_97] : memref<24x32xf32, #tpu.memory_space<vmem>> -> memref<1x32xf32, #tpu.memory_space<vmem>>
      %209 = tpu.memref_slice %arg11[%c7_i32_94] : memref<8x!tpu.dma_semaphore, #tpu.memory_space<semaphore_mem>> -> memref<1x!tpu.dma_semaphore, #tpu.memory_space<semaphore_mem>>
      %210 = tpu.memref_squeeze %209 : memref<1x!tpu.dma_semaphore, #tpu.memory_space<semaphore_mem>> -> memref<!tpu.dma_semaphore, #tpu.memory_space<semaphore_mem>>
      tpu.wait_dma2 semaphore(%210 : memref<!tpu.dma_semaphore, #tpu.memory_space<semaphore_mem>>) src(%207 : memref<1x32xf32, #tpu.memory_space<any>>) dst(%208 : memref<1x32xf32, #tpu.memory_space<vmem>>)
    } else {
    }
    %c0 = arith.constant 0 : index
    %c0_51 = arith.constant 0 : index
    %106 = vector.load %arg10[%c0, %c0_51] : memref<24x32xf32, #tpu.memory_space<vmem>>, vector<24x32xf32>
    %c0_52 = arith.constant 0 : index
    %c0_53 = arith.constant 0 : index
    %107 = vector.load %arg3[%c0_52, %c0_53] : memref<32x128xf32, #tpu.memory_space<vmem>>, vector<32x128xf32>
    %cst = arith.constant dense<0.000000e+00> : vector<24x128xf32>
    %108 = tpu.matmul %106, %107, %cst {dimension_numbers = #tpu.dot_dimension_numbers<[1], [0], [0], [1], [0, 0, 1, 1], [], []>} : vector<24x32xf32>, vector<32x128xf32>, vector<24x128xf32> -> vector<24x128xf32>
    %c0_54 = arith.constant 0 : index
    %c0_55 = arith.constant 0 : index
    %109 = vector.load %arg4[%c0_54, %c0_55] : memref<1x128xf32, #tpu.memory_space<vmem>>, vector<1x128xf32>
    %110 = vector.broadcast %109 : vector<1x128xf32> to vector<24x128xf32>
    %111 = arith.addf %108, %110 : vector<24x128xf32>
    %c0_56 = arith.constant 0 : index
    %c0_57 = arith.constant 0 : index
    %112 = vector.load %arg7[%c0_56, %c0_57] : memref<24x1xf32, #tpu.memory_space<vmem>>, vector<24x1xf32>
    %cst_58 = arith.constant 0.000000e+00 : f32
    %113 = vector.broadcast %cst_58 : f32 to vector<24x1xf32>
    %114 = arith.cmpf ogt, %112, %113 : vector<24x1xf32>
    %c0_59 = arith.constant 0 : index
    %c0_60 = arith.constant 0 : index
    %115 = vector.load %arg4[%c0_59, %c0_60] : memref<1x128xf32, #tpu.memory_space<vmem>>, vector<1x128xf32>
    %116 = vector.shape_cast %114 : vector<24x1xi1> to vector<24x1xi1>
    %117 = vector.broadcast %116 : vector<24x1xi1> to vector<24x128xi1>
    %118 = vector.shape_cast %115 : vector<1x128xf32> to vector<1x128xf32>
    %119 = vector.broadcast %118 : vector<1x128xf32> to vector<24x128xf32>
    %120 = arith.select %117, %111, %119 : vector<24x128xi1>, vector<24x128xf32>
    %c0_61 = arith.constant 0 : index
    %c0_62 = arith.constant 0 : index
    %121 = vector.load %arg8[%c0_61, %c0_62] : memref<24x128xf32, #tpu.memory_space<vmem>>, vector<24x128xf32>
    tpu.vector_store %arg8[%c0_61, %c0_62], %120 {strides = array<i32>} : memref<24x128xf32, #tpu.memory_space<vmem>>, vector<24x128xf32>,
    %122 = tpu.iota {dimensions = array<i32: 1>} : vector<24x128xi32>
    %c2_i32_63 = arith.constant 2 : i32
    %123 = vector.broadcast %c2_i32_63 : i32 to vector<24x128xi32>
    %124 = arith.cmpi slt, %122, %123 : vector<24x128xi32>
    %cst_64 = arith.constant -1.000000e+30 : f32
    %125 = vector.broadcast %cst_64 : f32 to vector<24x128xf32>
    %126 = arith.select %124, %120, %125 : vector<24x128xi1>, vector<24x128xf32>
    %cst_65 = arith.constant dense<0xFF800000> : vector<24xf32>
    %127 = vector.multi_reduction <maximumf>, %126, %cst_65 [1] : vector<24x128xf32> to vector<24xf32>
    %128 = vector.shape_cast %127 : vector<24xf32> to vector<24x1xf32>
    %129 = vector.broadcast %128 : vector<24x1xf32> to vector<24x128xf32>
    %130 = arith.subf %126, %129 : vector<24x128xf32>
    %131 = math.exp %130 : vector<24x128xf32>
    %cst_66 = arith.constant 0.000000e+00 : f32
    %132 = vector.broadcast %cst_66 : f32 to vector<24x128xf32>
    %133 = arith.select %124, %131, %132 : vector<24x128xi1>, vector<24x128xf32>
    %cst_67 = arith.constant dense<0.000000e+00> : vector<24xf32>
    %134 = vector.multi_reduction <add>, %133, %cst_67 [1] : vector<24x128xf32> to vector<24xf32>
    %135 = vector.shape_cast %134 : vector<24xf32> to vector<24x1xf32>
    %136 = math.log %135 : vector<24x1xf32>
    %137 = arith.addf %128, %136 : vector<24x1xf32>
    %c0_68 = arith.constant 0 : index
    %c0_69 = arith.constant 0 : index
    %138 = vector.load %arg5[%c0_68, %c0_69] : memref<24x1xi32, #tpu.memory_space<vmem>>, vector<24x1xi32>
    %c0_i32_70 = arith.constant 0 : i32
    %139 = vector.broadcast %c0_i32_70 : i32 to vector<24x1xi32>
    %140 = arith.cmpi sge, %138, %139 : vector<24x1xi32>
    %141 = vector.broadcast %138 : vector<24x1xi32> to vector<24x128xi32>
    %142 = arith.cmpi eq, %122, %141 : vector<24x128xi32>
    %cst_71 = arith.constant 0.000000e+00 : f32
    %143 = vector.broadcast %cst_71 : f32 to vector<24x128xf32>
    %144 = arith.select %142, %120, %143 : vector<24x128xi1>, vector<24x128xf32>
    %cst_72 = arith.constant dense<0.000000e+00> : vector<24xf32>
    %145 = vector.multi_reduction <add>, %144, %cst_72 [1] : vector<24x128xf32> to vector<24xf32>
    %146 = vector.shape_cast %145 : vector<24xf32> to vector<24x1xf32>
    %147 = arith.subf %137, %146 : vector<24x1xf32>
    %cst_73 = arith.constant 0.000000e+00 : f32
    %148 = vector.broadcast %cst_73 : f32 to vector<24x1xf32>
    %149 = arith.select %140, %147, %148 : vector<24x1xi1>, vector<24x1xf32>
    %150 = vector.shape_cast %149 : vector<24x1xf32> to vector<1x24x1xf32>
    %cst_74 = arith.constant dense<0.000000e+00> : vector<1xf32>
    %151 = vector.multi_reduction <add>, %150, %cst_74 [1, 2] : vector<1x24x1xf32> to vector<1xf32>
    %152 = vector.shape_cast %151 : vector<1xf32> to vector<1x1x1xf32>
    %153 = vector.extract %152[0, 0, 0] : f32 from vector<1x1x1xf32>
    %154 = arith.extui %140 : vector<24x1xi1> to vector<24x1xi32>
    %155 = arith.sitofp %154 : vector<24x1xi32> to vector<24x1xf32>
    %156 = vector.shape_cast %155 : vector<24x1xf32> to vector<1x24x1xf32>
    %cst_75 = arith.constant dense<0.000000e+00> : vector<1xf32>
    %157 = vector.multi_reduction <add>, %156, %cst_75 [1, 2] : vector<1x24x1xf32> to vector<1xf32>
    %158 = vector.shape_cast %157 : vector<1xf32> to vector<1x1x1xf32>
    %159 = vector.extract %158[0, 0, 0] : f32 from vector<1x1x1xf32>
    %c0_76 = arith.constant 0 : index
    %c0_77 = arith.constant 0 : index
    %160 = vector.load %arg6[%c0_76, %c0_77] : memref<24x1xi32, #tpu.memory_space<vmem>>, vector<24x1xi32>
    %c0_i32_78 = arith.constant 0 : i32
    %161 = vector.broadcast %c0_i32_78 : i32 to vector<24x1xi32>
    %162 = arith.cmpi sge, %160, %161 : vector<24x1xi32>
    %163 = vector.broadcast %160 : vector<24x1xi32> to vector<24x128xi32>
    %164 = arith.cmpi eq, %122, %163 : vector<24x128xi32>
    %cst_79 = arith.constant 0.000000e+00 : f32
    %165 = vector.broadcast %cst_79 : f32 to vector<24x128xf32>
    %166 = arith.select %164, %120, %165 : vector<24x128xi1>, vector<24x128xf32>
    %cst_80 = arith.constant dense<0.000000e+00> : vector<24xf32>
    %167 = vector.multi_reduction <add>, %166, %cst_80 [1] : vector<24x128xf32> to vector<24xf32>
    %168 = vector.shape_cast %167 : vector<24xf32> to vector<24x1xf32>
    %169 = arith.subf %137, %168 : vector<24x1xf32>
    %cst_81 = arith.constant 0.000000e+00 : f32
    %170 = vector.broadcast %cst_81 : f32 to vector<24x1xf32>
    %171 = arith.select %162, %169, %170 : vector<24x1xi1>, vector<24x1xf32>
    %172 = vector.shape_cast %171 : vector<24x1xf32> to vector<1x24x1xf32>
    %cst_82 = arith.constant dense<0.000000e+00> : vector<1xf32>
    %173 = vector.multi_reduction <add>, %172, %cst_82 [1, 2] : vector<1x24x1xf32> to vector<1xf32>
    %174 = vector.shape_cast %173 : vector<1xf32> to vector<1x1x1xf32>
    %175 = vector.extract %174[0, 0, 0] : f32 from vector<1x1x1xf32>
    %176 = arith.extui %162 : vector<24x1xi1> to vector<24x1xi32>
    %177 = arith.sitofp %176 : vector<24x1xi32> to vector<24x1xf32>
    %178 = vector.shape_cast %177 : vector<24x1xf32> to vector<1x24x1xf32>
    %cst_83 = arith.constant dense<0.000000e+00> : vector<1xf32>
    %179 = vector.multi_reduction <add>, %178, %cst_83 [1, 2] : vector<1x24x1xf32> to vector<1xf32>
    %180 = vector.shape_cast %179 : vector<1xf32> to vector<1x1x1xf32>
    %181 = vector.extract %180[0, 0, 0] : f32 from vector<1x1x1xf32>
    %182 = tpu.iota {dimensions = array<i32: 1>} : vector<8x128xi32>
    %c0_i32_84 = arith.constant 0 : i32
    %183 = vector.broadcast %c0_i32_84 : i32 to vector<8x128xi32>
    %184 = arith.cmpi eq, %182, %183 : vector<8x128xi32>
    %cst_85 = arith.constant 0.000000e+00 : f32
    %185 = vector.broadcast %153 : f32 to vector<8x128xf32>
    %186 = vector.broadcast %cst_85 : f32 to vector<8x128xf32>
    %187 = arith.select %184, %185, %186 : vector<8x128xi1>, vector<8x128xf32>
    %c1_i32_86 = arith.constant 1 : i32
    %188 = vector.broadcast %c1_i32_86 : i32 to vector<8x128xi32>
    %189 = arith.cmpi eq, %182, %188 : vector<8x128xi32>
    %cst_87 = arith.constant 0.000000e+00 : f32
    %190 = vector.broadcast %175 : f32 to vector<8x128xf32>
    %191 = vector.broadcast %cst_87 : f32 to vector<8x128xf32>
    %192 = arith.select %189, %190, %191 : vector<8x128xi1>, vector<8x128xf32>
    %193 = arith.addf %187, %192 : vector<8x128xf32>
    %c2_i32_88 = arith.constant 2 : i32
    %194 = vector.broadcast %c2_i32_88 : i32 to vector<8x128xi32>
    %195 = arith.cmpi eq, %182, %194 : vector<8x128xi32>
    %cst_89 = arith.constant 0.000000e+00 : f32
    %196 = vector.broadcast %159 : f32 to vector<8x128xf32>
    %197 = vector.broadcast %cst_89 : f32 to vector<8x128xf32>
    %198 = arith.select %195, %196, %197 : vector<8x128xi1>, vector<8x128xf32>
    %199 = arith.addf %193, %198 : vector<8x128xf32>
    %c3_i32_90 = arith.constant 3 : i32
    %200 = vector.broadcast %c3_i32_90 : i32 to vector<8x128xi32>
    %201 = arith.cmpi eq, %182, %200 : vector<8x128xi32>
    %cst_91 = arith.constant 0.000000e+00 : f32
    %202 = vector.broadcast %181 : f32 to vector<8x128xf32>
    %203 = vector.broadcast %cst_91 : f32 to vector<8x128xf32>
    %204 = arith.select %201, %202, %203 : vector<8x128xi1>, vector<8x128xf32>
    %205 = arith.addf %199, %204 : vector<8x128xf32>
    %c0_92 = arith.constant 0 : index
    %c0_93 = arith.constant 0 : index
    %206 = vector.load %arg9[%c0_92, %c0_93] : memref<8x128xf32, #tpu.memory_space<vmem>>, vector<8x128xf32>
    tpu.vector_store %arg9[%c0_92, %c0_93], %205 {strides = array<i32>} : memref<8x128xf32, #tpu.memory_space<vmem>>, vector<8x128xf32>,
    return
  }
  func.func @transform_1(%arg0: i32, %arg1: memref<24xi32, #tpu.memory_space<smem>>) -> (i32, i32) {
    %c0_i32 = arith.constant 0 : i32
    %c0_i32_0 = arith.constant 0 : i32
    %c0_i32_1 = arith.constant 0 : i32
    return %c0_i32, %c0_i32_0 : i32, i32
  }
  func.func @transform_2(%arg0: i32, %arg1: memref<24xi32, #tpu.memory_space<smem>>) -> (i32, i32) {
    %c0_i32 = arith.constant 0 : i32
    %c0_i32_0 = arith.constant 0 : i32
    %c0_i32_1 = arith.constant 0 : i32
    return %c0_i32, %c0_i32_0 : i32, i32
  }
  func.func @transform_3(%arg0: i32, %arg1: memref<24xi32, #tpu.memory_space<smem>>) -> (i32, i32) {
    %c0_i32 = arith.constant 0 : i32
    %c0_i32_0 = arith.constant 0 : i32
    return %arg0, %c0_i32 : i32, i32
  }
  func.func @transform_4(%arg0: i32, %arg1: memref<24xi32, #tpu.memory_space<smem>>) -> (i32, i32) {
    %c0_i32 = arith.constant 0 : i32
    %c0_i32_0 = arith.constant 0 : i32
    return %arg0, %c0_i32 : i32, i32
  }
  func.func @transform_5(%arg0: i32, %arg1: memref<24xi32, #tpu.memory_space<smem>>) -> (i32, i32) {
    %c0_i32 = arith.constant 0 : i32
    %c0_i32_0 = arith.constant 0 : i32
    return %arg0, %c0_i32 : i32, i32
  }
  func.func @transform_6(%arg0: i32, %arg1: memref<24xi32, #tpu.memory_space<smem>>) -> (i32, i32) {
    %c0_i32 = arith.constant 0 : i32
    %c0_i32_0 = arith.constant 0 : i32
    return %arg0, %c0_i32 : i32, i32
  }
  func.func @transform_7(%arg0: i32, %arg1: memref<24xi32, #tpu.memory_space<smem>>) -> (i32, i32) {
    %c0_i32 = arith.constant 0 : i32
    %c0_i32_0 = arith.constant 0 : i32
    return %arg0, %c0_i32 : i32, i32
  }
}

</mosaic_0001>

<llo_original>
// kernel: segment_predictor_forward.1
$region0: #{segment_predictor_forward.1}
  #allocation0 [shape = 'u32[]', space=smem, size = 0x4, offset = 0x4, fixed_abs, tag = 'smem constant byte address 0x4 - core index']
  #allocation1 [shape = 'u32[144,128]{1,0:T(1,128)}', space=vmem, size = 0x12000, scoped, tag = 'internal scratch']
  #allocation2 [shape = 'f32[24,32]{1,0:T(8,128)}', space=vmem, size = 0x3000, scoped, tag = 'scratch operand']
  #allocation3 [shape = 's32[8]{0}', space=sflag, size = 0x20, scoped, tag = 'scratch operand']
  #allocation4 [shape = 's32[1]{0}', space=sflag, size = 0x4, scoped, tag = 'scoped memory for segment_predictor_forward.1']
  #allocation5 [shape = 'u8[512]{0}', space=smem, size = 0x200, scoped, tag = 'prefetched SMEM operand 0']
  #allocation6 [shape = 's32[]', space=sflag, size = 0x4, offset = 0, fixed_abs, tag = 'sflag constant byte address 0x0 - dummy sync flag']
  #allocation7 [shape = 's32[]', space=sflag, size = 0x4, offset = 0, fixed_abs, tag = 'sflag constant byte address 0x0 - dummy sync flag']
  #allocation8 [shape = 's32[]', space=sflag, size = 0x4, offset = 0, fixed_abs, tag = 'sflag constant byte address 0x0 - dummy sync flag']
  #allocation9 [shape = 's32[]', space=sflag, size = 0x4, offset = 0, fixed_abs, tag = 'sflag constant byte address 0x0 - dummy sync flag']
  #allocation10 [shape = 's32[]', space=sflag, size = 0x4, offset = 0, fixed_abs, tag = 'sflag constant byte address 0x0 - dummy sync flag']
  #allocation11 [shape = 's32[]', space=sflag, size = 0x4, offset = 0, fixed_abs, tag = 'sflag constant byte address 0x0 - dummy sync flag']
  #allocation12 [shape = 's32[]', space=sflag, size = 0x4, offset = 0, fixed_abs, tag = 'sflag constant byte address 0x0 - dummy sync flag']
  #allocation13 [shape = 's32[]', space=sflag, size = 0x4, offset = 0, fixed_abs, tag = 'sflag constant byte address 0x0 - dummy sync flag']
  #allocation14 [shape = 's32[]', space=sflag, size = 0x4, offset = 0, fixed_abs, tag = 'sflag constant byte address 0x0 - dummy sync flag']
  #allocation15 [shape = 's32[]', space=sflag, size = 0x4, offset = 0, fixed_abs, tag = 'sflag constant byte address 0x0 - dummy sync flag']
  #allocation16 [shape = 's32[]', space=sflag, size = 0x4, offset = 0, fixed_abs, tag = 'sflag constant byte address 0x0 - dummy sync flag']
  #allocation17 [shape = 's32[]', space=sflag, size = 0x4, offset = 0, fixed_abs, tag = 'sflag constant byte address 0x0 - dummy sync flag']
  #allocation18 [shape = 's32[]', space=sflag, size = 0x4, offset = 0, fixed_abs, tag = 'sflag constant byte address 0x0 - dummy sync flag']
  #allocation19 [shape = 's32[]', space=sflag, size = 0x4, offset = 0, fixed_abs, tag = 'sflag constant byte address 0x0 - dummy sync flag']
  #allocation20 [shape = 's32[]', space=sflag, size = 0x4, offset = 0, fixed_abs, tag = 'sflag constant byte address 0x0 - dummy sync flag']
  #allocation21 [shape = 's32[]', space=sflag, size = 0x4, offset = 0, fixed_abs, tag = 'sflag constant byte address 0x0 - dummy sync flag']
  %s0 = inlined_call_operand.vmem [shape: s32[24], index: 0, kind: input, shape index: {}]
  %s1 = inlined_call_operand.vmem [shape: f32[96,32], index: 1, kind: input, shape index: {}]
  %s2 = inlined_call_operand.vmem [shape: f32[32,128], index: 2, kind: input, shape index: {}]
  %s3 = inlined_call_operand.vmem [shape: f32[1,128], index: 3, kind: input, shape index: {}]
  %s4 = inlined_call_operand.vmem [shape: s32[24,1], index: 4, kind: input, shape index: {}]
  %s5 = inlined_call_operand.vmem [shape: s32[24,1], index: 5, kind: input, shape index: {}]
  %s6 = inlined_call_operand.vmem [shape: f32[24,1], index: 6, kind: input, shape index: {}]
  %s7 = inlined_call_operand.vmem [shape: f32[24,128], index: 7, kind: output, shape index: {0}]
  %s8 = inlined_call_operand.vmem [shape: f32[8,128], index: 8, kind: output, shape index: {1}]
  %9 = xla_tuple %s7, %s8
  %s10 = sld [smem:[#allocation0]]
  $region653: #{segment_predictor_forward.1} parent=0
    _
  %s12 = ssub.s32 1, %s10
  %s13 = scalar_select 0, %s12, %s10
  %s14 = sshll.u32 %s0, 4
  %s15 = int_to_ptr.vmem [resolvable:$true] %s14
  %17 = dma.vmem_to_smem %s15, 16, [#allocation5], [#allocation4]
  %18 = dma.done [#allocation4], 16
  %19 = sfence
  // Predicated region
  $region2: #{segment_predictor_forward.1} parent=0 // pred_check
    _
  $region3: #{segment_predictor_forward.1} parent=0 // pred_check_branch
    %21 = sbr.rel (0) target = $region5
  $region4: #{segment_predictor_forward.1} parent=0 // pred_region
    _
  $region5: #{segment_predictor_forward.1} parent=0 // pred_fallthru
    _
  // Predicated region
  $region6: #{segment_predictor_forward.1} parent=0 // pred_check
    _
  $region7: #{segment_predictor_forward.1} parent=0 // pred_check_branch
    %23 = sbr.rel (0) target = $region9
  $region8: #{segment_predictor_forward.1} parent=0 // pred_region
    _
  $region9: #{segment_predictor_forward.1} parent=0 // pred_fallthru
    _
  // Predicated region
  $region10: #{segment_predictor_forward.1} parent=0 // pred_check
    _
  $region11: #{segment_predictor_forward.1} parent=0 // pred_check_branch
    %25 = sbr.rel (0) target = $region13
  $region12: #{segment_predictor_forward.1} parent=0 // pred_region
    _
  $region13: #{segment_predictor_forward.1} parent=0 // pred_fallthru
    _
  // Predicated region
  $region14: #{segment_predictor_forward.1} parent=0 // pred_check
    _
  $region15: #{segment_predictor_forward.1} parent=0 // pred_check_branch
    %27 = sbr.rel (0) target = $region17
  $region16: #{segment_predictor_forward.1} parent=0 // pred_region
    _
  $region17: #{segment_predictor_forward.1} parent=0 // pred_fallthru
    _
  // Predicated region
  $region18: #{segment_predictor_forward.1} parent=0 // pred_check
    _
  $region19: #{segment_predictor_forward.1} parent=0 // pred_check_branch
    %29 = sbr.rel (0) target = $region21
  $region20: #{segment_predictor_forward.1} parent=0 // pred_region
    _
  $region21: #{segment_predictor_forward.1} parent=0 // pred_fallthru
    _
  %s30 = smul.u32 0, 24
  %s31 = sld [smem:[#allocation5 + %s30]]
  %s32 = sadd.s32 %s30, 1
  %s33 = sld [smem:[#allocation5 + %s32]]
  %s34 = sadd.s32 %s30, 2
  %s35 = sld [smem:[#allocation5 + %s34]]
  %s36 = sadd.s32 %s30, 3
  %s37 = sld [smem:[#allocation5 + %s36]]
  %s38 = sadd.s32 %s30, 4
  %s39 = sld [smem:[#allocation5 + %s38]]
  %s40 = sadd.s32 %s30, 5
  %s41 = sld [smem:[#allocation5 + %s40]]
  %s42 = sadd.s32 %s30, 6
  %s43 = sld [smem:[#allocation5 + %s42]]
  %s44 = sadd.s32 %s30, 7
  %s45 = sld [smem:[#allocation5 + %s44]]
  %p46 = scmp.ge.s32.totalorder %s31, 0
  // Predicated region
  $region22: #{segment_predictor_forward.1} parent=0 // pred_check
    %p47 = pneg %p46
  $region23: #{segment_predictor_forward.1} parent=0 // pred_check_branch
    %49 = sbr.rel (%p47) target = $region25
  $region24: #{segment_predictor_forward.1} parent=0 // pred_region
    %s50 = scalar_lea.vmem %s1, %s31
    %p52 = scmp.lt.u32.totalorder 1, 8
    %p53 = pneg %p52
    // Predicated region
    $region26: #{segment_predictor_forward.1} parent=24 // pred_check
      _
    $region27: #{segment_predictor_forward.1} parent=24 // pred_check_branch
      %55 = sbr.rel (%p52) target = $region29
    $region28: #{segment_predictor_forward.1} parent=24 // pred_region
      %s70 = sand.u32 1, 7
      %p71 = scmp.eq.s32.totalorder %s70, 0
      %p72 = pneg %p71
      // Predicated region
      $region41: #{segment_predictor_forward.1} parent=28 // pred_check
        _
      $region42: #{segment_predictor_forward.1} parent=28 // pred_check_branch
        %74 = sbr.rel (%p71) target = $region44
      $region43: #{segment_predictor_forward.1} parent=28 // pred_region
        %s75 = sand.u32 1, 7
        %s76 = ssub.s32 1, %s75
        %s77 = scalar_lea.vmem %s50, %s76
        %s78 = ssub.s32 1, %s75
        %s79 = scalar_lea.vmem [#allocation2], %s78
        %s80 = sshllo.u32 0, %s75
        loop: start=0, step=1, limit=1
        $region45: #{segment_predictor_forward.1} parent=43 // loop_pre_header
          _
        $region46: #{segment_predictor_forward.1} parent=43 // loop_header
          %s82 = sphi 0, %s86
          %p83 = scmp.ge.s32.totalorder %s82, 1
          %s87 = sphi %s77, %s77
          %s88 = sphi %s79, %s79
        $region47: #{segment_predictor_forward.1} parent=43 // loop_header_branch
          %85 = sbr.rel (%p83) target = $region51
        $region48: #{segment_predictor_forward.1} parent=43 // loop_body
          %v89 = vld [vmem:[%s87] sm:%s80]
          %90 = vst [vmem:[%s88] sm:%s80] %v89
        $region49: #{segment_predictor_forward.1} parent=43 // loop_footer
          %s86 = sadd.s32 1, %s82
        $region50: #{segment_predictor_forward.1} parent=43 // loop_footer_branch
          %81 = sbr.rel target = $region46
        $region51: #{segment_predictor_forward.1} parent=43 // loop_exit
          _
      $region44: #{segment_predictor_forward.1} parent=28 // pred_fallthru
        _
    $region29: #{segment_predictor_forward.1} parent=24 // pred_fallthru
      _
    // Predicated region
    $region30: #{segment_predictor_forward.1} parent=24 // pred_check
      %p56 = pneg %p52
    $region31: #{segment_predictor_forward.1} parent=24 // pred_check_branch
      %58 = sbr.rel (%p56) target = $region33
    $region32: #{segment_predictor_forward.1} parent=24 // pred_region
      %s59 = sshllo.u32 0, 1
      loop: start=0, step=1, limit=1
      $region34: #{segment_predictor_forward.1} parent=32 // loop_pre_header
        _
      $region35: #{segment_predictor_forward.1} parent=32 // loop_header
        %s61 = sphi 0, %s65
        %p62 = scmp.ge.s32.totalorder %s61, 1
        %s66 = sphi %s50, %s50
        %s67 = sphi [#allocation2], [#allocation2]
      $region36: #{segment_predictor_forward.1} parent=32 // loop_header_branch
        %64 = sbr.rel (%p62) target = $region40
      $region37: #{segment_predictor_forward.1} parent=32 // loop_body
        %v68 = vld [vmem:[%s66] sm:%s59]
        %69 = vst [vmem:[%s67] sm:%s59] %v68
      $region38: #{segment_predictor_forward.1} parent=32 // loop_footer
        %s65 = sadd.s32 1, %s61
      $region39: #{segment_predictor_forward.1} parent=32 // loop_footer_branch
        %60 = sbr.rel target = $region35
      $region40: #{segment_predictor_forward.1} parent=32 // loop_exit
        _
    $region33: #{segment_predictor_forward.1} parent=24 // pred_fallthru
      _
    // Predicated region
    $region52: #{segment_predictor_forward.1} parent=24 // pred_check
      _
    $region53: #{segment_predictor_forward.1} parent=24 // pred_check_branch
      %93 = sbr.rel (0) target = $region55
    $region54: #{segment_predictor_forward.1} parent=24 // pred_region
      %94 = vsyncadd [#allocation3], 16
    $region55: #{segment_predictor_forward.1} parent=24 // pred_fallthru
      _
  $region25: #{segment_predictor_forward.1} parent=0 // pred_fallthru
    _
  %p95 = scmp.ge.s32.totalorder %s33, 0
  // Predicated region
  $region56: #{segment_predictor_forward.1} parent=0 // pred_check
    %p96 = pneg %p95
  $region57: #{segment_predictor_forward.1} parent=0 // pred_check_branch
    %98 = sbr.rel (%p96) target = $region59
  $region58: #{segment_predictor_forward.1} parent=0 // pred_region
    %s99 = scalar_lea.vmem %s1, %s33
    %s100 = scalar_lea.vmem [#allocation2], 1
    %s101 = scalar_lea.sflag [#allocation3], 1
    %p103 = scmp.lt.u32.totalorder 1, 8
    %p104 = pneg %p103
    // Predicated region
    $region60: #{segment_predictor_forward.1} parent=58 // pred_check
      _
    $region61: #{segment_predictor_forward.1} parent=58 // pred_check_branch
      %106 = sbr.rel (%p103) target = $region63
    $region62: #{segment_predictor_forward.1} parent=58 // pred_region
      %s121 = sand.u32 1, 7
      %p122 = scmp.eq.s32.totalorder %s121, 0
      %p123 = pneg %p122
      // Predicated region
      $region75: #{segment_predictor_forward.1} parent=62 // pred_check
        _
      $region76: #{segment_predictor_forward.1} parent=62 // pred_check_branch
        %125 = sbr.rel (%p122) target = $region78
      $region77: #{segment_predictor_forward.1} parent=62 // pred_region
        %s126 = sand.u32 1, 7
        %s127 = ssub.s32 1, %s126
        %s128 = scalar_lea.vmem %s99, %s127
        %s129 = ssub.s32 1, %s126
        %s130 = scalar_lea.vmem %s100, %s129 [#allocation2]
        %s131 = sshllo.u32 0, %s126
        loop: start=0, step=1, limit=1
        $region79: #{segment_predictor_forward.1} parent=77 // loop_pre_header
          _
        $region80: #{segment_predictor_forward.1} parent=77 // loop_header
          %s133 = sphi 0, %s137
          %p134 = scmp.ge.s32.totalorder %s133, 1
          %s138 = sphi %s128, %s128
          %s139 = sphi %s130, %s130
        $region81: #{segment_predictor_forward.1} parent=77 // loop_header_branch
          %136 = sbr.rel (%p134) target = $region85
        $region82: #{segment_predictor_forward.1} parent=77 // loop_body
          %v140 = vld [vmem:[%s138] sm:%s131]
          %141 = vst [vmem:[%s139] sm:%s131] %v140
        $region83: #{segment_predictor_forward.1} parent=77 // loop_footer
          %s137 = sadd.s32 1, %s133
        $region84: #{segment_predictor_forward.1} parent=77 // loop_footer_branch
          %132 = sbr.rel target = $region80
        $region85: #{segment_predictor_forward.1} parent=77 // loop_exit
          _
      $region78: #{segment_predictor_forward.1} parent=62 // pred_fallthru
        _
    $region63: #{segment_predictor_forward.1} parent=58 // pred_fallthru
      _
    // Predicated region
    $region64: #{segment_predictor_forward.1} parent=58 // pred_check
      %p107 = pneg %p103
    $region65: #{segment_predictor_forward.1} parent=58 // pred_check_branch
      %109 = sbr.rel (%p107) target = $region67
    $region66: #{segment_predictor_forward.1} parent=58 // pred_region
      %s110 = sshllo.u32 0, 1
      loop: start=0, step=1, limit=1
      $region68: #{segment_predictor_forward.1} parent=66 // loop_pre_header
        _
      $region69: #{segment_predictor_forward.1} parent=66 // loop_header
        %s112 = sphi 0, %s116
        %p113 = scmp.ge.s32.totalorder %s112, 1
        %s117 = sphi %s99, %s99
        %s118 = sphi %s100, %s100
      $region70: #{segment_predictor_forward.1} parent=66 // loop_header_branch
        %115 = sbr.rel (%p113) target = $region74
      $region71: #{segment_predictor_forward.1} parent=66 // loop_body
        %v119 = vld [vmem:[%s117] sm:%s110]
        %120 = vst [vmem:[%s118] sm:%s110] %v119
      $region72: #{segment_predictor_forward.1} parent=66 // loop_footer
        %s116 = sadd.s32 1, %s112
      $region73: #{segment_predictor_forward.1} parent=66 // loop_footer_branch
        %111 = sbr.rel target = $region69
      $region74: #{segment_predictor_forward.1} parent=66 // loop_exit
        _
    $region67: #{segment_predictor_forward.1} parent=58 // pred_fallthru
      _
    // Predicated region
    $region86: #{segment_predictor_forward.1} parent=58 // pred_check
      _
    $region87: #{segment_predictor_forward.1} parent=58 // pred_check_branch
      %144 = sbr.rel (0) target = $region89
    $region88: #{segment_predictor_forward.1} parent=58 // pred_region
      %145 = vsyncadd %s101, 16
    $region89: #{segment_predictor_forward.1} parent=58 // pred_fallthru
      _
  $region59: #{segment_predictor_forward.1} parent=0 // pred_fallthru
    _
  %p146 = scmp.ge.s32.totalorder %s35, 0
  // Predicated region
  $region90: #{segment_predictor_forward.1} parent=0 // pred_check
    %p147 = pneg %p146
  $region91: #{segment_predictor_forward.1} parent=0 // pred_check_branch
    %149 = sbr.rel (%p147) target = $region93
  $region92: #{segment_predictor_forward.1} parent=0 // pred_region
    %s150 = scalar_lea.vmem %s1, %s35
    %s151 = scalar_lea.vmem [#allocation2], 2
    %s152 = scalar_lea.sflag [#allocation3], 2
    %p154 = scmp.lt.u32.totalorder 1, 8
    %p155 = pneg %p154
    // Predicated region
    $region94: #{segment_predictor_forward.1} parent=92 // pred_check
      _
    $region95: #{segment_predictor_forward.1} parent=92 // pred_check_branch
      %157 = sbr.rel (%p154) target = $region97
    $region96: #{segment_predictor_forward.1} parent=92 // pred_region
      %s172 = sand.u32 1, 7
      %p173 = scmp.eq.s32.totalorder %s172, 0
      %p174 = pneg %p173
      // Predicated region
      $region109: #{segment_predictor_forward.1} parent=96 // pred_check
        _
      $region110: #{segment_predictor_forward.1} parent=96 // pred_check_branch
        %176 = sbr.rel (%p173) target = $region112
      $region111: #{segment_predictor_forward.1} parent=96 // pred_region
        %s177 = sand.u32 1, 7
        %s178 = ssub.s32 1, %s177
        %s179 = scalar_lea.vmem %s150, %s178
        %s180 = ssub.s32 1, %s177
        %s181 = scalar_lea.vmem %s151, %s180 [#allocation2]
        %s182 = sshllo.u32 0, %s177
        loop: start=0, step=1, limit=1
        $region113: #{segment_predictor_forward.1} parent=111 // loop_pre_header
          _
        $region114: #{segment_predictor_forward.1} parent=111 // loop_header
          %s184 = sphi 0, %s188
          %p185 = scmp.ge.s32.totalorder %s184, 1
          %s189 = sphi %s179, %s179
          %s190 = sphi %s181, %s181
        $region115: #{segment_predictor_forward.1} parent=111 // loop_header_branch
          %187 = sbr.rel (%p185) target = $region119
        $region116: #{segment_predictor_forward.1} parent=111 // loop_body
          %v191 = vld [vmem:[%s189] sm:%s182]
          %192 = vst [vmem:[%s190] sm:%s182] %v191
        $region117: #{segment_predictor_forward.1} parent=111 // loop_footer
          %s188 = sadd.s32 1, %s184
        $region118: #{segment_predictor_forward.1} parent=111 // loop_footer_branch
          %183 = sbr.rel target = $region114
        $region119: #{segment_predictor_forward.1} parent=111 // loop_exit
          _
      $region112: #{segment_predictor_forward.1} parent=96 // pred_fallthru
        _
    $region97: #{segment_predictor_forward.1} parent=92 // pred_fallthru
      _
    // Predicated region
    $region98: #{segment_predictor_forward.1} parent=92 // pred_check
      %p158 = pneg %p154
    $region99: #{segment_predictor_forward.1} parent=92 // pred_check_branch
      %160 = sbr.rel (%p158) target = $region101
    $region100: #{segment_predictor_forward.1} parent=92 // pred_region
      %s161 = sshllo.u32 0, 1
      loop: start=0, step=1, limit=1
      $region102: #{segment_predictor_forward.1} parent=100 // loop_pre_header
        _
      $region103: #{segment_predictor_forward.1} parent=100 // loop_header
        %s163 = sphi 0, %s167
        %p164 = scmp.ge.s32.totalorder %s163, 1
        %s168 = sphi %s150, %s150
        %s169 = sphi %s151, %s151
      $region104: #{segment_predictor_forward.1} parent=100 // loop_header_branch
        %166 = sbr.rel (%p164) target = $region108
      $region105: #{segment_predictor_forward.1} parent=100 // loop_body
        %v170 = vld [vmem:[%s168] sm:%s161]
        %171 = vst [vmem:[%s169] sm:%s161] %v170
      $region106: #{segment_predictor_forward.1} parent=100 // loop_footer
        %s167 = sadd.s32 1, %s163
      $region107: #{segment_predictor_forward.1} parent=100 // loop_footer_branch
        %162 = sbr.rel target = $region103
      $region108: #{segment_predictor_forward.1} parent=100 // loop_exit
        _
    $region101: #{segment_predictor_forward.1} parent=92 // pred_fallthru
      _
    // Predicated region
    $region120: #{segment_predictor_forward.1} parent=92 // pred_check
      _
    $region121: #{segment_predictor_forward.1} parent=92 // pred_check_branch
      %195 = sbr.rel (0) target = $region123
    $region122: #{segment_predictor_forward.1} parent=92 // pred_region
      %196 = vsyncadd %s152, 16
    $region123: #{segment_predictor_forward.1} parent=92 // pred_fallthru
      _
  $region93: #{segment_predictor_forward.1} parent=0 // pred_fallthru
    _
  %p197 = scmp.ge.s32.totalorder %s37, 0
  // Predicated region
  $region124: #{segment_predictor_forward.1} parent=0 // pred_check
    %p198 = pneg %p197
  $region125: #{segment_predictor_forward.1} parent=0 // pred_check_branch
    %200 = sbr.rel (%p198) target = $region127
  $region126: #{segment_predictor_forward.1} parent=0 // pred_region
    %s201 = scalar_lea.vmem %s1, %s37
    %s202 = scalar_lea.vmem [#allocation2], 3
    %s203 = scalar_lea.sflag [#allocation3], 3
    %p205 = scmp.lt.u32.totalorder 1, 8
    %p206 = pneg %p205
    // Predicated region
    $region128: #{segment_predictor_forward.1} parent=126 // pred_check
      _
    $region129: #{segment_predictor_forward.1} parent=126 // pred_check_branch
      %208 = sbr.rel (%p205) target = $region131
    $region130: #{segment_predictor_forward.1} parent=126 // pred_region
      %s223 = sand.u32 1, 7
      %p224 = scmp.eq.s32.totalorder %s223, 0
      %p225 = pneg %p224
      // Predicated region
      $region143: #{segment_predictor_forward.1} parent=130 // pred_check
        _
      $region144: #{segment_predictor_forward.1} parent=130 // pred_check_branch
        %227 = sbr.rel (%p224) target = $region146
      $region145: #{segment_predictor_forward.1} parent=130 // pred_region
        %s228 = sand.u32 1, 7
        %s229 = ssub.s32 1, %s228
        %s230 = scalar_lea.vmem %s201, %s229
        %s231 = ssub.s32 1, %s228
        %s232 = scalar_lea.vmem %s202, %s231 [#allocation2]
        %s233 = sshllo.u32 0, %s228
        loop: start=0, step=1, limit=1
        $region147: #{segment_predictor_forward.1} parent=145 // loop_pre_header
          _
        $region148: #{segment_predictor_forward.1} parent=145 // loop_header
          %s235 = sphi 0, %s239
          %p236 = scmp.ge.s32.totalorder %s235, 1
          %s240 = sphi %s230, %s230
          %s241 = sphi %s232, %s232
        $region149: #{segment_predictor_forward.1} parent=145 // loop_header_branch
          %238 = sbr.rel (%p236) target = $region153
        $region150: #{segment_predictor_forward.1} parent=145 // loop_body
          %v242 = vld [vmem:[%s240] sm:%s233]
          %243 = vst [vmem:[%s241] sm:%s233] %v242
        $region151: #{segment_predictor_forward.1} parent=145 // loop_footer
          %s239 = sadd.s32 1, %s235
        $region152: #{segment_predictor_forward.1} parent=145 // loop_footer_branch
          %234 = sbr.rel target = $region148
        $region153: #{segment_predictor_forward.1} parent=145 // loop_exit
          _
      $region146: #{segment_predictor_forward.1} parent=130 // pred_fallthru
        _
    $region131: #{segment_predictor_forward.1} parent=126 // pred_fallthru
      _
    // Predicated region
    $region132: #{segment_predictor_forward.1} parent=126 // pred_check
      %p209 = pneg %p205
    $region133: #{segment_predictor_forward.1} parent=126 // pred_check_branch
      %211 = sbr.rel (%p209) target = $region135
    $region134: #{segment_predictor_forward.1} parent=126 // pred_region
      %s212 = sshllo.u32 0, 1
      loop: start=0, step=1, limit=1
      $region136: #{segment_predictor_forward.1} parent=134 // loop_pre_header
        _
      $region137: #{segment_predictor_forward.1} parent=134 // loop_header
        %s214 = sphi 0, %s218
        %p215 = scmp.ge.s32.totalorder %s214, 1
        %s219 = sphi %s201, %s201
        %s220 = sphi %s202, %s202
      $region138: #{segment_predictor_forward.1} parent=134 // loop_header_branch
        %217 = sbr.rel (%p215) target = $region142
      $region139: #{segment_predictor_forward.1} parent=134 // loop_body
        %v221 = vld [vmem:[%s219] sm:%s212]
        %222 = vst [vmem:[%s220] sm:%s212] %v221
      $region140: #{segment_predictor_forward.1} parent=134 // loop_footer
        %s218 = sadd.s32 1, %s214
      $region141: #{segment_predictor_forward.1} parent=134 // loop_footer_branch
        %213 = sbr.rel target = $region137
      $region142: #{segment_predictor_forward.1} parent=134 // loop_exit
        _
    $region135: #{segment_predictor_forward.1} parent=126 // pred_fallthru
      _
    // Predicated region
    $region154: #{segment_predictor_forward.1} parent=126 // pred_check
      _
    $region155: #{segment_predictor_forward.1} parent=126 // pred_check_branch
      %246 = sbr.rel (0) target = $region157
    $region156: #{segment_predictor_forward.1} parent=126 // pred_region
      %247 = vsyncadd %s203, 16
    $region157: #{segment_predictor_forward.1} parent=126 // pred_fallthru
      _
  $region127: #{segment_predictor_forward.1} parent=0 // pred_fallthru
    _
  %p248 = scmp.ge.s32.totalorder %s39, 0
  // Predicated region
  $region158: #{segment_predictor_forward.1} parent=0 // pred_check
    %p249 = pneg %p248
  $region159: #{segment_predictor_forward.1} parent=0 // pred_check_branch
    %251 = sbr.rel (%p249) target = $region161
  $region160: #{segment_predictor_forward.1} parent=0 // pred_region
    %s252 = scalar_lea.vmem %s1, %s39
    %s253 = scalar_lea.vmem [#allocation2], 4
    %s254 = scalar_lea.sflag [#allocation3], 4
    %p256 = scmp.lt.u32.totalorder 1, 8
    %p257 = pneg %p256
    // Predicated region
    $region162: #{segment_predictor_forward.1} parent=160 // pred_check
      _
    $region163: #{segment_predictor_forward.1} parent=160 // pred_check_branch
      %259 = sbr.rel (%p256) target = $region165
    $region164: #{segment_predictor_forward.1} parent=160 // pred_region
      %s274 = sand.u32 1, 7
      %p275 = scmp.eq.s32.totalorder %s274, 0
      %p276 = pneg %p275
      // Predicated region
      $region177: #{segment_predictor_forward.1} parent=164 // pred_check
        _
      $region178: #{segment_predictor_forward.1} parent=164 // pred_check_branch
        %278 = sbr.rel (%p275) target = $region180
      $region179: #{segment_predictor_forward.1} parent=164 // pred_region
        %s279 = sand.u32 1, 7
        %s280 = ssub.s32 1, %s279
        %s281 = scalar_lea.vmem %s252, %s280
        %s282 = ssub.s32 1, %s279
        %s283 = scalar_lea.vmem %s253, %s282 [#allocation2]
        %s284 = sshllo.u32 0, %s279
        loop: start=0, step=1, limit=1
        $region181: #{segment_predictor_forward.1} parent=179 // loop_pre_header
          _
        $region182: #{segment_predictor_forward.1} parent=179 // loop_header
          %s286 = sphi 0, %s290
          %p287 = scmp.ge.s32.totalorder %s286, 1
          %s291 = sphi %s281, %s281
          %s292 = sphi %s283, %s283
        $region183: #{segment_predictor_forward.1} parent=179 // loop_header_branch
          %289 = sbr.rel (%p287) target = $region187
        $region184: #{segment_predictor_forward.1} parent=179 // loop_body
          %v293 = vld [vmem:[%s291] sm:%s284]
          %294 = vst [vmem:[%s292] sm:%s284] %v293
        $region185: #{segment_predictor_forward.1} parent=179 // loop_footer
          %s290 = sadd.s32 1, %s286
        $region186: #{segment_predictor_forward.1} parent=179 // loop_footer_branch
          %285 = sbr.rel target = $region182
        $region187: #{segment_predictor_forward.1} parent=179 // loop_exit
          _
      $region180: #{segment_predictor_forward.1} parent=164 // pred_fallthru
        _
    $region165: #{segment_predictor_forward.1} parent=160 // pred_fallthru
      _
    // Predicated region
    $region166: #{segment_predictor_forward.1} parent=160 // pred_check
      %p260 = pneg %p256
    $region167: #{segment_predictor_forward.1} parent=160 // pred_check_branch
      %262 = sbr.rel (%p260) target = $region169
    $region168: #{segment_predictor_forward.1} parent=160 // pred_region
      %s263 = sshllo.u32 0, 1
      loop: start=0, step=1, limit=1
      $region170: #{segment_predictor_forward.1} parent=168 // loop_pre_header
        _
      $region171: #{segment_predictor_forward.1} parent=168 // loop_header
        %s265 = sphi 0, %s269
        %p266 = scmp.ge.s32.totalorder %s265, 1
        %s270 = sphi %s252, %s252
        %s271 = sphi %s253, %s253
      $region172: #{segment_predictor_forward.1} parent=168 // loop_header_branch
        %268 = sbr.rel (%p266) target = $region176
      $region173: #{segment_predictor_forward.1} parent=168 // loop_body
        %v272 = vld [vmem:[%s270] sm:%s263]
        %273 = vst [vmem:[%s271] sm:%s263] %v272
      $region174: #{segment_predictor_forward.1} parent=168 // loop_footer
        %s269 = sadd.s32 1, %s265
      $region175: #{segment_predictor_forward.1} parent=168 // loop_footer_branch
        %264 = sbr.rel target = $region171
      $region176: #{segment_predictor_forward.1} parent=168 // loop_exit
        _
    $region169: #{segment_predictor_forward.1} parent=160 // pred_fallthru
      _
    // Predicated region
    $region188: #{segment_predictor_forward.1} parent=160 // pred_check
      _
    $region189: #{segment_predictor_forward.1} parent=160 // pred_check_branch
      %297 = sbr.rel (0) target = $region191
    $region190: #{segment_predictor_forward.1} parent=160 // pred_region
      %298 = vsyncadd %s254, 16
    $region191: #{segment_predictor_forward.1} parent=160 // pred_fallthru
      _
  $region161: #{segment_predictor_forward.1} parent=0 // pred_fallthru
    _
  %p299 = scmp.ge.s32.totalorder %s41, 0
  // Predicated region
  $region192: #{segment_predictor_forward.1} parent=0 // pred_check
    %p300 = pneg %p299
  $region193: #{segment_predictor_forward.1} parent=0 // pred_check_branch
    %302 = sbr.rel (%p300) target = $region195
  $region194: #{segment_predictor_forward.1} parent=0 // pred_region
    %s303 = scalar_lea.vmem %s1, %s41
    %s304 = scalar_lea.vmem [#allocation2], 5
    %s305 = scalar_lea.sflag [#allocation3], 5
    %p307 = scmp.lt.u32.totalorder 1, 8
    %p308 = pneg %p307
    // Predicated region
    $region196: #{segment_predictor_forward.1} parent=194 // pred_check
      _
    $region197: #{segment_predictor_forward.1} parent=194 // pred_check_branch
      %310 = sbr.rel (%p307) target = $region199
    $region198: #{segment_predictor_forward.1} parent=194 // pred_region
      %s325 = sand.u32 1, 7
      %p326 = scmp.eq.s32.totalorder %s325, 0
      %p327 = pneg %p326
      // Predicated region
      $region211: #{segment_predictor_forward.1} parent=198 // pred_check
        _
      $region212: #{segment_predictor_forward.1} parent=198 // pred_check_branch
        %329 = sbr.rel (%p326) target = $region214
      $region213: #{segment_predictor_forward.1} parent=198 // pred_region
        %s330 = sand.u32 1, 7
        %s331 = ssub.s32 1, %s330
        %s332 = scalar_lea.vmem %s303, %s331
        %s333 = ssub.s32 1, %s330
        %s334 = scalar_lea.vmem %s304, %s333 [#allocation2]
        %s335 = sshllo.u32 0, %s330
        loop: start=0, step=1, limit=1
        $region215: #{segment_predictor_forward.1} parent=213 // loop_pre_header
          _
        $region216: #{segment_predictor_forward.1} parent=213 // loop_header
          %s337 = sphi 0, %s341
          %p338 = scmp.ge.s32.totalorder %s337, 1
          %s342 = sphi %s332, %s332
          %s343 = sphi %s334, %s334
        $region217: #{segment_predictor_forward.1} parent=213 // loop_header_branch
          %340 = sbr.rel (%p338) target = $region221
        $region218: #{segment_predictor_forward.1} parent=213 // loop_body
          %v344 = vld [vmem:[%s342] sm:%s335]
          %345 = vst [vmem:[%s343] sm:%s335] %v344
        $region219: #{segment_predictor_forward.1} parent=213 // loop_footer
          %s341 = sadd.s32 1, %s337
        $region220: #{segment_predictor_forward.1} parent=213 // loop_footer_branch
          %336 = sbr.rel target = $region216
        $region221: #{segment_predictor_forward.1} parent=213 // loop_exit
          _
      $region214: #{segment_predictor_forward.1} parent=198 // pred_fallthru
        _
    $region199: #{segment_predictor_forward.1} parent=194 // pred_fallthru
      _
    // Predicated region
    $region200: #{segment_predictor_forward.1} parent=194 // pred_check
      %p311 = pneg %p307
    $region201: #{segment_predictor_forward.1} parent=194 // pred_check_branch
      %313 = sbr.rel (%p311) target = $region203
    $region202: #{segment_predictor_forward.1} parent=194 // pred_region
      %s314 = sshllo.u32 0, 1
      loop: start=0, step=1, limit=1
      $region204: #{segment_predictor_forward.1} parent=202 // loop_pre_header
        _
      $region205: #{segment_predictor_forward.1} parent=202 // loop_header
        %s316 = sphi 0, %s320
        %p317 = scmp.ge.s32.totalorder %s316, 1
        %s321 = sphi %s303, %s303
        %s322 = sphi %s304, %s304
      $region206: #{segment_predictor_forward.1} parent=202 // loop_header_branch
        %319 = sbr.rel (%p317) target = $region210
      $region207: #{segment_predictor_forward.1} parent=202 // loop_body
        %v323 = vld [vmem:[%s321] sm:%s314]
        %324 = vst [vmem:[%s322] sm:%s314] %v323
      $region208: #{segment_predictor_forward.1} parent=202 // loop_footer
        %s320 = sadd.s32 1, %s316
      $region209: #{segment_predictor_forward.1} parent=202 // loop_footer_branch
        %315 = sbr.rel target = $region205
      $region210: #{segment_predictor_forward.1} parent=202 // loop_exit
        _
    $region203: #{segment_predictor_forward.1} parent=194 // pred_fallthru
      _
    // Predicated region
    $region222: #{segment_predictor_forward.1} parent=194 // pred_check
      _
    $region223: #{segment_predictor_forward.1} parent=194 // pred_check_branch
      %348 = sbr.rel (0) target = $region225
    $region224: #{segment_predictor_forward.1} parent=194 // pred_region
      %349 = vsyncadd %s305, 16
    $region225: #{segment_predictor_forward.1} parent=194 // pred_fallthru
      _
  $region195: #{segment_predictor_forward.1} parent=0 // pred_fallthru
    _
  %p350 = scmp.ge.s32.totalorder %s43, 0
  // Predicated region
  $region226: #{segment_predictor_forward.1} parent=0 // pred_check
    %p351 = pneg %p350
  $region227: #{segment_predictor_forward.1} parent=0 // pred_check_branch
    %353 = sbr.rel (%p351) target = $region229
  $region228: #{segment_predictor_forward.1} parent=0 // pred_region
    %s354 = scalar_lea.vmem %s1, %s43
    %s355 = scalar_lea.vmem [#allocation2], 6
    %s356 = scalar_lea.sflag [#allocation3], 6
    %p358 = scmp.lt.u32.totalorder 1, 8
    %p359 = pneg %p358
    // Predicated region
    $region230: #{segment_predictor_forward.1} parent=228 // pred_check
      _
    $region231: #{segment_predictor_forward.1} parent=228 // pred_check_branch
      %361 = sbr.rel (%p358) target = $region233
    $region232: #{segment_predictor_forward.1} parent=228 // pred_region
      %s376 = sand.u32 1, 7
      %p377 = scmp.eq.s32.totalorder %s376, 0
      %p378 = pneg %p377
      // Predicated region
      $region245: #{segment_predictor_forward.1} parent=232 // pred_check
        _
      $region246: #{segment_predictor_forward.1} parent=232 // pred_check_branch
        %380 = sbr.rel (%p377) target = $region248
      $region247: #{segment_predictor_forward.1} parent=232 // pred_region
        %s381 = sand.u32 1, 7
        %s382 = ssub.s32 1, %s381
        %s383 = scalar_lea.vmem %s354, %s382
        %s384 = ssub.s32 1, %s381
        %s385 = scalar_lea.vmem %s355, %s384 [#allocation2]
        %s386 = sshllo.u32 0, %s381
        loop: start=0, step=1, limit=1
        $region249: #{segment_predictor_forward.1} parent=247 // loop_pre_header
          _
        $region250: #{segment_predictor_forward.1} parent=247 // loop_header
          %s388 = sphi 0, %s392
          %p389 = scmp.ge.s32.totalorder %s388, 1
          %s393 = sphi %s383, %s383
          %s394 = sphi %s385, %s385
        $region251: #{segment_predictor_forward.1} parent=247 // loop_header_branch
          %391 = sbr.rel (%p389) target = $region255
        $region252: #{segment_predictor_forward.1} parent=247 // loop_body
          %v395 = vld [vmem:[%s393] sm:%s386]
          %396 = vst [vmem:[%s394] sm:%s386] %v395
        $region253: #{segment_predictor_forward.1} parent=247 // loop_footer
          %s392 = sadd.s32 1, %s388
        $region254: #{segment_predictor_forward.1} parent=247 // loop_footer_branch
          %387 = sbr.rel target = $region250
        $region255: #{segment_predictor_forward.1} parent=247 // loop_exit
          _
      $region248: #{segment_predictor_forward.1} parent=232 // pred_fallthru
        _
    $region233: #{segment_predictor_forward.1} parent=228 // pred_fallthru
      _
    // Predicated region
    $region234: #{segment_predictor_forward.1} parent=228 // pred_check
      %p362 = pneg %p358
    $region235: #{segment_predictor_forward.1} parent=228 // pred_check_branch
      %364 = sbr.rel (%p362) target = $region237
    $region236: #{segment_predictor_forward.1} parent=228 // pred_region
      %s365 = sshllo.u32 0, 1
      loop: start=0, step=1, limit=1
      $region238: #{segment_predictor_forward.1} parent=236 // loop_pre_header
        _
      $region239: #{segment_predictor_forward.1} parent=236 // loop_header
        %s367 = sphi 0, %s371
        %p368 = scmp.ge.s32.totalorder %s367, 1
        %s372 = sphi %s354, %s354
        %s373 = sphi %s355, %s355
      $region240: #{segment_predictor_forward.1} parent=236 // loop_header_branch
        %370 = sbr.rel (%p368) target = $region244
      $region241: #{segment_predictor_forward.1} parent=236 // loop_body
        %v374 = vld [vmem:[%s372] sm:%s365]
        %375 = vst [vmem:[%s373] sm:%s365] %v374
      $region242: #{segment_predictor_forward.1} parent=236 // loop_footer
        %s371 = sadd.s32 1, %s367
      $region243: #{segment_predictor_forward.1} parent=236 // loop_footer_branch
        %366 = sbr.rel target = $region239
      $region244: #{segment_predictor_forward.1} parent=236 // loop_exit
        _
    $region237: #{segment_predictor_forward.1} parent=228 // pred_fallthru
      _
    // Predicated region
    $region256: #{segment_predictor_forward.1} parent=228 // pred_check
      _
    $region257: #{segment_predictor_forward.1} parent=228 // pred_check_branch
      %399 = sbr.rel (0) target = $region259
    $region258: #{segment_predictor_forward.1} parent=228 // pred_region
      %400 = vsyncadd %s356, 16
    $region259: #{segment_predictor_forward.1} parent=228 // pred_fallthru
      _
  $region229: #{segment_predictor_forward.1} parent=0 // pred_fallthru
    _
  %p401 = scmp.ge.s32.totalorder %s45, 0
  // Predicated region
  $region260: #{segment_predictor_forward.1} parent=0 // pred_check
    %p402 = pneg %p401
  $region261: #{segment_predictor_forward.1} parent=0 // pred_check_branch
    %404 = sbr.rel (%p402) target = $region263
  $region262: #{segment_predictor_forward.1} parent=0 // pred_region
    %s405 = scalar_lea.vmem %s1, %s45
    %s406 = scalar_lea.vmem [#allocation2], 7
    %s407 = scalar_lea.sflag [#allocation3], 7
    %p409 = scmp.lt.u32.totalorder 1, 8
    %p410 = pneg %p409
    // Predicated region
    $region264: #{segment_predictor_forward.1} parent=262 // pred_check
      _
    $region265: #{segment_predictor_forward.1} parent=262 // pred_check_branch
      %412 = sbr.rel (%p409) target = $region267
    $region266: #{segment_predictor_forward.1} parent=262 // pred_region
      %s427 = sand.u32 1, 7
      %p428 = scmp.eq.s32.totalorder %s427, 0
      %p429 = pneg %p428
      // Predicated region
      $region279: #{segment_predictor_forward.1} parent=266 // pred_check
        _
      $region280: #{segment_predictor_forward.1} parent=266 // pred_check_branch
        %431 = sbr.rel (%p428) target = $region282
      $region281: #{segment_predictor_forward.1} parent=266 // pred_region
        %s432 = sand.u32 1, 7
        %s433 = ssub.s32 1, %s432
        %s434 = scalar_lea.vmem %s405, %s433
        %s435 = ssub.s32 1, %s432
        %s436 = scalar_lea.vmem %s406, %s435 [#allocation2]
        %s437 = sshllo.u32 0, %s432
        loop: start=0, step=1, limit=1
        $region283: #{segment_predictor_forward.1} parent=281 // loop_pre_header
          _
        $region284: #{segment_predictor_forward.1} parent=281 // loop_header
          %s439 = sphi 0, %s443
          %p440 = scmp.ge.s32.totalorder %s439, 1
          %s444 = sphi %s434, %s434
          %s445 = sphi %s436, %s436
        $region285: #{segment_predictor_forward.1} parent=281 // loop_header_branch
          %442 = sbr.rel (%p440) target = $region289
        $region286: #{segment_predictor_forward.1} parent=281 // loop_body
          %v446 = vld [vmem:[%s444] sm:%s437]
          %447 = vst [vmem:[%s445] sm:%s437] %v446
        $region287: #{segment_predictor_forward.1} parent=281 // loop_footer
          %s443 = sadd.s32 1, %s439
        $region288: #{segment_predictor_forward.1} parent=281 // loop_footer_branch
          %438 = sbr.rel target = $region284
        $region289: #{segment_predictor_forward.1} parent=281 // loop_exit
          _
      $region282: #{segment_predictor_forward.1} parent=266 // pred_fallthru
        _
    $region267: #{segment_predictor_forward.1} parent=262 // pred_fallthru
      _
    // Predicated region
    $region268: #{segment_predictor_forward.1} parent=262 // pred_check
      %p413 = pneg %p409
    $region269: #{segment_predictor_forward.1} parent=262 // pred_check_branch
      %415 = sbr.rel (%p413) target = $region271
    $region270: #{segment_predictor_forward.1} parent=262 // pred_region
      %s416 = sshllo.u32 0, 1
      loop: start=0, step=1, limit=1
      $region272: #{segment_predictor_forward.1} parent=270 // loop_pre_header
        _
      $region273: #{segment_predictor_forward.1} parent=270 // loop_header
        %s418 = sphi 0, %s422
        %p419 = scmp.ge.s32.totalorder %s418, 1
        %s423 = sphi %s405, %s405
        %s424 = sphi %s406, %s406
      $region274: #{segment_predictor_forward.1} parent=270 // loop_header_branch
        %421 = sbr.rel (%p419) target = $region278
      $region275: #{segment_predictor_forward.1} parent=270 // loop_body
        %v425 = vld [vmem:[%s423] sm:%s416]
        %426 = vst [vmem:[%s424] sm:%s416] %v425
      $region276: #{segment_predictor_forward.1} parent=270 // loop_footer
        %s422 = sadd.s32 1, %s418
      $region277: #{segment_predictor_forward.1} parent=270 // loop_footer_branch
        %417 = sbr.rel target = $region273
      $region278: #{segment_predictor_forward.1} parent=270 // loop_exit
        _
    $region271: #{segment_predictor_forward.1} parent=262 // pred_fallthru
      _
    // Predicated region
    $region290: #{segment_predictor_forward.1} parent=262 // pred_check
      _
    $region291: #{segment_predictor_forward.1} parent=262 // pred_check_branch
      %450 = sbr.rel (0) target = $region293
    $region292: #{segment_predictor_forward.1} parent=262 // pred_region
      %451 = vsyncadd %s407, 16
    $region293: #{segment_predictor_forward.1} parent=262 // pred_fallthru
      _
  $region263: #{segment_predictor_forward.1} parent=0 // pred_fallthru
    _
  loop: start=1, step=1, limit=3
  $region294: #{segment_predictor_forward.1} parent=0 // loop_pre_header
    _
  $region295: #{segment_predictor_forward.1} parent=0 // loop_header
    %s453 = sphi 1, %s457
    %p454 = scmp.ge.s32.totalorder %s453, 3
  $region296: #{segment_predictor_forward.1} parent=0 // loop_header_branch
    %456 = sbr.rel (%p454) target = $region300
  $region297: #{segment_predictor_forward.1} parent=0 // loop_body
    %s458 = smul.u32 %s453, 8
    %s459 = sadd.s32 %s30, %s458
    %s460 = ssub.s32 %s459, 8
    %s461 = sld [smem:[#allocation5 + %s460]]
    %s462 = sadd.s32 %s459, 4294967289
    %s463 = sld [smem:[#allocation5 + %s462]]
    %s464 = sadd.s32 %s459, 4294967290
    %s465 = sld [smem:[#allocation5 + %s464]]
    %s466 = sadd.s32 %s459, 4294967291
    %s467 = sld [smem:[#allocation5 + %s466]]
    %s468 = sadd.s32 %s459, 4294967292
    %s469 = sld [smem:[#allocation5 + %s468]]
    %s470 = sadd.s32 %s459, 4294967293
    %s471 = sld [smem:[#allocation5 + %s470]]
    %s472 = sadd.s32 %s459, 4294967294
    %s473 = sld [smem:[#allocation5 + %s472]]
    %s474 = sadd.s32 %s459, 4294967295
    %s475 = sld [smem:[#allocation5 + %s474]]
    %s476 = sld [smem:[#allocation5 + %s459]]
    %s477 = sadd.s32 %s459, 1
    %s478 = sld [smem:[#allocation5 + %s477]]
    %s479 = sadd.s32 %s459, 2
    %s480 = sld [smem:[#allocation5 + %s479]]
    %s481 = sadd.s32 %s459, 3
    %s482 = sld [smem:[#allocation5 + %s481]]
    %s483 = sadd.s32 %s459, 4
    %s484 = sld [smem:[#allocation5 + %s483]]
    %s485 = sadd.s32 %s459, 5
    %s486 = sld [smem:[#allocation5 + %s485]]
    %s487 = sadd.s32 %s459, 6
    %s488 = sld [smem:[#allocation5 + %s487]]
    %s489 = sadd.s32 %s459, 7
    %s490 = sld [smem:[#allocation5 + %s489]]
    %p491 = scmp.ge.s32.totalorder %s461, 0
    // Predicated region
    $region301: #{segment_predictor_forward.1} parent=297 // pred_check
      %p492 = pneg %p491
    $region302: #{segment_predictor_forward.1} parent=297 // pred_check_branch
      %494 = sbr.rel (%p492) target = $region304
    $region303: #{segment_predictor_forward.1} parent=297 // pred_region
      %s495 = smul.u32 1, 1
      %s496 = sshll.u32 %s495, 4
      %497 = dma.done [#allocation3], %s496
    $region304: #{segment_predictor_forward.1} parent=297 // pred_fallthru
      _
    %p498 = scmp.ge.s32.totalorder %s476, 0
    // Predicated region
    $region305: #{segment_predictor_forward.1} parent=297 // pred_check
      %p499 = pneg %p498
    $region306: #{segment_predictor_forward.1} parent=297 // pred_check_branch
      %501 = sbr.rel (%p499) target = $region308
    $region307: #{segment_predictor_forward.1} parent=297 // pred_region
      %s502 = scalar_lea.vmem %s1, %s476
      %s503 = scalar_lea.vmem [#allocation2], %s458
      %p505 = scmp.lt.u32.totalorder 1, 8
      %p506 = pneg %p505
      // Predicated region
      $region309: #{segment_predictor_forward.1} parent=307 // pred_check
        _
      $region310: #{segment_predictor_forward.1} parent=307 // pred_check_branch
        %508 = sbr.rel (%p505) target = $region312
      $region311: #{segment_predictor_forward.1} parent=307 // pred_region
        %s523 = sand.u32 1, 7
        %p524 = scmp.eq.s32.totalorder %s523, 0
        %p525 = pneg %p524
        // Predicated region
        $region324: #{segment_predictor_forward.1} parent=311 // pred_check
          _
        $region325: #{segment_predictor_forward.1} parent=311 // pred_check_branch
          %527 = sbr.rel (%p524) target = $region327
        $region326: #{segment_predictor_forward.1} parent=311 // pred_region
          %s528 = sand.u32 1, 7
          %s529 = ssub.s32 1, %s528
          %s530 = scalar_lea.vmem %s502, %s529
          %s531 = ssub.s32 1, %s528
          %s532 = scalar_lea.vmem %s503, %s531 [#allocation2]
          %s533 = sshllo.u32 0, %s528
          loop: start=0, step=1, limit=1
          $region328: #{segment_predictor_forward.1} parent=326 // loop_pre_header
            _
          $region329: #{segment_predictor_forward.1} parent=326 // loop_header
            %s535 = sphi 0, %s539
            %p536 = scmp.ge.s32.totalorder %s535, 1
            %s540 = sphi %s530, %s530
            %s541 = sphi %s532, %s532
          $region330: #{segment_predictor_forward.1} parent=326 // loop_header_branch
            %538 = sbr.rel (%p536) target = $region334
          $region331: #{segment_predictor_forward.1} parent=326 // loop_body
            %v542 = vld [vmem:[%s540] sm:%s533]
            %543 = vst [vmem:[%s541] sm:%s533] %v542
          $region332: #{segment_predictor_forward.1} parent=326 // loop_footer
            %s539 = sadd.s32 1, %s535
          $region333: #{segment_predictor_forward.1} parent=326 // loop_footer_branch
            %534 = sbr.rel target = $region329
          $region334: #{segment_predictor_forward.1} parent=326 // loop_exit
            _
        $region327: #{segment_predictor_forward.1} parent=311 // pred_fallthru
          _
      $region312: #{segment_predictor_forward.1} parent=307 // pred_fallthru
        _
      // Predicated region
      $region313: #{segment_predictor_forward.1} parent=307 // pred_check
        %p509 = pneg %p505
      $region314: #{segment_predictor_forward.1} parent=307 // pred_check_branch
        %511 = sbr.rel (%p509) target = $region316
      $region315: #{segment_predictor_forward.1} parent=307 // pred_region
        %s512 = sshllo.u32 0, 1
        loop: start=0, step=1, limit=1
        $region317: #{segment_predictor_forward.1} parent=315 // loop_pre_header
          _
        $region318: #{segment_predictor_forward.1} parent=315 // loop_header
          %s514 = sphi 0, %s518
          %p515 = scmp.ge.s32.totalorder %s514, 1
          %s519 = sphi %s502, %s502
          %s520 = sphi %s503, %s503
        $region319: #{segment_predictor_forward.1} parent=315 // loop_header_branch
          %517 = sbr.rel (%p515) target = $region323
        $region320: #{segment_predictor_forward.1} parent=315 // loop_body
          %v521 = vld [vmem:[%s519] sm:%s512]
          %522 = vst [vmem:[%s520] sm:%s512] %v521
        $region321: #{segment_predictor_forward.1} parent=315 // loop_footer
          %s518 = sadd.s32 1, %s514
        $region322: #{segment_predictor_forward.1} parent=315 // loop_footer_branch
          %513 = sbr.rel target = $region318
        $region323: #{segment_predictor_forward.1} parent=315 // loop_exit
          _
      $region316: #{segment_predictor_forward.1} parent=307 // pred_fallthru
        _
      // Predicated region
      $region335: #{segment_predictor_forward.1} parent=307 // pred_check
        _
      $region336: #{segment_predictor_forward.1} parent=307 // pred_check_branch
        %546 = sbr.rel (0) target = $region338
      $region337: #{segment_predictor_forward.1} parent=307 // pred_region
        %547 = vsyncadd [#allocation3], 16
      $region338: #{segment_predictor_forward.1} parent=307 // pred_fallthru
        _
    $region308: #{segment_predictor_forward.1} parent=297 // pred_fallthru
      _
    %p548 = scmp.ge.s32.totalorder %s463, 0
    // Predicated region
    $region339: #{segment_predictor_forward.1} parent=297 // pred_check
      %p549 = pneg %p548
    $region340: #{segment_predictor_forward.1} parent=297 // pred_check_branch
      %551 = sbr.rel (%p549) target = $region342
    $region341: #{segment_predictor_forward.1} parent=297 // pred_region
      %s552 = scalar_lea.sflag [#allocation3], 1
      %s553 = smul.u32 1, 1
      %s554 = sshll.u32 %s553, 4
      %555 = dma.done %s552, %s554
    $region342: #{segment_predictor_forward.1} parent=297 // pred_fallthru
      _
    %s556 = sadd.s32 %s458, 1
    %p557 = scmp.ge.s32.totalorder %s478, 0
    // Predicated region
    $region343: #{segment_predictor_forward.1} parent=297 // pred_check
      %p558 = pneg %p557
    $region344: #{segment_predictor_forward.1} parent=297 // pred_check_branch
      %560 = sbr.rel (%p558) target = $region346
    $region345: #{segment_predictor_forward.1} parent=297 // pred_region
      %s561 = scalar_lea.vmem %s1, %s478
      %s562 = scalar_lea.vmem [#allocation2], %s556
      %s563 = scalar_lea.sflag [#allocation3], 1
      %p565 = scmp.lt.u32.totalorder 1, 8
      %p566 = pneg %p565
      // Predicated region
      $region347: #{segment_predictor_forward.1} parent=345 // pred_check
        _
      $region348: #{segment_predictor_forward.1} parent=345 // pred_check_branch
        %568 = sbr.rel (%p565) target = $region350
      $region349: #{segment_predictor_forward.1} parent=345 // pred_region
        %s583 = sand.u32 1, 7
        %p584 = scmp.eq.s32.totalorder %s583, 0
        %p585 = pneg %p584
        // Predicated region
        $region362: #{segment_predictor_forward.1} parent=349 // pred_check
          _
        $region363: #{segment_predictor_forward.1} parent=349 // pred_check_branch
          %587 = sbr.rel (%p584) target = $region365
        $region364: #{segment_predictor_forward.1} parent=349 // pred_region
          %s588 = sand.u32 1, 7
          %s589 = ssub.s32 1, %s588
          %s590 = scalar_lea.vmem %s561, %s589
          %s591 = ssub.s32 1, %s588
          %s592 = scalar_lea.vmem %s562, %s591 [#allocation2]
          %s593 = sshllo.u32 0, %s588
          loop: start=0, step=1, limit=1
          $region366: #{segment_predictor_forward.1} parent=364 // loop_pre_header
            _
          $region367: #{segment_predictor_forward.1} parent=364 // loop_header
            %s595 = sphi 0, %s599
            %p596 = scmp.ge.s32.totalorder %s595, 1
            %s600 = sphi %s590, %s590
            %s601 = sphi %s592, %s592
          $region368: #{segment_predictor_forward.1} parent=364 // loop_header_branch
            %598 = sbr.rel (%p596) target = $region372
          $region369: #{segment_predictor_forward.1} parent=364 // loop_body
            %v602 = vld [vmem:[%s600] sm:%s593]
            %603 = vst [vmem:[%s601] sm:%s593] %v602
          $region370: #{segment_predictor_forward.1} parent=364 // loop_footer
            %s599 = sadd.s32 1, %s595
          $region371: #{segment_predictor_forward.1} parent=364 // loop_footer_branch
            %594 = sbr.rel target = $region367
          $region372: #{segment_predictor_forward.1} parent=364 // loop_exit
            _
        $region365: #{segment_predictor_forward.1} parent=349 // pred_fallthru
          _
      $region350: #{segment_predictor_forward.1} parent=345 // pred_fallthru
        _
      // Predicated region
      $region351: #{segment_predictor_forward.1} parent=345 // pred_check
        %p569 = pneg %p565
      $region352: #{segment_predictor_forward.1} parent=345 // pred_check_branch
        %571 = sbr.rel (%p569) target = $region354
      $region353: #{segment_predictor_forward.1} parent=345 // pred_region
        %s572 = sshllo.u32 0, 1
        loop: start=0, step=1, limit=1
        $region355: #{segment_predictor_forward.1} parent=353 // loop_pre_header
          _
        $region356: #{segment_predictor_forward.1} parent=353 // loop_header
          %s574 = sphi 0, %s578
          %p575 = scmp.ge.s32.totalorder %s574, 1
          %s579 = sphi %s561, %s561
          %s580 = sphi %s562, %s562
        $region357: #{segment_predictor_forward.1} parent=353 // loop_header_branch
          %577 = sbr.rel (%p575) target = $region361
        $region358: #{segment_predictor_forward.1} parent=353 // loop_body
          %v581 = vld [vmem:[%s579] sm:%s572]
          %582 = vst [vmem:[%s580] sm:%s572] %v581
        $region359: #{segment_predictor_forward.1} parent=353 // loop_footer
          %s578 = sadd.s32 1, %s574
        $region360: #{segment_predictor_forward.1} parent=353 // loop_footer_branch
          %573 = sbr.rel target = $region356
        $region361: #{segment_predictor_forward.1} parent=353 // loop_exit
          _
      $region354: #{segment_predictor_forward.1} parent=345 // pred_fallthru
        _
      // Predicated region
      $region373: #{segment_predictor_forward.1} parent=345 // pred_check
        _
      $region374: #{segment_predictor_forward.1} parent=345 // pred_check_branch
        %606 = sbr.rel (0) target = $region376
      $region375: #{segment_predictor_forward.1} parent=345 // pred_region
        %607 = vsyncadd %s563, 16
      $region376: #{segment_predictor_forward.1} parent=345 // pred_fallthru
        _
    $region346: #{segment_predictor_forward.1} parent=297 // pred_fallthru
      _
    %p608 = scmp.ge.s32.totalorder %s465, 0
    // Predicated region
    $region377: #{segment_predictor_forward.1} parent=297 // pred_check
      %p609 = pneg %p608
    $region378: #{segment_predictor_forward.1} parent=297 // pred_check_branch
      %611 = sbr.rel (%p609) target = $region380
    $region379: #{segment_predictor_forward.1} parent=297 // pred_region
      %s612 = scalar_lea.sflag [#allocation3], 2
      %s613 = smul.u32 1, 1
      %s614 = sshll.u32 %s613, 4
      %615 = dma.done %s612, %s614
    $region380: #{segment_predictor_forward.1} parent=297 // pred_fallthru
      _
    %s616 = sadd.s32 %s458, 2
    %p617 = scmp.ge.s32.totalorder %s480, 0
    // Predicated region
    $region381: #{segment_predictor_forward.1} parent=297 // pred_check
      %p618 = pneg %p617
    $region382: #{segment_predictor_forward.1} parent=297 // pred_check_branch
      %620 = sbr.rel (%p618) target = $region384
    $region383: #{segment_predictor_forward.1} parent=297 // pred_region
      %s621 = scalar_lea.vmem %s1, %s480
      %s622 = scalar_lea.vmem [#allocation2], %s616
      %s623 = scalar_lea.sflag [#allocation3], 2
      %p625 = scmp.lt.u32.totalorder 1, 8
      %p626 = pneg %p625
      // Predicated region
      $region385: #{segment_predictor_forward.1} parent=383 // pred_check
        _
      $region386: #{segment_predictor_forward.1} parent=383 // pred_check_branch
        %628 = sbr.rel (%p625) target = $region388
      $region387: #{segment_predictor_forward.1} parent=383 // pred_region
        %s643 = sand.u32 1, 7
        %p644 = scmp.eq.s32.totalorder %s643, 0
        %p645 = pneg %p644
        // Predicated region
        $region400: #{segment_predictor_forward.1} parent=387 // pred_check
          _
        $region401: #{segment_predictor_forward.1} parent=387 // pred_check_branch
          %647 = sbr.rel (%p644) target = $region403
        $region402: #{segment_predictor_forward.1} parent=387 // pred_region
          %s648 = sand.u32 1, 7
          %s649 = ssub.s32 1, %s648
          %s650 = scalar_lea.vmem %s621, %s649
          %s651 = ssub.s32 1, %s648
          %s652 = scalar_lea.vmem %s622, %s651 [#allocation2]
          %s653 = sshllo.u32 0, %s648
          loop: start=0, step=1, limit=1
          $region404: #{segment_predictor_forward.1} parent=402 // loop_pre_header
            _
          $region405: #{segment_predictor_forward.1} parent=402 // loop_header
            %s655 = sphi 0, %s659
            %p656 = scmp.ge.s32.totalorder %s655, 1
            %s660 = sphi %s650, %s650
            %s661 = sphi %s652, %s652
          $region406: #{segment_predictor_forward.1} parent=402 // loop_header_branch
            %658 = sbr.rel (%p656) target = $region410
          $region407: #{segment_predictor_forward.1} parent=402 // loop_body
            %v662 = vld [vmem:[%s660] sm:%s653]
            %663 = vst [vmem:[%s661] sm:%s653] %v662
          $region408: #{segment_predictor_forward.1} parent=402 // loop_footer
            %s659 = sadd.s32 1, %s655
          $region409: #{segment_predictor_forward.1} parent=402 // loop_footer_branch
            %654 = sbr.rel target = $region405
          $region410: #{segment_predictor_forward.1} parent=402 // loop_exit
            _
        $region403: #{segment_predictor_forward.1} parent=387 // pred_fallthru
          _
      $region388: #{segment_predictor_forward.1} parent=383 // pred_fallthru
        _
      // Predicated region
      $region389: #{segment_predictor_forward.1} parent=383 // pred_check
        %p629 = pneg %p625
      $region390: #{segment_predictor_forward.1} parent=383 // pred_check_branch
        %631 = sbr.rel (%p629) target = $region392
      $region391: #{segment_predictor_forward.1} parent=383 // pred_region
        %s632 = sshllo.u32 0, 1
        loop: start=0, step=1, limit=1
        $region393: #{segment_predictor_forward.1} parent=391 // loop_pre_header
          _
        $region394: #{segment_predictor_forward.1} parent=391 // loop_header
          %s634 = sphi 0, %s638
          %p635 = scmp.ge.s32.totalorder %s634, 1
          %s639 = sphi %s621, %s621
          %s640 = sphi %s622, %s622
        $region395: #{segment_predictor_forward.1} parent=391 // loop_header_branch
          %637 = sbr.rel (%p635) target = $region399
        $region396: #{segment_predictor_forward.1} parent=391 // loop_body
          %v641 = vld [vmem:[%s639] sm:%s632]
          %642 = vst [vmem:[%s640] sm:%s632] %v641
        $region397: #{segment_predictor_forward.1} parent=391 // loop_footer
          %s638 = sadd.s32 1, %s634
        $region398: #{segment_predictor_forward.1} parent=391 // loop_footer_branch
          %633 = sbr.rel target = $region394
        $region399: #{segment_predictor_forward.1} parent=391 // loop_exit
          _
      $region392: #{segment_predictor_forward.1} parent=383 // pred_fallthru
        _
      // Predicated region
      $region411: #{segment_predictor_forward.1} parent=383 // pred_check
        _
      $region412: #{segment_predictor_forward.1} parent=383 // pred_check_branch
        %666 = sbr.rel (0) target = $region414
      $region413: #{segment_predictor_forward.1} parent=383 // pred_region
        %667 = vsyncadd %s623, 16
      $region414: #{segment_predictor_forward.1} parent=383 // pred_fallthru
        _
    $region384: #{segment_predictor_forward.1} parent=297 // pred_fallthru
      _
    %p668 = scmp.ge.s32.totalorder %s467, 0
    // Predicated region
    $region415: #{segment_predictor_forward.1} parent=297 // pred_check
      %p669 = pneg %p668
    $region416: #{segment_predictor_forward.1} parent=297 // pred_check_branch
      %671 = sbr.rel (%p669) target = $region418
    $region417: #{segment_predictor_forward.1} parent=297 // pred_region
      %s672 = scalar_lea.sflag [#allocation3], 3
      %s673 = smul.u32 1, 1
      %s674 = sshll.u32 %s673, 4
      %675 = dma.done %s672, %s674
    $region418: #{segment_predictor_forward.1} parent=297 // pred_fallthru
      _
    %s676 = sadd.s32 %s458, 3
    %p677 = scmp.ge.s32.totalorder %s482, 0
    // Predicated region
    $region419: #{segment_predictor_forward.1} parent=297 // pred_check
      %p678 = pneg %p677
    $region420: #{segment_predictor_forward.1} parent=297 // pred_check_branch
      %680 = sbr.rel (%p678) target = $region422
    $region421: #{segment_predictor_forward.1} parent=297 // pred_region
      %s681 = scalar_lea.vmem %s1, %s482
      %s682 = scalar_lea.vmem [#allocation2], %s676
      %s683 = scalar_lea.sflag [#allocation3], 3
      %p685 = scmp.lt.u32.totalorder 1, 8
      %p686 = pneg %p685
      // Predicated region
      $region423: #{segment_predictor_forward.1} parent=421 // pred_check
        _
      $region424: #{segment_predictor_forward.1} parent=421 // pred_check_branch
        %688 = sbr.rel (%p685) target = $region426
      $region425: #{segment_predictor_forward.1} parent=421 // pred_region
        %s703 = sand.u32 1, 7
        %p704 = scmp.eq.s32.totalorder %s703, 0
        %p705 = pneg %p704
        // Predicated region
        $region438: #{segment_predictor_forward.1} parent=425 // pred_check
          _
        $region439: #{segment_predictor_forward.1} parent=425 // pred_check_branch
          %707 = sbr.rel (%p704) target = $region441
        $region440: #{segment_predictor_forward.1} parent=425 // pred_region
          %s708 = sand.u32 1, 7
          %s709 = ssub.s32 1, %s708
          %s710 = scalar_lea.vmem %s681, %s709
          %s711 = ssub.s32 1, %s708
          %s712 = scalar_lea.vmem %s682, %s711 [#allocation2]
          %s713 = sshllo.u32 0, %s708
          loop: start=0, step=1, limit=1
          $region442: #{segment_predictor_forward.1} parent=440 // loop_pre_header
            _
          $region443: #{segment_predictor_forward.1} parent=440 // loop_header
            %s715 = sphi 0, %s719
            %p716 = scmp.ge.s32.totalorder %s715, 1
            %s720 = sphi %s710, %s710
            %s721 = sphi %s712, %s712
          $region444: #{segment_predictor_forward.1} parent=440 // loop_header_branch
            %718 = sbr.rel (%p716) target = $region448
          $region445: #{segment_predictor_forward.1} parent=440 // loop_body
            %v722 = vld [vmem:[%s720] sm:%s713]
            %723 = vst [vmem:[%s721] sm:%s713] %v722
          $region446: #{segment_predictor_forward.1} parent=440 // loop_footer
            %s719 = sadd.s32 1, %s715
          $region447: #{segment_predictor_forward.1} parent=440 // loop_footer_branch
            %714 = sbr.rel target = $region443
          $region448: #{segment_predictor_forward.1} parent=440 // loop_exit
            _
        $region441: #{segment_predictor_forward.1} parent=425 // pred_fallthru
          _
      $region426: #{segment_predictor_forward.1} parent=421 // pred_fallthru
        _
      // Predicated region
      $region427: #{segment_predictor_forward.1} parent=421 // pred_check
        %p689 = pneg %p685
      $region428: #{segment_predictor_forward.1} parent=421 // pred_check_branch
        %691 = sbr.rel (%p689) target = $region430
      $region429: #{segment_predictor_forward.1} parent=421 // pred_region
        %s692 = sshllo.u32 0, 1
        loop: start=0, step=1, limit=1
        $region431: #{segment_predictor_forward.1} parent=429 // loop_pre_header
          _
        $region432: #{segment_predictor_forward.1} parent=429 // loop_header
          %s694 = sphi 0, %s698
          %p695 = scmp.ge.s32.totalorder %s694, 1
          %s699 = sphi %s681, %s681
          %s700 = sphi %s682, %s682
        $region433: #{segment_predictor_forward.1} parent=429 // loop_header_branch
          %697 = sbr.rel (%p695) target = $region437
        $region434: #{segment_predictor_forward.1} parent=429 // loop_body
          %v701 = vld [vmem:[%s699] sm:%s692]
          %702 = vst [vmem:[%s700] sm:%s692] %v701
        $region435: #{segment_predictor_forward.1} parent=429 // loop_footer
          %s698 = sadd.s32 1, %s694
        $region436: #{segment_predictor_forward.1} parent=429 // loop_footer_branch
          %693 = sbr.rel target = $region432
        $region437: #{segment_predictor_forward.1} parent=429 // loop_exit
          _
      $region430: #{segment_predictor_forward.1} parent=421 // pred_fallthru
        _
      // Predicated region
      $region449: #{segment_predictor_forward.1} parent=421 // pred_check
        _
      $region450: #{segment_predictor_forward.1} parent=421 // pred_check_branch
        %726 = sbr.rel (0) target = $region452
      $region451: #{segment_predictor_forward.1} parent=421 // pred_region
        %727 = vsyncadd %s683, 16
      $region452: #{segment_predictor_forward.1} parent=421 // pred_fallthru
        _
    $region422: #{segment_predictor_forward.1} parent=297 // pred_fallthru
      _
    %p728 = scmp.ge.s32.totalorder %s469, 0
    // Predicated region
    $region453: #{segment_predictor_forward.1} parent=297 // pred_check
      %p729 = pneg %p728
    $region454: #{segment_predictor_forward.1} parent=297 // pred_check_branch
      %731 = sbr.rel (%p729) target = $region456
    $region455: #{segment_predictor_forward.1} parent=297 // pred_region
      %s732 = scalar_lea.sflag [#allocation3], 4
      %s733 = smul.u32 1, 1
      %s734 = sshll.u32 %s733, 4
      %735 = dma.done %s732, %s734
    $region456: #{segment_predictor_forward.1} parent=297 // pred_fallthru
      _
    %s736 = sadd.s32 %s458, 4
    %p737 = scmp.ge.s32.totalorder %s484, 0
    // Predicated region
    $region457: #{segment_predictor_forward.1} parent=297 // pred_check
      %p738 = pneg %p737
    $region458: #{segment_predictor_forward.1} parent=297 // pred_check_branch
      %740 = sbr.rel (%p738) target = $region460
    $region459: #{segment_predictor_forward.1} parent=297 // pred_region
      %s741 = scalar_lea.vmem %s1, %s484
      %s742 = scalar_lea.vmem [#allocation2], %s736
      %s743 = scalar_lea.sflag [#allocation3], 4
      %p745 = scmp.lt.u32.totalorder 1, 8
      %p746 = pneg %p745
      // Predicated region
      $region461: #{segment_predictor_forward.1} parent=459 // pred_check
        _
      $region462: #{segment_predictor_forward.1} parent=459 // pred_check_branch
        %748 = sbr.rel (%p745) target = $region464
      $region463: #{segment_predictor_forward.1} parent=459 // pred_region
        %s763 = sand.u32 1, 7
        %p764 = scmp.eq.s32.totalorder %s763, 0
        %p765 = pneg %p764
        // Predicated region
        $region476: #{segment_predictor_forward.1} parent=463 // pred_check
          _
        $region477: #{segment_predictor_forward.1} parent=463 // pred_check_branch
          %767 = sbr.rel (%p764) target = $region479
        $region478: #{segment_predictor_forward.1} parent=463 // pred_region
          %s768 = sand.u32 1, 7
          %s769 = ssub.s32 1, %s768
          %s770 = scalar_lea.vmem %s741, %s769
          %s771 = ssub.s32 1, %s768
          %s772 = scalar_lea.vmem %s742, %s771 [#allocation2]
          %s773 = sshllo.u32 0, %s768
          loop: start=0, step=1, limit=1
          $region480: #{segment_predictor_forward.1} parent=478 // loop_pre_header
            _
          $region481: #{segment_predictor_forward.1} parent=478 // loop_header
            %s775 = sphi 0, %s779
            %p776 = scmp.ge.s32.totalorder %s775, 1
            %s780 = sphi %s770, %s770
            %s781 = sphi %s772, %s772
          $region482: #{segment_predictor_forward.1} parent=478 // loop_header_branch
            %778 = sbr.rel (%p776) target = $region486
          $region483: #{segment_predictor_forward.1} parent=478 // loop_body
            %v782 = vld [vmem:[%s780] sm:%s773]
            %783 = vst [vmem:[%s781] sm:%s773] %v782
          $region484: #{segment_predictor_forward.1} parent=478 // loop_footer
            %s779 = sadd.s32 1, %s775
          $region485: #{segment_predictor_forward.1} parent=478 // loop_footer_branch
            %774 = sbr.rel target = $region481
          $region486: #{segment_predictor_forward.1} parent=478 // loop_exit
            _
        $region479: #{segment_predictor_forward.1} parent=463 // pred_fallthru
          _
      $region464: #{segment_predictor_forward.1} parent=459 // pred_fallthru
        _
      // Predicated region
      $region465: #{segment_predictor_forward.1} parent=459 // pred_check
        %p749 = pneg %p745
      $region466: #{segment_predictor_forward.1} parent=459 // pred_check_branch
        %751 = sbr.rel (%p749) target = $region468
      $region467: #{segment_predictor_forward.1} parent=459 // pred_region
        %s752 = sshllo.u32 0, 1
        loop: start=0, step=1, limit=1
        $region469: #{segment_predictor_forward.1} parent=467 // loop_pre_header
          _
        $region470: #{segment_predictor_forward.1} parent=467 // loop_header
          %s754 = sphi 0, %s758
          %p755 = scmp.ge.s32.totalorder %s754, 1
          %s759 = sphi %s741, %s741
          %s760 = sphi %s742, %s742
        $region471: #{segment_predictor_forward.1} parent=467 // loop_header_branch
          %757 = sbr.rel (%p755) target = $region475
        $region472: #{segment_predictor_forward.1} parent=467 // loop_body
          %v761 = vld [vmem:[%s759] sm:%s752]
          %762 = vst [vmem:[%s760] sm:%s752] %v761
        $region473: #{segment_predictor_forward.1} parent=467 // loop_footer
          %s758 = sadd.s32 1, %s754
        $region474: #{segment_predictor_forward.1} parent=467 // loop_footer_branch
          %753 = sbr.rel target = $region470
        $region475: #{segment_predictor_forward.1} parent=467 // loop_exit
          _
      $region468: #{segment_predictor_forward.1} parent=459 // pred_fallthru
        _
      // Predicated region
      $region487: #{segment_predictor_forward.1} parent=459 // pred_check
        _
      $region488: #{segment_predictor_forward.1} parent=459 // pred_check_branch
        %786 = sbr.rel (0) target = $region490
      $region489: #{segment_predictor_forward.1} parent=459 // pred_region
        %787 = vsyncadd %s743, 16
      $region490: #{segment_predictor_forward.1} parent=459 // pred_fallthru
        _
    $region460: #{segment_predictor_forward.1} parent=297 // pred_fallthru
      _
    %p788 = scmp.ge.s32.totalorder %s471, 0
    // Predicated region
    $region491: #{segment_predictor_forward.1} parent=297 // pred_check
      %p789 = pneg %p788
    $region492: #{segment_predictor_forward.1} parent=297 // pred_check_branch
      %791 = sbr.rel (%p789) target = $region494
    $region493: #{segment_predictor_forward.1} parent=297 // pred_region
      %s792 = scalar_lea.sflag [#allocation3], 5
      %s793 = smul.u32 1, 1
      %s794 = sshll.u32 %s793, 4
      %795 = dma.done %s792, %s794
    $region494: #{segment_predictor_forward.1} parent=297 // pred_fallthru
      _
    %s796 = sadd.s32 %s458, 5
    %p797 = scmp.ge.s32.totalorder %s486, 0
    // Predicated region
    $region495: #{segment_predictor_forward.1} parent=297 // pred_check
      %p798 = pneg %p797
    $region496: #{segment_predictor_forward.1} parent=297 // pred_check_branch
      %800 = sbr.rel (%p798) target = $region498
    $region497: #{segment_predictor_forward.1} parent=297 // pred_region
      %s801 = scalar_lea.vmem %s1, %s486
      %s802 = scalar_lea.vmem [#allocation2], %s796
      %s803 = scalar_lea.sflag [#allocation3], 5
      %p805 = scmp.lt.u32.totalorder 1, 8
      %p806 = pneg %p805
      // Predicated region
      $region499: #{segment_predictor_forward.1} parent=497 // pred_check
        _
      $region500: #{segment_predictor_forward.1} parent=497 // pred_check_branch
        %808 = sbr.rel (%p805) target = $region502
      $region501: #{segment_predictor_forward.1} parent=497 // pred_region
        %s823 = sand.u32 1, 7
        %p824 = scmp.eq.s32.totalorder %s823, 0
        %p825 = pneg %p824
        // Predicated region
        $region514: #{segment_predictor_forward.1} parent=501 // pred_check
          _
        $region515: #{segment_predictor_forward.1} parent=501 // pred_check_branch
          %827 = sbr.rel (%p824) target = $region517
        $region516: #{segment_predictor_forward.1} parent=501 // pred_region
          %s828 = sand.u32 1, 7
          %s829 = ssub.s32 1, %s828
          %s830 = scalar_lea.vmem %s801, %s829
          %s831 = ssub.s32 1, %s828
          %s832 = scalar_lea.vmem %s802, %s831 [#allocation2]
          %s833 = sshllo.u32 0, %s828
          loop: start=0, step=1, limit=1
          $region518: #{segment_predictor_forward.1} parent=516 // loop_pre_header
            _
          $region519: #{segment_predictor_forward.1} parent=516 // loop_header
            %s835 = sphi 0, %s839
            %p836 = scmp.ge.s32.totalorder %s835, 1
            %s840 = sphi %s830, %s830
            %s841 = sphi %s832, %s832
          $region520: #{segment_predictor_forward.1} parent=516 // loop_header_branch
            %838 = sbr.rel (%p836) target = $region524
          $region521: #{segment_predictor_forward.1} parent=516 // loop_body
            %v842 = vld [vmem:[%s840] sm:%s833]
            %843 = vst [vmem:[%s841] sm:%s833] %v842
          $region522: #{segment_predictor_forward.1} parent=516 // loop_footer
            %s839 = sadd.s32 1, %s835
          $region523: #{segment_predictor_forward.1} parent=516 // loop_footer_branch
            %834 = sbr.rel target = $region519
          $region524: #{segment_predictor_forward.1} parent=516 // loop_exit
            _
        $region517: #{segment_predictor_forward.1} parent=501 // pred_fallthru
          _
      $region502: #{segment_predictor_forward.1} parent=497 // pred_fallthru
        _
      // Predicated region
      $region503: #{segment_predictor_forward.1} parent=497 // pred_check
        %p809 = pneg %p805
      $region504: #{segment_predictor_forward.1} parent=497 // pred_check_branch
        %811 = sbr.rel (%p809) target = $region506
      $region505: #{segment_predictor_forward.1} parent=497 // pred_region
        %s812 = sshllo.u32 0, 1
        loop: start=0, step=1, limit=1
        $region507: #{segment_predictor_forward.1} parent=505 // loop_pre_header
          _
        $region508: #{segment_predictor_forward.1} parent=505 // loop_header
          %s814 = sphi 0, %s818
          %p815 = scmp.ge.s32.totalorder %s814, 1
          %s819 = sphi %s801, %s801
          %s820 = sphi %s802, %s802
        $region509: #{segment_predictor_forward.1} parent=505 // loop_header_branch
          %817 = sbr.rel (%p815) target = $region513
        $region510: #{segment_predictor_forward.1} parent=505 // loop_body
          %v821 = vld [vmem:[%s819] sm:%s812]
          %822 = vst [vmem:[%s820] sm:%s812] %v821
        $region511: #{segment_predictor_forward.1} parent=505 // loop_footer
          %s818 = sadd.s32 1, %s814
        $region512: #{segment_predictor_forward.1} parent=505 // loop_footer_branch
          %813 = sbr.rel target = $region508
        $region513: #{segment_predictor_forward.1} parent=505 // loop_exit
          _
      $region506: #{segment_predictor_forward.1} parent=497 // pred_fallthru
        _
      // Predicated region
      $region525: #{segment_predictor_forward.1} parent=497 // pred_check
        _
      $region526: #{segment_predictor_forward.1} parent=497 // pred_check_branch
        %846 = sbr.rel (0) target = $region528
      $region527: #{segment_predictor_forward.1} parent=497 // pred_region
        %847 = vsyncadd %s803, 16
      $region528: #{segment_predictor_forward.1} parent=497 // pred_fallthru
        _
    $region498: #{segment_predictor_forward.1} parent=297 // pred_fallthru
      _
    %p848 = scmp.ge.s32.totalorder %s473, 0
    // Predicated region
    $region529: #{segment_predictor_forward.1} parent=297 // pred_check
      %p849 = pneg %p848
    $region530: #{segment_predictor_forward.1} parent=297 // pred_check_branch
      %851 = sbr.rel (%p849) target = $region532
    $region531: #{segment_predictor_forward.1} parent=297 // pred_region
      %s852 = scalar_lea.sflag [#allocation3], 6
      %s853 = smul.u32 1, 1
      %s854 = sshll.u32 %s853, 4
      %855 = dma.done %s852, %s854
    $region532: #{segment_predictor_forward.1} parent=297 // pred_fallthru
      _
    %s856 = sadd.s32 %s458, 6
    %p857 = scmp.ge.s32.totalorder %s488, 0
    // Predicated region
    $region533: #{segment_predictor_forward.1} parent=297 // pred_check
      %p858 = pneg %p857
    $region534: #{segment_predictor_forward.1} parent=297 // pred_check_branch
      %860 = sbr.rel (%p858) target = $region536
    $region535: #{segment_predictor_forward.1} parent=297 // pred_region
      %s861 = scalar_lea.vmem %s1, %s488
      %s862 = scalar_lea.vmem [#allocation2], %s856
      %s863 = scalar_lea.sflag [#allocation3], 6
      %p865 = scmp.lt.u32.totalorder 1, 8
      %p866 = pneg %p865
      // Predicated region
      $region537: #{segment_predictor_forward.1} parent=535 // pred_check
        _
      $region538: #{segment_predictor_forward.1} parent=535 // pred_check_branch
        %868 = sbr.rel (%p865) target = $region540
      $region539: #{segment_predictor_forward.1} parent=535 // pred_region
        %s883 = sand.u32 1, 7
        %p884 = scmp.eq.s32.totalorder %s883, 0
        %p885 = pneg %p884
        // Predicated region
        $region552: #{segment_predictor_forward.1} parent=539 // pred_check
          _
        $region553: #{segment_predictor_forward.1} parent=539 // pred_check_branch
          %887 = sbr.rel (%p884) target = $region555
        $region554: #{segment_predictor_forward.1} parent=539 // pred_region
          %s888 = sand.u32 1, 7
          %s889 = ssub.s32 1, %s888
          %s890 = scalar_lea.vmem %s861, %s889
          %s891 = ssub.s32 1, %s888
          %s892 = scalar_lea.vmem %s862, %s891 [#allocation2]
          %s893 = sshllo.u32 0, %s888
          loop: start=0, step=1, limit=1
          $region556: #{segment_predictor_forward.1} parent=554 // loop_pre_header
            _
          $region557: #{segment_predictor_forward.1} parent=554 // loop_header
            %s895 = sphi 0, %s899
            %p896 = scmp.ge.s32.totalorder %s895, 1
            %s900 = sphi %s890, %s890
            %s901 = sphi %s892, %s892
          $region558: #{segment_predictor_forward.1} parent=554 // loop_header_branch
            %898 = sbr.rel (%p896) target = $region562
          $region559: #{segment_predictor_forward.1} parent=554 // loop_body
            %v902 = vld [vmem:[%s900] sm:%s893]
            %903 = vst [vmem:[%s901] sm:%s893] %v902
          $region560: #{segment_predictor_forward.1} parent=554 // loop_footer
            %s899 = sadd.s32 1, %s895
          $region561: #{segment_predictor_forward.1} parent=554 // loop_footer_branch
            %894 = sbr.rel target = $region557
          $region562: #{segment_predictor_forward.1} parent=554 // loop_exit
            _
        $region555: #{segment_predictor_forward.1} parent=539 // pred_fallthru
          _
      $region540: #{segment_predictor_forward.1} parent=535 // pred_fallthru
        _
      // Predicated region
      $region541: #{segment_predictor_forward.1} parent=535 // pred_check
        %p869 = pneg %p865
      $region542: #{segment_predictor_forward.1} parent=535 // pred_check_branch
        %871 = sbr.rel (%p869) target = $region544
      $region543: #{segment_predictor_forward.1} parent=535 // pred_region
        %s872 = sshllo.u32 0, 1
        loop: start=0, step=1, limit=1
        $region545: #{segment_predictor_forward.1} parent=543 // loop_pre_header
          _
        $region546: #{segment_predictor_forward.1} parent=543 // loop_header
          %s874 = sphi 0, %s878
          %p875 = scmp.ge.s32.totalorder %s874, 1
          %s879 = sphi %s861, %s861
          %s880 = sphi %s862, %s862
        $region547: #{segment_predictor_forward.1} parent=543 // loop_header_branch
          %877 = sbr.rel (%p875) target = $region551
        $region548: #{segment_predictor_forward.1} parent=543 // loop_body
          %v881 = vld [vmem:[%s879] sm:%s872]
          %882 = vst [vmem:[%s880] sm:%s872] %v881
        $region549: #{segment_predictor_forward.1} parent=543 // loop_footer
          %s878 = sadd.s32 1, %s874
        $region550: #{segment_predictor_forward.1} parent=543 // loop_footer_branch
          %873 = sbr.rel target = $region546
        $region551: #{segment_predictor_forward.1} parent=543 // loop_exit
          _
      $region544: #{segment_predictor_forward.1} parent=535 // pred_fallthru
        _
      // Predicated region
      $region563: #{segment_predictor_forward.1} parent=535 // pred_check
        _
      $region564: #{segment_predictor_forward.1} parent=535 // pred_check_branch
        %906 = sbr.rel (0) target = $region566
      $region565: #{segment_predictor_forward.1} parent=535 // pred_region
        %907 = vsyncadd %s863, 16
      $region566: #{segment_predictor_forward.1} parent=535 // pred_fallthru
        _
    $region536: #{segment_predictor_forward.1} parent=297 // pred_fallthru
      _
    %p908 = scmp.ge.s32.totalorder %s475, 0
    // Predicated region
    $region567: #{segment_predictor_forward.1} parent=297 // pred_check
      %p909 = pneg %p908
    $region568: #{segment_predictor_forward.1} parent=297 // pred_check_branch
      %911 = sbr.rel (%p909) target = $region570
    $region569: #{segment_predictor_forward.1} parent=297 // pred_region
      %s912 = scalar_lea.sflag [#allocation3], 7
      %s913 = smul.u32 1, 1
      %s914 = sshll.u32 %s913, 4
      %915 = dma.done %s912, %s914
    $region570: #{segment_predictor_forward.1} parent=297 // pred_fallthru
      _
    %s916 = sadd.s32 %s458, 7
    %p917 = scmp.ge.s32.totalorder %s490, 0
    // Predicated region
    $region571: #{segment_predictor_forward.1} parent=297 // pred_check
      %p918 = pneg %p917
    $region572: #{segment_predictor_forward.1} parent=297 // pred_check_branch
      %920 = sbr.rel (%p918) target = $region574
    $region573: #{segment_predictor_forward.1} parent=297 // pred_region
      %s921 = scalar_lea.vmem %s1, %s490
      %s922 = scalar_lea.vmem [#allocation2], %s916
      %s923 = scalar_lea.sflag [#allocation3], 7
      %p925 = scmp.lt.u32.totalorder 1, 8
      %p926 = pneg %p925
      // Predicated region
      $region575: #{segment_predictor_forward.1} parent=573 // pred_check
        _
      $region576: #{segment_predictor_forward.1} parent=573 // pred_check_branch
        %928 = sbr.rel (%p925) target = $region578
      $region577: #{segment_predictor_forward.1} parent=573 // pred_region
        %s943 = sand.u32 1, 7
        %p944 = scmp.eq.s32.totalorder %s943, 0
        %p945 = pneg %p944
        // Predicated region
        $region590: #{segment_predictor_forward.1} parent=577 // pred_check
          _
        $region591: #{segment_predictor_forward.1} parent=577 // pred_check_branch
          %947 = sbr.rel (%p944) target = $region593
        $region592: #{segment_predictor_forward.1} parent=577 // pred_region
          %s948 = sand.u32 1, 7
          %s949 = ssub.s32 1, %s948
          %s950 = scalar_lea.vmem %s921, %s949
          %s951 = ssub.s32 1, %s948
          %s952 = scalar_lea.vmem %s922, %s951 [#allocation2]
          %s953 = sshllo.u32 0, %s948
          loop: start=0, step=1, limit=1
          $region594: #{segment_predictor_forward.1} parent=592 // loop_pre_header
            _
          $region595: #{segment_predictor_forward.1} parent=592 // loop_header
            %s955 = sphi 0, %s959
            %p956 = scmp.ge.s32.totalorder %s955, 1
            %s960 = sphi %s950, %s950
            %s961 = sphi %s952, %s952
          $region596: #{segment_predictor_forward.1} parent=592 // loop_header_branch
            %958 = sbr.rel (%p956) target = $region600
          $region597: #{segment_predictor_forward.1} parent=592 // loop_body
            %v962 = vld [vmem:[%s960] sm:%s953]
            %963 = vst [vmem:[%s961] sm:%s953] %v962
          $region598: #{segment_predictor_forward.1} parent=592 // loop_footer
            %s959 = sadd.s32 1, %s955
          $region599: #{segment_predictor_forward.1} parent=592 // loop_footer_branch
            %954 = sbr.rel target = $region595
          $region600: #{segment_predictor_forward.1} parent=592 // loop_exit
            _
        $region593: #{segment_predictor_forward.1} parent=577 // pred_fallthru
          _
      $region578: #{segment_predictor_forward.1} parent=573 // pred_fallthru
        _
      // Predicated region
      $region579: #{segment_predictor_forward.1} parent=573 // pred_check
        %p929 = pneg %p925
      $region580: #{segment_predictor_forward.1} parent=573 // pred_check_branch
        %931 = sbr.rel (%p929) target = $region582
      $region581: #{segment_predictor_forward.1} parent=573 // pred_region
        %s932 = sshllo.u32 0, 1
        loop: start=0, step=1, limit=1
        $region583: #{segment_predictor_forward.1} parent=581 // loop_pre_header
          _
        $region584: #{segment_predictor_forward.1} parent=581 // loop_header
          %s934 = sphi 0, %s938
          %p935 = scmp.ge.s32.totalorder %s934, 1
          %s939 = sphi %s921, %s921
          %s940 = sphi %s922, %s922
        $region585: #{segment_predictor_forward.1} parent=581 // loop_header_branch
          %937 = sbr.rel (%p935) target = $region589
        $region586: #{segment_predictor_forward.1} parent=581 // loop_body
          %v941 = vld [vmem:[%s939] sm:%s932]
          %942 = vst [vmem:[%s940] sm:%s932] %v941
        $region587: #{segment_predictor_forward.1} parent=581 // loop_footer
          %s938 = sadd.s32 1, %s934
        $region588: #{segment_predictor_forward.1} parent=581 // loop_footer_branch
          %933 = sbr.rel target = $region584
        $region589: #{segment_predictor_forward.1} parent=581 // loop_exit
          _
      $region582: #{segment_predictor_forward.1} parent=573 // pred_fallthru
        _
      // Predicated region
      $region601: #{segment_predictor_forward.1} parent=573 // pred_check
        _
      $region602: #{segment_predictor_forward.1} parent=573 // pred_check_branch
        %966 = sbr.rel (0) target = $region604
      $region603: #{segment_predictor_forward.1} parent=573 // pred_region
        %967 = vsyncadd %s923, 16
      $region604: #{segment_predictor_forward.1} parent=573 // pred_fallthru
        _
    $region574: #{segment_predictor_forward.1} parent=297 // pred_fallthru
      _
  $region298: #{segment_predictor_forward.1} parent=0 // loop_footer
    %s457 = sadd.s32 1, %s453
  $region299: #{segment_predictor_forward.1} parent=0 // loop_footer_branch
    %452 = sbr.rel target = $region295
  $region300: #{segment_predictor_forward.1} parent=0 // loop_exit
    _
  %s968 = sadd.s32 %s30, 16
  %s969 = sld [smem:[#allocation5 + %s968]]
  %s970 = sadd.s32 %s30, 17
  %s971 = sld [smem:[#allocation5 + %s970]]
  %s972 = sadd.s32 %s30, 18
  %s973 = sld [smem:[#allocation5 + %s972]]
  %s974 = sadd.s32 %s30, 19
  %s975 = sld [smem:[#allocation5 + %s974]]
  %s976 = sadd.s32 %s30, 20
  %s977 = sld [smem:[#allocation5 + %s976]]
  %s978 = sadd.s32 %s30, 21
  %s979 = sld [smem:[#allocation5 + %s978]]
  %s980 = sadd.s32 %s30, 22
  %s981 = sld [smem:[#allocation5 + %s980]]
  %s982 = sadd.s32 %s30, 23
  %s983 = sld [smem:[#allocation5 + %s982]]
  %p984 = scmp.ge.s32.totalorder %s969, 0
  // Predicated region
  $region605: #{segment_predictor_forward.1} parent=0 // pred_check
    %p985 = pneg %p984
  $region606: #{segment_predictor_forward.1} parent=0 // pred_check_branch
    %987 = sbr.rel (%p985) target = $region608
  $region607: #{segment_predictor_forward.1} parent=0 // pred_region
    %s988 = smul.u32 1, 1
    %s989 = sshll.u32 %s988, 4
    %990 = dma.done [#allocation3], %s989
  $region608: #{segment_predictor_forward.1} parent=0 // pred_fallthru
    _
  %p991 = scmp.ge.s32.totalorder %s971, 0
  // Predicated region
  $region609: #{segment_predictor_forward.1} parent=0 // pred_check
    %p992 = pneg %p991
  $region610: #{segment_predictor_forward.1} parent=0 // pred_check_branch
    %994 = sbr.rel (%p992) target = $region612
  $region611: #{segment_predictor_forward.1} parent=0 // pred_region
    %s995 = scalar_lea.sflag [#allocation3], 1
    %s996 = smul.u32 1, 1
    %s997 = sshll.u32 %s996, 4
    %998 = dma.done %s995, %s997
  $region612: #{segment_predictor_forward.1} parent=0 // pred_fallthru
    _
  %p999 = scmp.ge.s32.totalorder %s973, 0
  // Predicated region
  $region613: #{segment_predictor_forward.1} parent=0 // pred_check
    %p1000 = pneg %p999
  $region614: #{segment_predictor_forward.1} parent=0 // pred_check_branch
    %1002 = sbr.rel (%p1000) target = $region616
  $region615: #{segment_predictor_forward.1} parent=0 // pred_region
    %s1003 = scalar_lea.sflag [#allocation3], 2
    %s1004 = smul.u32 1, 1
    %s1005 = sshll.u32 %s1004, 4
    %1006 = dma.done %s1003, %s1005
  $region616: #{segment_predictor_forward.1} parent=0 // pred_fallthru
    _
  %p1007 = scmp.ge.s32.totalorder %s975, 0
  // Predicated region
  $region617: #{segment_predictor_forward.1} parent=0 // pred_check
    %p1008 = pneg %p1007
  $region618: #{segment_predictor_forward.1} parent=0 // pred_check_branch
    %1010 = sbr.rel (%p1008) target = $region620
  $region619: #{segment_predictor_forward.1} parent=0 // pred_region
    %s1011 = scalar_lea.sflag [#allocation3], 3
    %s1012 = smul.u32 1, 1
    %s1013 = sshll.u32 %s1012, 4
    %1014 = dma.done %s1011, %s1013
  $region620: #{segment_predictor_forward.1} parent=0 // pred_fallthru
    _
  %p1015 = scmp.ge.s32.totalorder %s977, 0
  // Predicated region
  $region621: #{segment_predictor_forward.1} parent=0 // pred_check
    %p1016 = pneg %p1015
  $region622: #{segment_predictor_forward.1} parent=0 // pred_check_branch
    %1018 = sbr.rel (%p1016) target = $region624
  $region623: #{segment_predictor_forward.1} parent=0 // pred_region
    %s1019 = scalar_lea.sflag [#allocation3], 4
    %s1020 = smul.u32 1, 1
    %s1021 = sshll.u32 %s1020, 4
    %1022 = dma.done %s1019, %s1021
  $region624: #{segment_predictor_forward.1} parent=0 // pred_fallthru
    _
  %p1023 = scmp.ge.s32.totalorder %s979, 0
  // Predicated region
  $region625: #{segment_predictor_forward.1} parent=0 // pred_check
    %p1024 = pneg %p1023
  $region626: #{segment_predictor_forward.1} parent=0 // pred_check_branch
    %1026 = sbr.rel (%p1024) target = $region628
  $region627: #{segment_predictor_forward.1} parent=0 // pred_region
    %s1027 = scalar_lea.sflag [#allocation3], 5
    %s1028 = smul.u32 1, 1
    %s1029 = sshll.u32 %s1028, 4
    %1030 = dma.done %s1027, %s1029
  $region628: #{segment_predictor_forward.1} parent=0 // pred_fallthru
    _
  %p1031 = scmp.ge.s32.totalorder %s981, 0
  // Predicated region
  $region629: #{segment_predictor_forward.1} parent=0 // pred_check
    %p1032 = pneg %p1031
  $region630: #{segment_predictor_forward.1} parent=0 // pred_check_branch
    %1034 = sbr.rel (%p1032) target = $region632
  $region631: #{segment_predictor_forward.1} parent=0 // pred_region
    %s1035 = scalar_lea.sflag [#allocation3], 6
    %s1036 = smul.u32 1, 1
    %s1037 = sshll.u32 %s1036, 4
    %1038 = dma.done %s1035, %s1037
  $region632: #{segment_predictor_forward.1} parent=0 // pred_fallthru
    _
  %p1039 = scmp.ge.s32.totalorder %s983, 0
  // Predicated region
  $region633: #{segment_predictor_forward.1} parent=0 // pred_check
    %p1040 = pneg %p1039
  $region634: #{segment_predictor_forward.1} parent=0 // pred_check_branch
    %1042 = sbr.rel (%p1040) target = $region636
  $region635: #{segment_predictor_forward.1} parent=0 // pred_region
    %s1043 = scalar_lea.sflag [#allocation3], 7
    %s1044 = smul.u32 1, 1
    %s1045 = sshll.u32 %s1044, 4
    %1046 = dma.done %s1043, %s1045
  $region636: #{segment_predictor_forward.1} parent=0 // pred_fallthru
    _
  %v1047 = vld [vmem:[#allocation2] sm:$0xff]
  %v1048 = vld [vmem:[#allocation2 + $0x8] sm:$0xff]
  %v1049 = vld [vmem:[#allocation2 + $0x10] sm:$0xff]
  %v1050 = vld [vmem:[%s2] sm:$0xff]
  %v1051 = vld [vmem:[%s2 + $0x8] sm:$0xff]
  %v1052 = vld [vmem:[%s2 + $0x10] sm:$0xff]
  %v1053 = vld [vmem:[%s2 + $0x18] sm:$0xff]
  %v1054 = vld [vmem:[%s3] sm:$0x1]
  %v1056 = vlaneseq
  %v1057 = vshrl.u32 %v1056, 7
  %v1058 = vsub.s32 0, %v1057
  %v1059 = vrot.slane %v1054, %v1058
  %vm1061 = vcmask 261120
  %v1063 = vsel %vm1061, %v1047, 0
  %v1066 = vsel %vm1061, %v1048, 0
  %v1069 = vsel %vm1061, %v1049, 0
  %1071 = vmatprep.subr.mxu0 0.0
  %1072 = vmatpush1.msra.mxu0 %v1050
  %1073 = vmatprep.subr.mxu0 0.0
  %1074 = vmatpush1.msra.mxu0 %v1051
  %1075 = vmatprep.subr.mxu0 0.0
  %1076 = vmatpush1.msra.mxu0 %v1052
  %1077 = vmatprep.subr.mxu0 0.0
  %1078 = vmatpush1.msra.mxu0 %v1053
  %1079 = vmatprep.subr.mxu0 0.0
  %1080 = vmatpush1.msra.mxu0 0.0
  %1081 = vmatprep.subr.mxu0 0.0
  %1082 = vmatpush1.msra.mxu0 0.0
  %1083 = vmatprep.subr.mxu0 0.0
  %1084 = vmatpush1.msra.mxu0 0.0
  %1085 = vmatprep.subr.mxu0 0.0
  %1086 = vmatpush1.msra.mxu0 0.0
  %1087 = vmatprep.subr.mxu0 0.0
  %1088 = vmatpush1.msra.mxu0 0.0
  %1089 = vmatprep.subr.mxu0 0.0
  %1090 = vmatpush1.msra.mxu0 0.0
  %1091 = vmatprep.subr.mxu0 0.0
  %1092 = vmatpush1.msra.mxu0 0.0
  %1093 = vmatprep.subr.mxu0 0.0
  %1094 = vmatpush1.msra.mxu0 0.0
  %1095 = vmatprep.subr.mxu0 0.0
  %1096 = vmatpush1.msra.mxu0 0.0
  %1097 = vmatprep.subr.mxu0 0.0
  %1098 = vmatpush1.msra.mxu0 0.0
  %1099 = vmatprep.subr.mxu0 0.0
  %1100 = vmatpush1.msra.mxu0 0.0
  %1101 = vmatprep.subr.mxu0 0.0
  %1102 = vmatpush1.msra.mxu0 0.0
  %1103 = vmatprep.subr.mxu0 0.0
  %1104 = vmatpush1.msra.mxu0 0.0
  %1105 = vmatprep.subr.mxu0 0.0
  %1106 = vmatpush1.msra.mxu0 0.0
  %1107 = vmatprep.subr.mxu0 0.0
  %1108 = vmatpush1.msra.mxu0 0.0
  %1109 = vmatprep.subr.mxu0 0.0
  %1110 = vmatpush1.msra.mxu0 0.0
  %1111 = vmatprep.subr.mxu0 0.0
  %1112 = vmatpush1.msra.mxu0 0.0
  %1113 = vmatprep.subr.mxu0 0.0
  %1114 = vmatpush1.msra.mxu0 0.0
  %1115 = vmatprep.subr.mxu0 0.0
  %1116 = vmatpush1.msra.mxu0 0.0
  %1117 = vmatprep.subr.mxu0 0.0
  %1118 = vmatpush1.msra.mxu0 0.0
  %1119 = vmatprep.subr.mxu0 0.0
  %1120 = vmatpush1.msra.mxu0 0.0
  %1121 = vmatprep.subr.mxu0 0.0
  %1122 = vmatpush1.msra.mxu0 0.0
  %1123 = vmatprep.subr.mxu0 0.0
  %1124 = vmatpush1.msra.mxu0 0.0
  %1125 = vmatprep.subr.mxu0 0.0
  %1126 = vmatpush1.msra.mxu0 0.0
  %1127 = vmatprep.subr.mxu0 0.0
  %1128 = vmatpush1.msra.mxu0 0.0
  %1129 = vmatprep.subr.mxu0 0.0
  %1130 = vmatpush1.msra.mxu0 0.0
  %1131 = vmatprep.subr.mxu0 0.0
  %1132 = vmatpush1.msra.mxu0 0.0
  %1133 = vmatprep.subr.mxu0 0.0
  %1134 = vmatpush1.msra.mxu0 0.0
  %1135 = vmatprep.mubr.f32.mxu0 0.0
  %1136 = vmatmul.mubr.f32.gmra.mrb[0].mxu0 %v1063
  %v1137 = vpop.f32.mrb[0].mxu0
  %v1138 = vadd.f32 %v1059, %v1137
  %v1139 = vpop.f32.mrb[0].mxu0
  %1140 = vmatprep.mubr.f32.mxu0 0.0
  %1141 = vmatmul.mubr.f32.gmra.mrb[0].mxu0 %v1066
  %v1142 = vpop.f32.mrb[0].mxu0
  %v1143 = vadd.f32 %v1059, %v1142
  %v1144 = vpop.f32.mrb[0].mxu0
  %1145 = vmatprep.mubr.f32.mxu0 0.0
  %1146 = vmatmul.mubr.f32.gmra.mrb[0].mxu0 %v1069
  %v1147 = vpop.f32.mrb[0].mxu0
  %v1148 = vadd.f32 %v1059, %v1147
  %v1149 = vpop.f32.mrb[0].mxu0
  %1150 = vdwg.mxu0
  %v1151 = vld [vmem:[%s6] sm:$0xff]
  %v1152 = vld [vmem:[%s6 + $0x8] sm:$0xff]
  %v1153 = vld [vmem:[%s6 + $0x10] sm:$0xff]
  %vm1154 = vcmp.gt.f32.partialorder %v1151, 0.0
  %vm1155 = vcmp.gt.f32.partialorder %v1152, 0.0
  %vm1156 = vcmp.gt.f32.partialorder %v1153, 0.0
  %v1157 = vsel %vm1154, 1, 0
  %v1158 = vsel %vm1155, 1, 0
  %v1159 = vsel %vm1156, 1, 0
  %1160 = vset.pattern.permute.xlu0 0
  %1161 = vperm.xlu0 %1160, %v1157
  %v1162 = vpop.permute.xlu0 %1161
  %1163 = vset.pattern.permute.xlu0 0
  %1164 = vperm.xlu0 %1163, %v1158
  %v1165 = vpop.permute.xlu0 %1164
  %1166 = vset.pattern.permute.xlu0 0
  %1167 = vperm.xlu0 %1166, %v1159
  %v1168 = vpop.permute.xlu0 %1167
  %vm1169 = vcmp.eq.s32.totalorder %v1162, 1
  %vm1170 = vcmp.eq.s32.totalorder %v1165, 1
  %vm1171 = vcmp.eq.s32.totalorder %v1168, 1
  %v1172 = vsel %vm1169, %v1138, %v1059
  %v1173 = vsel %vm1170, %v1143, %v1059
  %v1174 = vsel %vm1171, %v1148, %v1059
  %1175 = vst [vmem:[%s7] sm:$0xff] %v1172
  %1176 = vst [vmem:[%s7 + $0x8] sm:$0xff] %v1173
  %1177 = vst [vmem:[%s7 + $0x10] sm:$0xff] %v1174
  %v1178 = vlaneseq
  %v1179 = vand.u32 %v1178, 127
  %vm1180 = vcmp.lt.s32.totalorder %v1179, 2
  %v1181 = vsel %vm1180, %v1172, -1e+30
  %v1182 = vsel %vm1180, %v1173, -1e+30
  %v1183 = vsel %vm1180, %v1174, -1e+30
  %1184 = vmax.xlane.f32.xlu0 %v1181
  %v1185 = vpop.xlane.xlu0 %1184
  %1186 = vmax.xlane.f32.xlu0 %v1182
  %v1187 = vpop.xlane.xlu0 %1186
  %1188 = vmax.xlane.f32.xlu0 %v1183
  %v1189 = vpop.xlane.xlu0 %1188
  %v1190 = vsub.f32 %v1181, %v1185
  %v1191 = vsub.f32 %v1182, %v1187
  %v1192 = vsub.f32 %v1183, %v1189
  %v1193 = vmul.f32 %v1190, 1.442695
  %v1194 = vpow.pop %v1193
  %v1195 = vmul.f32 %v1191, 1.442695
  %v1196 = vpow.pop %v1195
  %v1197 = vmul.f32 %v1192, 1.442695
  %v1198 = vpow.pop %v1197
  %v1199 = vsel %vm1180, %v1194, 0.0
  %v1200 = vsel %vm1180, %v1196, 0.0
  %v1201 = vsel %vm1180, %v1198, 0.0
  %1202 = vadd.xlane.f32.xlu0 %v1199
  %v1203 = vpop.xlane.xlu0 %1202
  %1204 = vadd.xlane.f32.xlu0 %v1200
  %v1205 = vpop.xlane.xlu0 %1204
  %1206 = vadd.xlane.f32.xlu0 %v1201
  %v1207 = vpop.xlane.xlu0 %1206
  %v1208 = vlog2.pop %v1203
  %v1209 = vmul.f32 %v1208, 0.6931472
  %v1210 = vlog2.pop %v1205
  %v1211 = vmul.f32 %v1210, 0.6931472
  %v1212 = vlog2.pop %v1207
  %v1213 = vmul.f32 %v1212, 0.6931472
  %v1214 = vadd.f32 %v1185, %v1209
  %v1215 = vadd.f32 %v1187, %v1211
  %v1216 = vadd.f32 %v1189, %v1213
  %v1217 = vld [vmem:[%s4] sm:$0xff]
  %v1218 = vld [vmem:[%s4 + $0x8] sm:$0xff]
  %v1219 = vld [vmem:[%s4 + $0x10] sm:$0xff]
  %vm1220 = vcmp.ge.s32.totalorder %v1217, 0
  %vm1221 = vcmp.ge.s32.totalorder %v1218, 0
  %vm1222 = vcmp.ge.s32.totalorder %v1219, 0
  %1223 = vset.pattern.permute.xlu0 0
  %1224 = vperm.xlu0 %1223, %v1217
  %v1225 = vpop.permute.xlu0 %1224
  %1226 = vset.pattern.permute.xlu0 0
  %1227 = vperm.xlu0 %1226, %v1218
  %v1228 = vpop.permute.xlu0 %1227
  %1229 = vset.pattern.permute.xlu0 0
  %1230 = vperm.xlu0 %1229, %v1219
  %v1231 = vpop.permute.xlu0 %1230
  %vm1232 = vcmp.eq.s32.totalorder %v1179, %v1225
  %vm1233 = vcmp.eq.s32.totalorder %v1179, %v1228
  %vm1234 = vcmp.eq.s32.totalorder %v1179, %v1231
  %v1235 = vsel %vm1232, %v1172, 0.0
  %v1236 = vsel %vm1233, %v1173, 0.0
  %v1237 = vsel %vm1234, %v1174, 0.0
  %1238 = vadd.xlane.f32.xlu0 %v1235
  %v1239 = vpop.xlane.xlu0 %1238
  %1240 = vadd.xlane.f32.xlu0 %v1236
  %v1241 = vpop.xlane.xlu0 %1240
  %1242 = vadd.xlane.f32.xlu0 %v1237
  %v1243 = vpop.xlane.xlu0 %1242
  %v1244 = vsub.f32 %v1214, %v1239
  %v1245 = vsub.f32 %v1215, %v1241
  %v1246 = vsub.f32 %v1216, %v1243
  %v1247 = vsel %vm1220, %v1244, 0.0
  %v1248 = vsel %vm1221, %v1245, 0.0
  %v1249 = vsel %vm1222, %v1246, 0.0
  %vm1250 = vcmask 7168
  %v1251 = vsel %vm1250, %v1247, 0.0
  %v1252 = vsel %vm1250, %v1248, 0.0
  %v1253 = vadd.f32 %v1251, %v1252
  %v1254 = vsel %vm1250, %v1249, 0.0
  %v1255 = vadd.f32 %v1253, %v1254
  %1256 = vadd.xlane.f32.xlu0 %v1255
  %v1257 = vpop.xlane.xlu0 %1256
  %v1258 = vrot.slane %v1257, 4
  %v1259 = vadd.f32 %v1257, %v1258
  %v1260 = vrot.slane %v1259, 2
  %v1261 = vadd.f32 %v1259, %v1260
  %v1262 = vrot.slane %v1261, 1
  %v1263 = vadd.f32 %v1261, %v1262
  %s1264 = vtos %v1263
  %v1265 = vsel %vm1220, 1, 0
  %v1266 = vsel %vm1221, 1, 0
  %v1267 = vsel %vm1222, 1, 0
  %v1268 = vcvt.s32.f32 %v1265
  %v1269 = vcvt.s32.f32 %v1266
  %v1270 = vcvt.s32.f32 %v1267
  %v1271 = vsel %vm1250, %v1268, 0.0
  %v1272 = vsel %vm1250, %v1269, 0.0
  %v1273 = vadd.f32 %v1271, %v1272
  %v1274 = vsel %vm1250, %v1270, 0.0
  %v1275 = vadd.f32 %v1273, %v1274
  %1276 = vadd.xlane.f32.xlu0 %v1275
  %v1277 = vpop.xlane.xlu0 %1276
  %v1278 = vrot.slane %v1277, 4
  %v1279 = vadd.f32 %v1277, %v1278
  %v1280 = vrot.slane %v1279, 2
  %v1281 = vadd.f32 %v1279, %v1280
  %v1282 = vrot.slane %v1281, 1
  %v1283 = vadd.f32 %v1281, %v1282
  %s1284 = vtos %v1283
  %v1285 = vld [vmem:[%s5] sm:$0xff]
  %v1286 = vld [vmem:[%s5 + $0x8] sm:$0xff]
  %v1287 = vld [vmem:[%s5 + $0x10] sm:$0xff]
  %vm1288 = vcmp.ge.s32.totalorder %v1285, 0
  %vm1289 = vcmp.ge.s32.totalorder %v1286, 0
  %vm1290 = vcmp.ge.s32.totalorder %v1287, 0
  %1291 = vset.pattern.permute.xlu0 0
  %1292 = vperm.xlu0 %1291, %v1285
  %v1293 = vpop.permute.xlu0 %1292
  %1294 = vset.pattern.permute.xlu0 0
  %1295 = vperm.xlu0 %1294, %v1286
  %v1296 = vpop.permute.xlu0 %1295
  %1297 = vset.pattern.permute.xlu0 0
  %1298 = vperm.xlu0 %1297, %v1287
  %v1299 = vpop.permute.xlu0 %1298
  %vm1300 = vcmp.eq.s32.totalorder %v1179, %v1293
  %vm1301 = vcmp.eq.s32.totalorder %v1179, %v1296
  %vm1302 = vcmp.eq.s32.totalorder %v1179, %v1299
  %v1303 = vsel %vm1300, %v1172, 0.0
  %v1304 = vsel %vm1301, %v1173, 0.0
  %v1305 = vsel %vm1302, %v1174, 0.0
  %1306 = vadd.xlane.f32.xlu0 %v1303
  %v1307 = vpop.xlane.xlu0 %1306
  %1308 = vadd.xlane.f32.xlu0 %v1304
  %v1309 = vpop.xlane.xlu0 %1308
  %1310 = vadd.xlane.f32.xlu0 %v1305
  %v1311 = vpop.xlane.xlu0 %1310
  %v1312 = vsub.f32 %v1214, %v1307
  %v1313 = vsub.f32 %v1215, %v1309
  %v1314 = vsub.f32 %v1216, %v1311
  %v1315 = vsel %vm1288, %v1312, 0.0
  %v1316 = vsel %vm1289, %v1313, 0.0
  %v1317 = vsel %vm1290, %v1314, 0.0
  %v1318 = vsel %vm1250, %v1315, 0.0
  %v1319 = vsel %vm1250, %v1316, 0.0
  %v1320 = vadd.f32 %v1318, %v1319
  %v1321 = vsel %vm1250, %v1317, 0.0
  %v1322 = vadd.f32 %v1320, %v1321
  %1323 = vadd.xlane.f32.xlu0 %v1322
  %v1324 = vpop.xlane.xlu0 %1323
  %v1325 = vrot.slane %v1324, 4
  %v1326 = vadd.f32 %v1324, %v1325
  %v1327 = vrot.slane %v1326, 2
  %v1328 = vadd.f32 %v1326, %v1327
  %v1329 = vrot.slane %v1328, 1
  %v1330 = vadd.f32 %v1328, %v1329
  %s1331 = vtos %v1330
  %v1332 = vsel %vm1288, 1, 0
  %v1333 = vsel %vm1289, 1, 0
  %v1334 = vsel %vm1290, 1, 0
  %v1335 = vcvt.s32.f32 %v1332
  %v1336 = vcvt.s32.f32 %v1333
  %v1337 = vcvt.s32.f32 %v1334
  %v1338 = vsel %vm1250, %v1335, 0.0
  %v1339 = vsel %vm1250, %v1336, 0.0
  %v1340 = vadd.f32 %v1338, %v1339
  %v1341 = vsel %vm1250, %v1337, 0.0
  %v1342 = vadd.f32 %v1340, %v1341
  %1343 = vadd.xlane.f32.xlu0 %v1342
  %v1344 = vpop.xlane.xlu0 %1343
  %v1345 = vrot.slane %v1344, 4
  %v1346 = vadd.f32 %v1344, %v1345
  %v1347 = vrot.slane %v1346, 2
  %v1348 = vadd.f32 %v1346, %v1347
  %v1349 = vrot.slane %v1348, 1
  %v1350 = vadd.f32 %v1348, %v1349
  %s1351 = vtos %v1350
  %vm1352 = vcmp.eq.s32.totalorder %v1179, 0
  %v1353 = vstv %s1264
  %v1354 = vsel %vm1352, %v1353, 0.0
  %vm1355 = vcmp.eq.s32.totalorder %v1179, 1
  %v1356 = vstv %s1331
  %v1357 = vsel %vm1355, %v1356, 0.0
  %v1358 = vadd.f32 %v1354, %v1357
  %vm1359 = vcmp.eq.s32.totalorder %v1179, 2
  %v1360 = vstv %s1284
  %v1361 = vsel %vm1359, %v1360, 0.0
  %v1362 = vadd.f32 %v1358, %v1361
  %vm1363 = vcmp.eq.s32.totalorder %v1179, 3
  %v1364 = vstv %s1351
  %v1365 = vsel %vm1363, %v1364, 0.0
  %v1366 = vadd.f32 %v1362, %v1365
  %1367 = vst [vmem:[%s8] sm:$0xff] %v1366
  // Predicated region
  $region637: #{segment_predictor_forward.1} parent=0 // pred_check
    _
  $region638: #{segment_predictor_forward.1} parent=0 // pred_check_branch
    %1369 = sbr.rel (0) target = $region640
  $region639: #{segment_predictor_forward.1} parent=0 // pred_region
    _
  $region640: #{segment_predictor_forward.1} parent=0 // pred_fallthru
    _
  // Predicated region
  $region641: #{segment_predictor_forward.1} parent=0 // pred_check
    _
  $region642: #{segment_predictor_forward.1} parent=0 // pred_check_branch
    %1371 = sbr.rel (0) target = $region644
  $region643: #{segment_predictor_forward.1} parent=0 // pred_region
    _
  $region644: #{segment_predictor_forward.1} parent=0 // pred_fallthru
    _
  // Predicated region
  $region645: #{segment_predictor_forward.1} parent=0 // pred_check
    _
  $region646: #{segment_predictor_forward.1} parent=0 // pred_check_branch
    %1373 = sbr.rel (0) target = $region648
  $region647: #{segment_predictor_forward.1} parent=0 // pred_region
    _
  $region648: #{segment_predictor_forward.1} parent=0 // pred_fallthru
    _
  // Predicated region
  $region649: #{segment_predictor_forward.1} parent=0 // pred_check
    _
  $region650: #{segment_predictor_forward.1} parent=0 // pred_check_branch
    %1375 = sbr.rel (0) target = $region652
  $region651: #{segment_predictor_forward.1} parent=0 // pred_region
    _
  $region652: #{segment_predictor_forward.1} parent=0 // pred_fallthru
    _
  %1376 = vsyncmov [#allocation3]
  %s1377 = vpop.sfrf %1376
  %p1378 = scmp.eq.s32.totalorder %s1377, 0
  %p1379 = pneg %p1378
  %1381 = shalt.err (%p1379)
  %s1382 = scalar_lea.sflag [#allocation3], 1
  %1383 = vsyncmov %s1382
  %s1384 = vpop.sfrf %1383
  %p1385 = scmp.eq.s32.totalorder %s1384, 0
  %p1386 = pneg %p1385
  %1388 = shalt.err (%p1386)
  %s1389 = scalar_lea.sflag [#allocation3], 2
  %1390 = vsyncmov %s1389
  %s1391 = vpop.sfrf %1390
  %p1392 = scmp.eq.s32.totalorder %s1391, 0
  %p1393 = pneg %p1392
  %1395 = shalt.err (%p1393)
  %s1396 = scalar_lea.sflag [#allocation3], 3
  %1397 = vsyncmov %s1396
  %s1398 = vpop.sfrf %1397
  %p1399 = scmp.eq.s32.totalorder %s1398, 0
  %p1400 = pneg %p1399
  %1402 = shalt.err (%p1400)
  %s1403 = scalar_lea.sflag [#allocation3], 4
  %1404 = vsyncmov %s1403
  %s1405 = vpop.sfrf %1404
  %p1406 = scmp.eq.s32.totalorder %s1405, 0
  %p1407 = pneg %p1406
  %1409 = shalt.err (%p1407)
  %s1410 = scalar_lea.sflag [#allocation3], 5
  %1411 = vsyncmov %s1410
  %s1412 = vpop.sfrf %1411
  %p1413 = scmp.eq.s32.totalorder %s1412, 0
  %p1414 = pneg %p1413
  %1416 = shalt.err (%p1414)
  %s1417 = scalar_lea.sflag [#allocation3], 6
  %1418 = vsyncmov %s1417
  %s1419 = vpop.sfrf %1418
  %p1420 = scmp.eq.s32.totalorder %s1419, 0
  %p1421 = pneg %p1420
  %1423 = shalt.err (%p1421)
  %s1424 = scalar_lea.sflag [#allocation3], 7
  %1425 = vsyncmov %s1424
  %s1426 = vpop.sfrf %1425
  %p1427 = scmp.eq.s32.totalorder %s1426, 0
  %p1428 = pneg %p1427
  %1430 = shalt.err (%p1428)

</llo_original>
